<compile_context>
chip_gen: v7x
topology: tpu7x:2x2x1
jax: 0.10.0
libtpu: 0.0.40
codegen_flags: <defaults>
</compile_context>

<pallas_src>
import jax
import jax.numpy as jnp
import numpy as np
from jax.experimental import pallas as pl
from jax.experimental.pallas import tpu as pltpu


# ----------------------------------------------------------------------------
# Banded conv-as-matmul weight construction (runs ONCE per weight update).
# ----------------------------------------------------------------------------
def _banded_conv_weight(w_hwio, w_out, *, fuse_upsample_w):
    """(3,3,Cin,Cout) HWIO kernel -> 3 banded matrices B[dy] of shape
    (Wsrc*Cin, w_out*Cout) such that a padding=1 3x3 conv over an
    (H, w_out, Cin) image (optionally nearest-2x W-upsampled from
    Wsrc = w_out//2 source columns) is  out[h] = sum_dy x_rows_pad[h+dy] @ B[dy].
    Horizontal zero padding and the W-upsample are absorbed into the band.
    Returned in f32; caller casts to bf16 after any further folding."""
    kh, kw, cin, cout = w_hwio.shape
    wi = np.arange(w_out)[:, None, None]            # input column (post-upsample)
    dxs = np.arange(kw)[None, :, None]              # horizontal tap
    wo = np.arange(w_out)[None, None, :]            # output column
    sel = (wi == wo + dxs - 1).astype(np.float32)   # zero pad handled by no-match
    band = jnp.einsum('wxo,yxic->ywioc', jnp.asarray(sel),
                      w_hwio.astype(jnp.float32))
    band = band.reshape(kh, w_out * cin, w_out * cout)
    if fuse_upsample_w:
        w_src = w_out // 2
        up = (np.arange(w_out)[None, :] // 2 ==
              np.arange(w_src)[:, None]).astype(np.float32)     # (w_src, w_out)
        up_full = jnp.asarray(np.kron(up, np.eye(cin, dtype=np.float32)))
        band = jnp.einsum('vk,ykm->yvm', up_full, band)
    return band                                      # (3, K_in, w_out*cout) f32


def _fold_h_upsample(band):
    """Fold the nearest-2x H-upsample into the vertical taps.  For source rows
    x[h] (x[-1]=x[H0]=0) and upsampled-image band B:
        out[2h]   = x[h-1]@B0 + x[h]@(B1+B2)
        out[2h+1] = x[h]@(B0+B1) + x[h+1]@B2
    so with out_pair[h] = [out[2h] | out[2h+1]] along lanes:
        C0=[B0|0], C1=[B1+B2|B0+B1], C2=[0|B2]."""
    b0, b1, b2 = band[0], band[1], band[2]
    z = jnp.zeros_like(b0)
    c0 = jnp.concatenate([b0, z], axis=-1)
    c1 = jnp.concatenate([b1 + b2, b0 + b1], axis=-1)
    c2 = jnp.concatenate([z, b2], axis=-1)
    return jnp.stack([c0, c1, c2], axis=0)


def _pick_nb(n, cap=8):
    """Largest divisor of n that is <= cap (samples per grid step).  A divisor
    (rather than padding n) so padded samples can never pollute the fused BN
    statistics."""
    nb = 1
    for d in range(1, min(n, cap) + 1):
        if n % d == 0:
            nb = d
    return nb


# ----------------------------------------------------------------------------
# Kernel 1 (front): branch = conv_branch(up(x)),  m1 = conv1(relu(up(x)))
#                   + fused BN sum / sum-of-squares of m1.
# ----------------------------------------------------------------------------
def front_conv_kernel(x_ref, w1_ref, wb_ref, b1_ref, bb_ref,
                      m1_ref, br_ref, sum_ref, sq_ref,
                      xraw_ref, xrelu_ref):
    nb, h_in, kin = x_ref.shape
    kout = m1_ref.shape[-1]
    s = h_in + 2                     # per-sample stride in the padded scratch
    m = nb * s                       # matmul M (includes pad/separator rows)

    # Zero pad / separator rows.  Written every step (not gated on
    # program_id==0) so the kernel stays correct if the "parallel" batch-step
    # axis is split across TensorCores.
    z1 = jnp.zeros((1, kin), xraw_ref.dtype)
    z2 = jnp.zeros((2, kin), xraw_ref.dtype)
    z3 = jnp.zeros((3, kin), xraw_ref.dtype)
    xraw_ref[pl.ds(0, 1), :] = z1
    xrelu_ref[pl.ds(0, 1), :] = z1
    for b in range(nb - 1):
        lo = b * s + h_in + 1        # bottom pad of b + top pad of b+1 (adjacent)
        xraw_ref[pl.ds(lo, 2), :] = z2
        xrelu_ref[pl.ds(lo, 2), :] = z2
    xraw_ref[pl.ds(m - 1, 3), :] = z3
    xrelu_ref[pl.ds(m - 1, 3), :] = z3

    # Data fill: ReLU computed ONCE per row (hoisted out of the tap loop).
    for b in range(nb):
        xb = x_ref[b]                              # (h_in, kin) f32
        base = b * s + 1
        xraw_ref[pl.ds(base, h_in), :] = xb
        xrelu_ref[pl.ds(base, h_in), :] = jnp.maximum(xb, 0.0)

    # 3-tap banded matmuls over the whole Nb-sample block; biases folded into
    # the f32 accumulators so there is a single store per output row.
    acc_m = jnp.broadcast_to(b1_ref[...], (m, kout))
    acc_b = jnp.broadcast_to(bb_ref[...], (m, kout))
    for dy in range(3):                            # static unroll: 3 vertical taps
        raw = xraw_ref[pl.ds(dy, m), :].astype(jnp.bfloat16)
        rel = xrelu_ref[pl.ds(dy, m), :].astype(jnp.bfloat16)
        acc_b = acc_b + jnp.dot(raw, wb_ref[dy],
                                preferred_element_type=jnp.float32)
        acc_m = acc_m + jnp.dot(rel, w1_ref[dy],
                                preferred_element_type=jnp.float32)

    # Per-sample bf16 stores + fused BN sum / sum-of-squares (f32, pre-cast).
    psum = jnp.zeros((1, kout), jnp.float32)
    psq = jnp.zeros((1, kout), jnp.float32)
    for b in range(nb):
        lo = b * s
        vm = acc_m[lo:lo + h_in, :]
        vb = acc_b[lo:lo + h_in, :]
        m1_ref[b] = vm.astype(m1_ref.dtype)
        br_ref[b] = vb.astype(br_ref.dtype)
        psum = psum + jnp.sum(vm, axis=0, keepdims=True)
        psq = psq + jnp.sum(vm * vm, axis=0, keepdims=True)
    sum_ref[...] = psum
    sq_ref[...] = psq


def front_conv(x_rows, w1b, wbb, b1f, bbf, *, nb):
    """x_rows:(N,H_in,Kin) f32; w*b:(3,Kin,Kout) bf16; b*f:(1,Kout) f32.
    Returns m1,branch:(N,H_in,Kout) bf16 and per-step BN sums:(steps,Kout) f32."""
    n, h_in, kin = x_rows.shape
    kout = w1b.shape[-1]
    steps = n // nb
    s = h_in + 2
    flops = int(2 * 2 * 3 * n * s * kin * kout)
    bytes_accessed = int(x_rows.size * 4 + (w1b.size + wbb.size) * 2 +
                         (b1f.size + bbf.size) * 4 +
                         2 * n * h_in * kout * 2 + 2 * steps * kout * 4)
    return pl.pallas_call(
        front_conv_kernel,
        out_shape=(jax.ShapeDtypeStruct((n, h_in, kout), jnp.bfloat16),
                   jax.ShapeDtypeStruct((n, h_in, kout), jnp.bfloat16),
                   jax.ShapeDtypeStruct((steps, kout), jnp.float32),
                   jax.ShapeDtypeStruct((steps, kout), jnp.float32)),
        grid_spec=pltpu.PrefetchScalarGridSpec(
            num_scalar_prefetch=0,
            grid=(steps,),
            in_specs=[
                pl.BlockSpec((nb, h_in, kin), lambda i: (i, 0, 0)),
                pl.BlockSpec((3, kin, kout), lambda i: (0, 0, 0)),
                pl.BlockSpec((3, kin, kout), lambda i: (0, 0, 0)),
                pl.BlockSpec((1, kout), lambda i: (0, 0)),
                pl.BlockSpec((1, kout), lambda i: (0, 0)),
            ],
            out_specs=(pl.BlockSpec((nb, h_in, kout), lambda i: (i, 0, 0)),
                       pl.BlockSpec((nb, h_in, kout), lambda i: (i, 0, 0)),
                       pl.BlockSpec((1, kout), lambda i: (i, 0)),
                       pl.BlockSpec((1, kout), lambda i: (i, 0))),
            scratch_shapes=[pltpu.VMEM((nb * s + 2, kin), jnp.float32),
                            pltpu.VMEM((nb * s + 2, kin), jnp.float32)],
        ),
        compiler_params=pltpu.CompilerParams(
            dimension_semantics=("parallel",)),
        cost_estimate=pl.CostEstimate(flops=flops, transcendentals=0,
                                      bytes_accessed=bytes_accessed),
    )(x_rows, w1b, wbb, b1f, bbf)


# ----------------------------------------------------------------------------
# Kernel 2 (back): out = conv2(relu(scale*m1 + shift)) + bias2 + branch
# ----------------------------------------------------------------------------
def back_conv_kernel(m1_ref, scale_ref, shift_ref, w2_ref, b2_ref, res_ref,
                     o_ref, apad_ref):
    nb, h, k = o_ref.shape
    s = h + 2
    m = nb * s

    z1 = jnp.zeros((1, k), apad_ref.dtype)
    z2 = jnp.zeros((2, k), apad_ref.dtype)
    z3 = jnp.zeros((3, k), apad_ref.dtype)
    apad_ref[pl.ds(0, 1), :] = z1
    for b in range(nb - 1):
        apad_ref[pl.ds(b * s + h + 1, 2), :] = z2
    apad_ref[pl.ds(m - 1, 3), :] = z3

    # Conditional-BN affine + ReLU computed ONCE per row (hoisted).
    for b in range(nb):
        a = m1_ref[b].astype(jnp.float32) * scale_ref[b] + shift_ref[b]
        apad_ref[pl.ds(b * s + 1, h), :] = jnp.maximum(a, 0.0)

    # Residual is added per sample at the end; bias folded into the accumulator.
    acc = jnp.broadcast_to(b2_ref[...], (m, k))
    for dy in range(3):
        patch = apad_ref[pl.ds(dy, m), :].astype(jnp.bfloat16)
        acc = acc + jnp.dot(patch, w2_ref[dy],
                            preferred_element_type=jnp.float32)

    for b in range(nb):
        o_ref[b] = (acc[b * s:b * s + h, :] +
                    res_ref[b].astype(jnp.float32)).astype(o_ref.dtype)


def back_conv(m1, scale_f, shift_f, w2b, b2f, branch, *, nb):
    n, h, k = m1.shape
    steps = n // nb
    s = h + 2
    flops = int(2 * 3 * n * s * k * k)
    bytes_accessed = int((m1.size + branch.size) * 2 + w2b.size * 2 +
                         (scale_f.size + shift_f.size + b2f.size) * 4 +
                         n * h * k * 4)
    return pl.pallas_call(
        back_conv_kernel,
        out_shape=jax.ShapeDtypeStruct((n, h, k), jnp.float32),
        grid_spec=pltpu.PrefetchScalarGridSpec(
            num_scalar_prefetch=0,
            grid=(steps,),
            in_specs=[
                pl.BlockSpec((nb, h, k), lambda i: (i, 0, 0)),
                pl.BlockSpec((nb, 1, k), lambda i: (i, 0, 0)),
                pl.BlockSpec((nb, 1, k), lambda i: (i, 0, 0)),
                pl.BlockSpec((3, k, k), lambda i: (0, 0, 0)),
                pl.BlockSpec((1, k), lambda i: (0, 0)),
                pl.BlockSpec((nb, h, k), lambda i: (i, 0, 0)),
            ],
            out_specs=pl.BlockSpec((nb, h, k), lambda i: (i, 0, 0)),
            scratch_shapes=[pltpu.VMEM((nb * s + 2, k), jnp.float32)],
        ),
        compiler_params=pltpu.CompilerParams(
            dimension_semantics=("parallel",)),
        cost_estimate=pl.CostEstimate(flops=flops, transcendentals=0,
                                      bytes_accessed=bytes_accessed),
    )(m1, scale_f, shift_f, w2b, b2f, branch)


# ----------------------------------------------------------------------------
# Parameter init (deterministic, synthetic) and weight preprocessing
# ----------------------------------------------------------------------------
def init_params(key, input_channel, output_channel, y_dim):
    ks = jax.random.split(key, 8)

    def conv_init(k, cin, cout):
        w = jax.random.normal(k, (cout, cin, 3, 3), jnp.float32) * 0.1
        # nn.utils.spectral_norm: exact SVD sigma instead of the stateful
        # power-iteration buffers (init-time difference only).
        sigma = jnp.linalg.svd(w.reshape(cout, -1), compute_uv=False)[0]
        return jnp.transpose(w / sigma, (2, 3, 1, 0))       # -> HWIO

    return {
        "w1": conv_init(ks[0], input_channel, output_channel),
        "b1": jax.random.normal(ks[1], (1, output_channel), jnp.float32) * 0.05,
        "w2": conv_init(ks[2], output_channel, output_channel),
        "b2": jax.random.normal(ks[3], (1, output_channel), jnp.float32) * 0.05,
        "wb": conv_init(ks[4], input_channel, output_channel),
        "bb": jax.random.normal(ks[5], (1, output_channel), jnp.float32) * 0.05,
        # GCBN conditional-affine projections: gamma/beta = Linear(y)
        "g_w": jax.random.normal(ks[6], (y_dim, output_channel), jnp.float32) * 0.1,
        "g_b": jnp.ones((output_channel,), jnp.float32),
        "be_w": jax.random.normal(ks[7], (y_dim, output_channel), jnp.float32) * 0.1,
        "be_b": jnp.zeros((output_channel,), jnp.float32),
    }


def prepare_block_params(params, w0, *, upscale=True):
    """Precompute banded conv weights + flat biases (once per weight update,
    hoisted out of the per-call forward path)."""
    cout = params["w1"].shape[-1]
    if upscale:
        w_img = 2 * w0
        w1f = _fold_h_upsample(
            _banded_conv_weight(params["w1"], w_img, fuse_upsample_w=True))
        wbf = _fold_h_upsample(
            _banded_conv_weight(params["wb"], w_img, fuse_upsample_w=True))
    else:
        w_img = w0
        w1f = _banded_conv_weight(params["w1"], w_img, fuse_upsample_w=False)
        wbf = _banded_conv_weight(params["wb"], w_img, fuse_upsample_w=False)
    w2b = _banded_conv_weight(params["w2"], w_img, fuse_upsample_w=False)
    reps_front = w1f.shape[-1] // cout
    return {
        "w1_front": w1f.astype(jnp.bfloat16),
        "wb_front": wbf.astype(jnp.bfloat16),
        "w2_band": w2b.astype(jnp.bfloat16),
        "b1_flat": jnp.tile(params["b1"], (1, reps_front)).astype(jnp.float32),
        "bb_flat": jnp.tile(params["bb"], (1, reps_front)).astype(jnp.float32),
        "b2_flat": jnp.tile(params["b2"], (1, w_img)).astype(jnp.float32),
        "g_w": params["g_w"], "g_b": params["g_b"],
        "be_w": params["be_w"], "be_b": params["be_b"],
    }


# ----------------------------------------------------------------------------
# Forward pass (Pallas-backed)
# ----------------------------------------------------------------------------
def generator_residual_block(prep, x_nchw, y, *, eps=1e-5):
    x = jnp.transpose(x_nchw, (0, 2, 3, 1)).astype(jnp.float32)   # NCHW -> NHWC
    n, h0, w0, cin = x.shape
    cout = prep["g_b"].shape[0]
    k_img = prep["b2_flat"].shape[1]                # W * Cout of the conv2 image
    w_img = k_img // cout

    x_rows = x.reshape(n, h0, w0 * cin)             # lane-dense, NOT H-repeated
    nb = _pick_nb(n)

    # Kernel 1: branch = conv_b(up(x)), m1 = conv1(relu(up(x))), + BN sums.
    m1f, brf, sums, sqs = front_conv(x_rows, prep["w1_front"], prep["wb_front"],
                                     prep["b1_flat"], prep["bb_flat"], nb=nb)

    # Folded (N, H0, 2*W*Cout) -> (N, H, W*Cout): pure relabeling of the
    # even/odd-row lane fold (no-op when upscale was False).
    m1 = m1f.reshape(n, -1, k_img)
    branch = brf.reshape(n, -1, k_img)
    h_img = m1.shape[1]

    # TODO(synk): GCBN class is not given in the snippet; modeled as train-mode
    # conditional BatchNorm (batch stats; gamma/beta = Linear(y)).
    cnt = n * h_img * w_img
    sum_c = jnp.sum(sums.reshape(-1, cout), axis=0)
    sq_c = jnp.sum(sqs.reshape(-1, cout), axis=0)
    mean = sum_c / cnt
    var = jnp.maximum(sq_c / cnt - mean * mean, 0.0)
    inv_std = jax.lax.rsqrt(var + eps)
    gamma = y @ prep["g_w"] + prep["g_b"]                      # (N, Cout)
    beta = y @ prep["be_w"] + prep["be_b"]                     # (N, Cout)
    scale_c = gamma * inv_std
    shift_c = beta - scale_c * mean
    scale_f = jnp.tile(scale_c, (1, w_img)).reshape(n, 1, k_img)
    shift_f = jnp.tile(shift_c, (1, w_img)).reshape(n, 1, k_img)

    # Kernel 2: out = conv2(relu(cbn(m1))) + branch.
    out_rows = back_conv(m1, scale_f, shift_f, prep["w2_band"], prep["b2_flat"],
                         branch, nb=nb)
    out = out_rows.reshape(n, h_img, w_img, cout)
    # Kept for parity with the NCHW module interface; skip if the consumer
    # accepts NHWC (this is a pure relayout pass at production sizes).
    return jnp.transpose(out, (0, 3, 1, 2))


# ----------------------------------------------------------------------------
# Pure-JAX f32 reference (for self-check)
# ----------------------------------------------------------------------------
def ref_forward(params, x_nchw, y, eps=1e-5):
    def conv(x, w_hwio, b):
        out = jax.lax.conv_general_dilated(
            x, w_hwio, window_strides=(1, 1), padding="SAME",
            dimension_numbers=("NHWC", "HWIO", "NHWC"))
        return out + b.reshape(1, 1, 1, -1)

    x = jnp.transpose(x_nchw, (0, 2, 3, 1))
    x_up = jnp.repeat(jnp.repeat(x, 2, axis=1), 2, axis=2)
    branch = conv(x_up, params["wb"], params["bb"])
    m = conv(jnp.maximum(x_up, 0.0), params["w1"], params["b1"])
    mean = jnp.mean(m, axis=(0, 1, 2))
    var = jnp.var(m, axis=(0, 1, 2))
    gamma = y @ params["g_w"] + params["g_b"]
    beta = y @ params["be_w"] + params["be_b"]
    xhat = (m - mean) / jnp.sqrt(var + eps)
    m = gamma[:, None, None, :] * xhat + beta[:, None, None, :]
    m = jnp.maximum(m, 0.0)
    m = conv(m, params["w2"], params["b2"])
    return jnp.transpose(m + branch, (0, 3, 1, 2))


if __name__ == "__main__":
    N, Cin, Cout, H, W, Ydim = 2, 4, 8, 16, 16, 16
    key = jax.random.PRNGKey(0)
    k_param, k_x, k_y = jax.random.split(key, 3)

    params = init_params(k_param, Cin, Cout, Ydim)
    x = jax.random.normal(k_x, (N, Cin, H, W), jnp.float32)
    y = jax.random.normal(k_y, (N, Ydim), jnp.float32)

    # Banded weights / flat biases are built once (per weight update), outside
    # the jitted forward.
    prep = prepare_block_params(params, W, upscale=True)

    fwd = jax.jit(generator_residual_block)
    out = jax.block_until_ready(fwd(prep, x, y))
    assert out.shape == (N, Cout, 2 * H, 2 * W)

    # Kernel uses bf16 MXU operands and bf16 inter-kernel intermediates
    # (f32 accumulation) vs. the all-f32 reference -> loose absolute tolerance.
    ref = ref_forward(params, x, y)
    np.testing.assert_allclose(np.asarray(out), np.asarray(ref),
                               rtol=2e-2, atol=5e-2)
    print("KERNEL_OK")
</pallas_src>

<mosaic_0001>
module attributes {stable_mosaic.version = 11 : i64} {
  func.func @front_conv_kernel(%arg0: i32, %arg1: memref<2x16x64xf32, #tpu.memory_space<vmem>>, %arg2: memref<3x64x512xbf16, #tpu.memory_space<vmem>>, %arg3: memref<3x64x512xbf16, #tpu.memory_space<vmem>>, %arg4: memref<1x512xf32, #tpu.memory_space<vmem>>, %arg5: memref<1x512xf32, #tpu.memory_space<vmem>>, %arg6: memref<2x16x512xbf16, #tpu.memory_space<vmem>>, %arg7: memref<2x16x512xbf16, #tpu.memory_space<vmem>>, %arg8: memref<1x512xf32, #tpu.memory_space<vmem>>, %arg9: memref<1x512xf32, #tpu.memory_space<vmem>>, %arg10: memref<38x64xf32, #tpu.memory_space<vmem>>, %arg11: memref<38x64xf32, #tpu.memory_space<vmem>>) attributes {dimension_semantics = [#tpu.dimension_semantics<parallel>], iteration_bounds = array<i64: 1>, scalar_prefetch = 0 : i64, scratch_operands = 2 : i64, tpu.core_type = #tpu.core_type<tc>, window_params = [{transform_indices = @transform_0, window_bounds = array<i64: 2, 16, 64>}, {pipeline_mode = #tpu.pipeline_mode<synchronous>, transform_indices = @transform_1, window_bounds = array<i64: 3, 64, 512>}, {pipeline_mode = #tpu.pipeline_mode<synchronous>, transform_indices = @transform_2, window_bounds = array<i64: 3, 64, 512>}, {pipeline_mode = #tpu.pipeline_mode<synchronous>, transform_indices = @transform_3, window_bounds = array<i64: 1, 512>}, {pipeline_mode = #tpu.pipeline_mode<synchronous>, transform_indices = @transform_4, window_bounds = array<i64: 1, 512>}, {transform_indices = @transform_5, window_bounds = array<i64: 2, 16, 512>}, {transform_indices = @transform_6, window_bounds = array<i64: 2, 16, 512>}, {transform_indices = @transform_7, window_bounds = array<i64: 1, 512>}, {transform_indices = @transform_8, window_bounds = array<i64: 1, 512>}]} {
    %cst = arith.constant 0.000000e+00 : f32
    %0 = vector.broadcast %cst : f32 to vector<1x64xf32>
    %cst_0 = arith.constant 0.000000e+00 : f32
    %1 = vector.broadcast %cst_0 : f32 to vector<2x64xf32>
    %cst_1 = arith.constant 0.000000e+00 : f32
    %2 = vector.broadcast %cst_1 : f32 to vector<3x64xf32>
    %c0 = arith.constant 0 : index
    %c0_2 = arith.constant 0 : index
    %3 = vector.load %arg10[%c0, %c0_2] : memref<38x64xf32, #tpu.memory_space<vmem>>, vector<1x64xf32>
    tpu.vector_store %arg10[%c0, %c0_2], %0 {strides = array<i32>} : memref<38x64xf32, #tpu.memory_space<vmem>>, vector<1x64xf32>,
    %c0_3 = arith.constant 0 : index
    %c0_4 = arith.constant 0 : index
    %4 = vector.load %arg11[%c0_3, %c0_4] : memref<38x64xf32, #tpu.memory_space<vmem>>, vector<1x64xf32>
    tpu.vector_store %arg11[%c0_3, %c0_4], %0 {strides = array<i32>} : memref<38x64xf32, #tpu.memory_space<vmem>>, vector<1x64xf32>,
    %c17 = arith.constant 17 : index
    %c0_5 = arith.constant 0 : index
    %5 = vector.load %arg10[%c17, %c0_5] : memref<38x64xf32, #tpu.memory_space<vmem>>, vector<2x64xf32>
    tpu.vector_store %arg10[%c17, %c0_5], %1 {strides = array<i32>} : memref<38x64xf32, #tpu.memory_space<vmem>>, vector<2x64xf32>,
    %c17_6 = arith.constant 17 : index
    %c0_7 = arith.constant 0 : index
    %6 = vector.load %arg11[%c17_6, %c0_7] : memref<38x64xf32, #tpu.memory_space<vmem>>, vector<2x64xf32>
    tpu.vector_store %arg11[%c17_6, %c0_7], %1 {strides = array<i32>} : memref<38x64xf32, #tpu.memory_space<vmem>>, vector<2x64xf32>,
    %c35 = arith.constant 35 : index
    %c0_8 = arith.constant 0 : index
    %7 = vector.load %arg10[%c35, %c0_8] : memref<38x64xf32, #tpu.memory_space<vmem>>, vector<3x64xf32>
    tpu.vector_store %arg10[%c35, %c0_8], %2 {strides = array<i32>} : memref<38x64xf32, #tpu.memory_space<vmem>>, vector<3x64xf32>,
    %c35_9 = arith.constant 35 : index
    %c0_10 = arith.constant 0 : index
    %8 = vector.load %arg11[%c35_9, %c0_10] : memref<38x64xf32, #tpu.memory_space<vmem>>, vector<3x64xf32>
    tpu.vector_store %arg11[%c35_9, %c0_10], %2 {strides = array<i32>} : memref<38x64xf32, #tpu.memory_space<vmem>>, vector<3x64xf32>,
    %c0_11 = arith.constant 0 : index
    %c0_12 = arith.constant 0 : index
    %c0_13 = arith.constant 0 : index
    %9 = vector.load %arg1[%c0_11, %c0_12, %c0_13] : memref<2x16x64xf32, #tpu.memory_space<vmem>>, vector<1x16x64xf32>
    %10 = vector.shape_cast %9 : vector<1x16x64xf32> to vector<16x64xf32>
    %c1 = arith.constant 1 : index
    %c0_14 = arith.constant 0 : index
    %11 = vector.load %arg10[%c1, %c0_14] : memref<38x64xf32, #tpu.memory_space<vmem>>, vector<16x64xf32>
    tpu.vector_store %arg10[%c1, %c0_14], %10 {strides = array<i32>} : memref<38x64xf32, #tpu.memory_space<vmem>>, vector<16x64xf32>,
    %cst_15 = arith.constant 0.000000e+00 : f32
    %12 = vector.broadcast %cst_15 : f32 to vector<16x64xf32>
    %13 = arith.maximumf %10, %12 : vector<16x64xf32>
    %c1_16 = arith.constant 1 : index
    %c0_17 = arith.constant 0 : index
    %14 = vector.load %arg11[%c1_16, %c0_17] : memref<38x64xf32, #tpu.memory_space<vmem>>, vector<16x64xf32>
    tpu.vector_store %arg11[%c1_16, %c0_17], %13 {strides = array<i32>} : memref<38x64xf32, #tpu.memory_space<vmem>>, vector<16x64xf32>,
    %c1_18 = arith.constant 1 : index
    %c0_19 = arith.constant 0 : index
    %c0_20 = arith.constant 0 : index
    %15 = vector.load %arg1[%c1_18, %c0_19, %c0_20] : memref<2x16x64xf32, #tpu.memory_space<vmem>>, vector<1x16x64xf32>
    %16 = vector.shape_cast %15 : vector<1x16x64xf32> to vector<16x64xf32>
    %c19 = arith.constant 19 : index
    %c0_21 = arith.constant 0 : index
    %17 = vector.load %arg10[%c19, %c0_21] : memref<38x64xf32, #tpu.memory_space<vmem>>, vector<16x64xf32>
    tpu.vector_store %arg10[%c19, %c0_21], %16 {strides = array<i32>} : memref<38x64xf32, #tpu.memory_space<vmem>>, vector<16x64xf32>,
    %cst_22 = arith.constant 0.000000e+00 : f32
    %18 = vector.broadcast %cst_22 : f32 to vector<16x64xf32>
    %19 = arith.maximumf %16, %18 : vector<16x64xf32>
    %c19_23 = arith.constant 19 : index
    %c0_24 = arith.constant 0 : index
    %20 = vector.load %arg11[%c19_23, %c0_24] : memref<38x64xf32, #tpu.memory_space<vmem>>, vector<16x64xf32>
    tpu.vector_store %arg11[%c19_23, %c0_24], %19 {strides = array<i32>} : memref<38x64xf32, #tpu.memory_space<vmem>>, vector<16x64xf32>,
    %c0_25 = arith.constant 0 : index
    %c0_26 = arith.constant 0 : index
    %21 = vector.load %arg4[%c0_25, %c0_26] : memref<1x512xf32, #tpu.memory_space<vmem>>, vector<1x512xf32>
    %22 = vector.shape_cast %21 : vector<1x512xf32> to vector<1x512xf32>
    %23 = vector.broadcast %22 : vector<1x512xf32> to vector<36x512xf32>
    %c0_27 = arith.constant 0 : index
    %c0_28 = arith.constant 0 : index
    %24 = vector.load %arg5[%c0_27, %c0_28] : memref<1x512xf32, #tpu.memory_space<vmem>>, vector<1x512xf32>
    %25 = vector.shape_cast %24 : vector<1x512xf32> to vector<1x512xf32>
    %26 = vector.broadcast %25 : vector<1x512xf32> to vector<36x512xf32>
    %c0_29 = arith.constant 0 : index
    %c0_30 = arith.constant 0 : index
    %27 = vector.load %arg10[%c0_29, %c0_30] : memref<38x64xf32, #tpu.memory_space<vmem>>, vector<36x64xf32>
    %28 = arith.truncf %27 : vector<36x64xf32> to vector<36x64xbf16>
    %c0_31 = arith.constant 0 : index
    %c0_32 = arith.constant 0 : index
    %29 = vector.load %arg11[%c0_31, %c0_32] : memref<38x64xf32, #tpu.memory_space<vmem>>, vector<36x64xf32>
    %30 = arith.truncf %29 : vector<36x64xf32> to vector<36x64xbf16>
    %c0_33 = arith.constant 0 : index
    %c0_34 = arith.constant 0 : index
    %c0_35 = arith.constant 0 : index
    %31 = vector.load %arg3[%c0_33, %c0_34, %c0_35] : memref<3x64x512xbf16, #tpu.memory_space<vmem>>, vector<1x64x512xbf16>
    %32 = vector.shape_cast %31 : vector<1x64x512xbf16> to vector<64x512xbf16>
    %cst_36 = arith.constant dense<0.000000e+00> : vector<36x512xf32>
    %33 = tpu.matmul %28, %32, %cst_36 {dimension_numbers = #tpu.dot_dimension_numbers<[1], [0], [0], [1], [0, 0, 1, 1], [], []>} : vector<36x64xbf16>, vector<64x512xbf16>, vector<36x512xf32> -> vector<36x512xf32>
    %34 = arith.addf %26, %33 : vector<36x512xf32>
    %c0_37 = arith.constant 0 : index
    %c0_38 = arith.constant 0 : index
    %c0_39 = arith.constant 0 : index
    %35 = vector.load %arg2[%c0_37, %c0_38, %c0_39] : memref<3x64x512xbf16, #tpu.memory_space<vmem>>, vector<1x64x512xbf16>
    %36 = vector.shape_cast %35 : vector<1x64x512xbf16> to vector<64x512xbf16>
    %cst_40 = arith.constant dense<0.000000e+00> : vector<36x512xf32>
    %37 = tpu.matmul %30, %36, %cst_40 {dimension_numbers = #tpu.dot_dimension_numbers<[1], [0], [0], [1], [0, 0, 1, 1], [], []>} : vector<36x64xbf16>, vector<64x512xbf16>, vector<36x512xf32> -> vector<36x512xf32>
    %38 = arith.addf %23, %37 : vector<36x512xf32>
    %c1_41 = arith.constant 1 : index
    %c0_42 = arith.constant 0 : index
    %39 = vector.load %arg10[%c1_41, %c0_42] : memref<38x64xf32, #tpu.memory_space<vmem>>, vector<36x64xf32>
    %40 = arith.truncf %39 : vector<36x64xf32> to vector<36x64xbf16>
    %c1_43 = arith.constant 1 : index
    %c0_44 = arith.constant 0 : index
    %41 = vector.load %arg11[%c1_43, %c0_44] : memref<38x64xf32, #tpu.memory_space<vmem>>, vector<36x64xf32>
    %42 = arith.truncf %41 : vector<36x64xf32> to vector<36x64xbf16>
    %c1_45 = arith.constant 1 : index
    %c0_46 = arith.constant 0 : index
    %c0_47 = arith.constant 0 : index
    %43 = vector.load %arg3[%c1_45, %c0_46, %c0_47] : memref<3x64x512xbf16, #tpu.memory_space<vmem>>, vector<1x64x512xbf16>
    %44 = vector.shape_cast %43 : vector<1x64x512xbf16> to vector<64x512xbf16>
    %cst_48 = arith.constant dense<0.000000e+00> : vector<36x512xf32>
    %45 = tpu.matmul %40, %44, %cst_48 {dimension_numbers = #tpu.dot_dimension_numbers<[1], [0], [0], [1], [0, 0, 1, 1], [], []>} : vector<36x64xbf16>, vector<64x512xbf16>, vector<36x512xf32> -> vector<36x512xf32>
    %46 = arith.addf %34, %45 : vector<36x512xf32>
    %c1_49 = arith.constant 1 : index
    %c0_50 = arith.constant 0 : index
    %c0_51 = arith.constant 0 : index
    %47 = vector.load %arg2[%c1_49, %c0_50, %c0_51] : memref<3x64x512xbf16, #tpu.memory_space<vmem>>, vector<1x64x512xbf16>
    %48 = vector.shape_cast %47 : vector<1x64x512xbf16> to vector<64x512xbf16>
    %cst_52 = arith.constant dense<0.000000e+00> : vector<36x512xf32>
    %49 = tpu.matmul %42, %48, %cst_52 {dimension_numbers = #tpu.dot_dimension_numbers<[1], [0], [0], [1], [0, 0, 1, 1], [], []>} : vector<36x64xbf16>, vector<64x512xbf16>, vector<36x512xf32> -> vector<36x512xf32>
    %50 = arith.addf %38, %49 : vector<36x512xf32>
    %c2 = arith.constant 2 : index
    %c0_53 = arith.constant 0 : index
    %51 = vector.load %arg10[%c2, %c0_53] : memref<38x64xf32, #tpu.memory_space<vmem>>, vector<36x64xf32>
    %52 = arith.truncf %51 : vector<36x64xf32> to vector<36x64xbf16>
    %c2_54 = arith.constant 2 : index
    %c0_55 = arith.constant 0 : index
    %53 = vector.load %arg11[%c2_54, %c0_55] : memref<38x64xf32, #tpu.memory_space<vmem>>, vector<36x64xf32>
    %54 = arith.truncf %53 : vector<36x64xf32> to vector<36x64xbf16>
    %c2_56 = arith.constant 2 : index
    %c0_57 = arith.constant 0 : index
    %c0_58 = arith.constant 0 : index
    %55 = vector.load %arg3[%c2_56, %c0_57, %c0_58] : memref<3x64x512xbf16, #tpu.memory_space<vmem>>, vector<1x64x512xbf16>
    %56 = vector.shape_cast %55 : vector<1x64x512xbf16> to vector<64x512xbf16>
    %cst_59 = arith.constant dense<0.000000e+00> : vector<36x512xf32>
    %57 = tpu.matmul %52, %56, %cst_59 {dimension_numbers = #tpu.dot_dimension_numbers<[1], [0], [0], [1], [0, 0, 1, 1], [], []>} : vector<36x64xbf16>, vector<64x512xbf16>, vector<36x512xf32> -> vector<36x512xf32>
    %58 = arith.addf %46, %57 : vector<36x512xf32>
    %c2_60 = arith.constant 2 : index
    %c0_61 = arith.constant 0 : index
    %c0_62 = arith.constant 0 : index
    %59 = vector.load %arg2[%c2_60, %c0_61, %c0_62] : memref<3x64x512xbf16, #tpu.memory_space<vmem>>, vector<1x64x512xbf16>
    %60 = vector.shape_cast %59 : vector<1x64x512xbf16> to vector<64x512xbf16>
    %cst_63 = arith.constant dense<0.000000e+00> : vector<36x512xf32>
    %61 = tpu.matmul %54, %60, %cst_63 {dimension_numbers = #tpu.dot_dimension_numbers<[1], [0], [0], [1], [0, 0, 1, 1], [], []>} : vector<36x64xbf16>, vector<64x512xbf16>, vector<36x512xf32> -> vector<36x512xf32>
    %62 = arith.addf %50, %61 : vector<36x512xf32>
    %cst_64 = arith.constant 0.000000e+00 : f32
    %63 = vector.broadcast %cst_64 : f32 to vector<1x512xf32>
    %cst_65 = arith.constant 0.000000e+00 : f32
    %64 = vector.broadcast %cst_65 : f32 to vector<1x512xf32>
    %65 = vector.extract_strided_slice %62 {offsets = [0, 0], sizes = [16, 512], strides = [1, 1]} : vector<36x512xf32> to vector<16x512xf32>
    %66 = vector.extract_strided_slice %58 {offsets = [0, 0], sizes = [16, 512], strides = [1, 1]} : vector<36x512xf32> to vector<16x512xf32>
    %67 = arith.truncf %65 : vector<16x512xf32> to vector<16x512xbf16>
    %c0_66 = arith.constant 0 : index
    %c0_67 = arith.constant 0 : index
    %c0_68 = arith.constant 0 : index
    %68 = vector.load %arg6[%c0_66, %c0_67, %c0_68] : memref<2x16x512xbf16, #tpu.memory_space<vmem>>, vector<1x16x512xbf16>
    %69 = vector.shape_cast %68 : vector<1x16x512xbf16> to vector<16x512xbf16>
    %70 = vector.shape_cast %67 : vector<16x512xbf16> to vector<1x16x512xbf16>
    tpu.vector_store %arg6[%c0_66, %c0_67, %c0_68], %70 {strides = array<i32>} : memref<2x16x512xbf16, #tpu.memory_space<vmem>>, vector<1x16x512xbf16>,
    %71 = arith.truncf %66 : vector<16x512xf32> to vector<16x512xbf16>
    %c0_69 = arith.constant 0 : index
    %c0_70 = arith.constant 0 : index
    %c0_71 = arith.constant 0 : index
    %72 = vector.load %arg7[%c0_69, %c0_70, %c0_71] : memref<2x16x512xbf16, #tpu.memory_space<vmem>>, vector<1x16x512xbf16>
    %73 = vector.shape_cast %72 : vector<1x16x512xbf16> to vector<16x512xbf16>
    %74 = vector.shape_cast %71 : vector<16x512xbf16> to vector<1x16x512xbf16>
    tpu.vector_store %arg7[%c0_69, %c0_70, %c0_71], %74 {strides = array<i32>} : memref<2x16x512xbf16, #tpu.memory_space<vmem>>, vector<1x16x512xbf16>,
    %cst_72 = arith.constant dense<0.000000e+00> : vector<512xf32>
    %75 = vector.multi_reduction <add>, %65, %cst_72 [0] : vector<16x512xf32> to vector<512xf32>
    %76 = vector.shape_cast %75 : vector<512xf32> to vector<1x512xf32>
    %77 = arith.addf %63, %76 : vector<1x512xf32>
    %78 = arith.mulf %65, %65 : vector<16x512xf32>
    %cst_73 = arith.constant dense<0.000000e+00> : vector<512xf32>
    %79 = vector.multi_reduction <add>, %78, %cst_73 [0] : vector<16x512xf32> to vector<512xf32>
    %80 = vector.shape_cast %79 : vector<512xf32> to vector<1x512xf32>
    %81 = arith.addf %64, %80 : vector<1x512xf32>
    %82 = vector.extract_strided_slice %62 {offsets = [18, 0], sizes = [16, 512], strides = [1, 1]} : vector<36x512xf32> to vector<16x512xf32>
    %83 = vector.extract_strided_slice %58 {offsets = [18, 0], sizes = [16, 512], strides = [1, 1]} : vector<36x512xf32> to vector<16x512xf32>
    %84 = arith.truncf %82 : vector<16x512xf32> to vector<16x512xbf16>
    %c1_74 = arith.constant 1 : index
    %c0_75 = arith.constant 0 : index
    %c0_76 = arith.constant 0 : index
    %85 = vector.load %arg6[%c1_74, %c0_75, %c0_76] : memref<2x16x512xbf16, #tpu.memory_space<vmem>>, vector<1x16x512xbf16>
    %86 = vector.shape_cast %85 : vector<1x16x512xbf16> to vector<16x512xbf16>
    %87 = vector.shape_cast %84 : vector<16x512xbf16> to vector<1x16x512xbf16>
    tpu.vector_store %arg6[%c1_74, %c0_75, %c0_76], %87 {strides = array<i32>} : memref<2x16x512xbf16, #tpu.memory_space<vmem>>, vector<1x16x512xbf16>,
    %88 = arith.truncf %83 : vector<16x512xf32> to vector<16x512xbf16>
    %c1_77 = arith.constant 1 : index
    %c0_78 = arith.constant 0 : index
    %c0_79 = arith.constant 0 : index
    %89 = vector.load %arg7[%c1_77, %c0_78, %c0_79] : memref<2x16x512xbf16, #tpu.memory_space<vmem>>, vector<1x16x512xbf16>
    %90 = vector.shape_cast %89 : vector<1x16x512xbf16> to vector<16x512xbf16>
    %91 = vector.shape_cast %88 : vector<16x512xbf16> to vector<1x16x512xbf16>
    tpu.vector_store %arg7[%c1_77, %c0_78, %c0_79], %91 {strides = array<i32>} : memref<2x16x512xbf16, #tpu.memory_space<vmem>>, vector<1x16x512xbf16>,
    %cst_80 = arith.constant dense<0.000000e+00> : vector<512xf32>
    %92 = vector.multi_reduction <add>, %82, %cst_80 [0] : vector<16x512xf32> to vector<512xf32>
    %93 = vector.shape_cast %92 : vector<512xf32> to vector<1x512xf32>
    %94 = arith.addf %77, %93 : vector<1x512xf32>
    %95 = arith.mulf %82, %82 : vector<16x512xf32>
    %cst_81 = arith.constant dense<0.000000e+00> : vector<512xf32>
    %96 = vector.multi_reduction <add>, %95, %cst_81 [0] : vector<16x512xf32> to vector<512xf32>
    %97 = vector.shape_cast %96 : vector<512xf32> to vector<1x512xf32>
    %98 = arith.addf %81, %97 : vector<1x512xf32>
    %c0_82 = arith.constant 0 : index
    %c0_83 = arith.constant 0 : index
    %99 = vector.load %arg8[%c0_82, %c0_83] : memref<1x512xf32, #tpu.memory_space<vmem>>, vector<1x512xf32>
    tpu.vector_store %arg8[%c0_82, %c0_83], %94 {strides = array<i32>} : memref<1x512xf32, #tpu.memory_space<vmem>>, vector<1x512xf32>,
    %c0_84 = arith.constant 0 : index
    %c0_85 = arith.constant 0 : index
    %100 = vector.load %arg9[%c0_84, %c0_85] : memref<1x512xf32, #tpu.memory_space<vmem>>, vector<1x512xf32>
    tpu.vector_store %arg9[%c0_84, %c0_85], %98 {strides = array<i32>} : memref<1x512xf32, #tpu.memory_space<vmem>>, vector<1x512xf32>,
    return
  }
  func.func @transform_0(%arg0: i32) -> (i32, i32, i32) {
    %c0_i32 = arith.constant 0 : i32
    %c0_i32_0 = arith.constant 0 : i32
    %c0_i32_1 = arith.constant 0 : i32
    return %arg0, %c0_i32, %c0_i32_0 : i32, i32, i32
  }
  func.func @transform_1(%arg0: i32) -> (i32, i32, i32) {
    %c0_i32 = arith.constant 0 : i32
    %c0_i32_0 = arith.constant 0 : i32
    %c0_i32_1 = arith.constant 0 : i32
    %c0_i32_2 = arith.constant 0 : i32
    return %c0_i32, %c0_i32_0, %c0_i32_1 : i32, i32, i32
  }
  func.func @transform_2(%arg0: i32) -> (i32, i32, i32) {
    %c0_i32 = arith.constant 0 : i32
    %c0_i32_0 = arith.constant 0 : i32
    %c0_i32_1 = arith.constant 0 : i32
    %c0_i32_2 = arith.constant 0 : i32
    return %c0_i32, %c0_i32_0, %c0_i32_1 : i32, i32, i32
  }
  func.func @transform_3(%arg0: i32) -> (i32, i32) {
    %c0_i32 = arith.constant 0 : i32
    %c0_i32_0 = arith.constant 0 : i32
    %c0_i32_1 = arith.constant 0 : i32
    return %c0_i32, %c0_i32_0 : i32, i32
  }
  func.func @transform_4(%arg0: i32) -> (i32, i32) {
    %c0_i32 = arith.constant 0 : i32
    %c0_i32_0 = arith.constant 0 : i32
    %c0_i32_1 = arith.constant 0 : i32
    return %c0_i32, %c0_i32_0 : i32, i32
  }
  func.func @transform_5(%arg0: i32) -> (i32, i32, i32) {
    %c0_i32 = arith.constant 0 : i32
    %c0_i32_0 = arith.constant 0 : i32
    %c0_i32_1 = arith.constant 0 : i32
    return %arg0, %c0_i32, %c0_i32_0 : i32, i32, i32
  }
  func.func @transform_6(%arg0: i32) -> (i32, i32, i32) {
    %c0_i32 = arith.constant 0 : i32
    %c0_i32_0 = arith.constant 0 : i32
    %c0_i32_1 = arith.constant 0 : i32
    return %arg0, %c0_i32, %c0_i32_0 : i32, i32, i32
  }
  func.func @transform_7(%arg0: i32) -> (i32, i32) {
    %c0_i32 = arith.constant 0 : i32
    %c0_i32_0 = arith.constant 0 : i32
    return %arg0, %c0_i32 : i32, i32
  }
  func.func @transform_8(%arg0: i32) -> (i32, i32) {
    %c0_i32 = arith.constant 0 : i32
    %c0_i32_0 = arith.constant 0 : i32
    return %arg0, %c0_i32 : i32, i32
  }
}

module attributes {stable_mosaic.version = 11 : i64} {
  func.func @back_conv_kernel(%arg0: i32, %arg1: memref<2x32x256xbf16, #tpu.memory_space<vmem>>, %arg2: memref<2x1x256xf32, #tpu.memory_space<vmem>>, %arg3: memref<2x1x256xf32, #tpu.memory_space<vmem>>, %arg4: memref<3x256x256xbf16, #tpu.memory_space<vmem>>, %arg5: memref<1x256xf32, #tpu.memory_space<vmem>>, %arg6: memref<2x32x256xbf16, #tpu.memory_space<vmem>>, %arg7: memref<2x32x256xf32, #tpu.memory_space<vmem>>, %arg8: memref<70x256xf32, #tpu.memory_space<vmem>>) attributes {dimension_semantics = [#tpu.dimension_semantics<parallel>], iteration_bounds = array<i64: 1>, scalar_prefetch = 0 : i64, scratch_operands = 1 : i64, tpu.core_type = #tpu.core_type<tc>, window_params = [{transform_indices = @transform_0, window_bounds = array<i64: 2, 32, 256>}, {transform_indices = @transform_1, window_bounds = array<i64: 2, 1, 256>}, {transform_indices = @transform_2, window_bounds = array<i64: 2, 1, 256>}, {pipeline_mode = #tpu.pipeline_mode<synchronous>, transform_indices = @transform_3, window_bounds = array<i64: 3, 256, 256>}, {pipeline_mode = #tpu.pipeline_mode<synchronous>, transform_indices = @transform_4, window_bounds = array<i64: 1, 256>}, {transform_indices = @transform_5, window_bounds = array<i64: 2, 32, 256>}, {transform_indices = @transform_6, window_bounds = array<i64: 2, 32, 256>}]} {
    %cst = arith.constant 0.000000e+00 : f32
    %0 = vector.broadcast %cst : f32 to vector<1x256xf32>
    %cst_0 = arith.constant 0.000000e+00 : f32
    %1 = vector.broadcast %cst_0 : f32 to vector<2x256xf32>
    %cst_1 = arith.constant 0.000000e+00 : f32
    %2 = vector.broadcast %cst_1 : f32 to vector<3x256xf32>
    %c0 = arith.constant 0 : index
    %c0_2 = arith.constant 0 : index
    %3 = vector.load %arg8[%c0, %c0_2] : memref<70x256xf32, #tpu.memory_space<vmem>>, vector<1x256xf32>
    tpu.vector_store %arg8[%c0, %c0_2], %0 {strides = array<i32>} : memref<70x256xf32, #tpu.memory_space<vmem>>, vector<1x256xf32>,
    %c33 = arith.constant 33 : index
    %c0_3 = arith.constant 0 : index
    %4 = vector.load %arg8[%c33, %c0_3] : memref<70x256xf32, #tpu.memory_space<vmem>>, vector<2x256xf32>
    tpu.vector_store %arg8[%c33, %c0_3], %1 {strides = array<i32>} : memref<70x256xf32, #tpu.memory_space<vmem>>, vector<2x256xf32>,
    %c67 = arith.constant 67 : index
    %c0_4 = arith.constant 0 : index
    %5 = vector.load %arg8[%c67, %c0_4] : memref<70x256xf32, #tpu.memory_space<vmem>>, vector<3x256xf32>
    tpu.vector_store %arg8[%c67, %c0_4], %2 {strides = array<i32>} : memref<70x256xf32, #tpu.memory_space<vmem>>, vector<3x256xf32>,
    %c0_5 = arith.constant 0 : index
    %c0_6 = arith.constant 0 : index
    %c0_7 = arith.constant 0 : index
    %6 = vector.load %arg1[%c0_5, %c0_6, %c0_7] : memref<2x32x256xbf16, #tpu.memory_space<vmem>>, vector<1x32x256xbf16>
    %7 = vector.shape_cast %6 : vector<1x32x256xbf16> to vector<32x256xbf16>
    %8 = arith.extf %7 : vector<32x256xbf16> to vector<32x256xf32>
    %c0_8 = arith.constant 0 : index
    %c0_9 = arith.constant 0 : index
    %c0_10 = arith.constant 0 : index
    %9 = vector.load %arg2[%c0_8, %c0_9, %c0_10] : memref<2x1x256xf32, #tpu.memory_space<vmem>>, vector<1x1x256xf32>
    %10 = vector.shape_cast %9 : vector<1x1x256xf32> to vector<1x256xf32>
    %11 = vector.broadcast %10 : vector<1x256xf32> to vector<32x256xf32>
    %12 = arith.mulf %8, %11 : vector<32x256xf32>
    %c0_11 = arith.constant 0 : index
    %c0_12 = arith.constant 0 : index
    %c0_13 = arith.constant 0 : index
    %13 = vector.load %arg3[%c0_11, %c0_12, %c0_13] : memref<2x1x256xf32, #tpu.memory_space<vmem>>, vector<1x1x256xf32>
    %14 = vector.shape_cast %13 : vector<1x1x256xf32> to vector<1x256xf32>
    %15 = vector.broadcast %14 : vector<1x256xf32> to vector<32x256xf32>
    %16 = arith.addf %12, %15 : vector<32x256xf32>
    %cst_14 = arith.constant 0.000000e+00 : f32
    %17 = vector.broadcast %cst_14 : f32 to vector<32x256xf32>
    %18 = arith.maximumf %16, %17 : vector<32x256xf32>
    %c1 = arith.constant 1 : index
    %c0_15 = arith.constant 0 : index
    %19 = vector.load %arg8[%c1, %c0_15] : memref<70x256xf32, #tpu.memory_space<vmem>>, vector<32x256xf32>
    tpu.vector_store %arg8[%c1, %c0_15], %18 {strides = array<i32>} : memref<70x256xf32, #tpu.memory_space<vmem>>, vector<32x256xf32>,
    %c1_16 = arith.constant 1 : index
    %c0_17 = arith.constant 0 : index
    %c0_18 = arith.constant 0 : index
    %20 = vector.load %arg1[%c1_16, %c0_17, %c0_18] : memref<2x32x256xbf16, #tpu.memory_space<vmem>>, vector<1x32x256xbf16>
    %21 = vector.shape_cast %20 : vector<1x32x256xbf16> to vector<32x256xbf16>
    %22 = arith.extf %21 : vector<32x256xbf16> to vector<32x256xf32>
    %c1_19 = arith.constant 1 : index
    %c0_20 = arith.constant 0 : index
    %c0_21 = arith.constant 0 : index
    %23 = vector.load %arg2[%c1_19, %c0_20, %c0_21] : memref<2x1x256xf32, #tpu.memory_space<vmem>>, vector<1x1x256xf32>
    %24 = vector.shape_cast %23 : vector<1x1x256xf32> to vector<1x256xf32>
    %25 = vector.broadcast %24 : vector<1x256xf32> to vector<32x256xf32>
    %26 = arith.mulf %22, %25 : vector<32x256xf32>
    %c1_22 = arith.constant 1 : index
    %c0_23 = arith.constant 0 : index
    %c0_24 = arith.constant 0 : index
    %27 = vector.load %arg3[%c1_22, %c0_23, %c0_24] : memref<2x1x256xf32, #tpu.memory_space<vmem>>, vector<1x1x256xf32>
    %28 = vector.shape_cast %27 : vector<1x1x256xf32> to vector<1x256xf32>
    %29 = vector.broadcast %28 : vector<1x256xf32> to vector<32x256xf32>
    %30 = arith.addf %26, %29 : vector<32x256xf32>
    %cst_25 = arith.constant 0.000000e+00 : f32
    %31 = vector.broadcast %cst_25 : f32 to vector<32x256xf32>
    %32 = arith.maximumf %30, %31 : vector<32x256xf32>
    %c35 = arith.constant 35 : index
    %c0_26 = arith.constant 0 : index
    %33 = vector.load %arg8[%c35, %c0_26] : memref<70x256xf32, #tpu.memory_space<vmem>>, vector<32x256xf32>
    tpu.vector_store %arg8[%c35, %c0_26], %32 {strides = array<i32>} : memref<70x256xf32, #tpu.memory_space<vmem>>, vector<32x256xf32>,
    %c0_27 = arith.constant 0 : index
    %c0_28 = arith.constant 0 : index
    %34 = vector.load %arg5[%c0_27, %c0_28] : memref<1x256xf32, #tpu.memory_space<vmem>>, vector<1x256xf32>
    %35 = vector.shape_cast %34 : vector<1x256xf32> to vector<1x256xf32>
    %36 = vector.broadcast %35 : vector<1x256xf32> to vector<68x256xf32>
    %c0_29 = arith.constant 0 : index
    %c0_30 = arith.constant 0 : index
    %37 = vector.load %arg8[%c0_29, %c0_30] : memref<70x256xf32, #tpu.memory_space<vmem>>, vector<68x256xf32>
    %38 = arith.truncf %37 : vector<68x256xf32> to vector<68x256xbf16>
    %c0_31 = arith.constant 0 : index
    %c0_32 = arith.constant 0 : index
    %c0_33 = arith.constant 0 : index
    %39 = vector.load %arg4[%c0_31, %c0_32, %c0_33] : memref<3x256x256xbf16, #tpu.memory_space<vmem>>, vector<1x256x256xbf16>
    %40 = vector.shape_cast %39 : vector<1x256x256xbf16> to vector<256x256xbf16>
    %cst_34 = arith.constant dense<0.000000e+00> : vector<68x256xf32>
    %41 = tpu.matmul %38, %40, %cst_34 {dimension_numbers = #tpu.dot_dimension_numbers<[1], [0], [0], [1], [0, 0, 1, 1], [], []>} : vector<68x256xbf16>, vector<256x256xbf16>, vector<68x256xf32> -> vector<68x256xf32>
    %42 = arith.addf %36, %41 : vector<68x256xf32>
    %c1_35 = arith.constant 1 : index
    %c0_36 = arith.constant 0 : index
    %43 = vector.load %arg8[%c1_35, %c0_36] : memref<70x256xf32, #tpu.memory_space<vmem>>, vector<68x256xf32>
    %44 = arith.truncf %43 : vector<68x256xf32> to vector<68x256xbf16>
    %c1_37 = arith.constant 1 : index
    %c0_38 = arith.constant 0 : index
    %c0_39 = arith.constant 0 : index
    %45 = vector.load %arg4[%c1_37, %c0_38, %c0_39] : memref<3x256x256xbf16, #tpu.memory_space<vmem>>, vector<1x256x256xbf16>
    %46 = vector.shape_cast %45 : vector<1x256x256xbf16> to vector<256x256xbf16>
    %cst_40 = arith.constant dense<0.000000e+00> : vector<68x256xf32>
    %47 = tpu.matmul %44, %46, %cst_40 {dimension_numbers = #tpu.dot_dimension_numbers<[1], [0], [0], [1], [0, 0, 1, 1], [], []>} : vector<68x256xbf16>, vector<256x256xbf16>, vector<68x256xf32> -> vector<68x256xf32>
    %48 = arith.addf %42, %47 : vector<68x256xf32>
    %c2 = arith.constant 2 : index
    %c0_41 = arith.constant 0 : index
    %49 = vector.load %arg8[%c2, %c0_41] : memref<70x256xf32, #tpu.memory_space<vmem>>, vector<68x256xf32>
    %50 = arith.truncf %49 : vector<68x256xf32> to vector<68x256xbf16>
    %c2_42 = arith.constant 2 : index
    %c0_43 = arith.constant 0 : index
    %c0_44 = arith.constant 0 : index
    %51 = vector.load %arg4[%c2_42, %c0_43, %c0_44] : memref<3x256x256xbf16, #tpu.memory_space<vmem>>, vector<1x256x256xbf16>
    %52 = vector.shape_cast %51 : vector<1x256x256xbf16> to vector<256x256xbf16>
    %cst_45 = arith.constant dense<0.000000e+00> : vector<68x256xf32>
    %53 = tpu.matmul %50, %52, %cst_45 {dimension_numbers = #tpu.dot_dimension_numbers<[1], [0], [0], [1], [0, 0, 1, 1], [], []>} : vector<68x256xbf16>, vector<256x256xbf16>, vector<68x256xf32> -> vector<68x256xf32>
    %54 = arith.addf %48, %53 : vector<68x256xf32>
    %55 = vector.extract_strided_slice %54 {offsets = [0, 0], sizes = [32, 256], strides = [1, 1]} : vector<68x256xf32> to vector<32x256xf32>
    %c0_46 = arith.constant 0 : index
    %c0_47 = arith.constant 0 : index
    %c0_48 = arith.constant 0 : index
    %56 = vector.load %arg6[%c0_46, %c0_47, %c0_48] : memref<2x32x256xbf16, #tpu.memory_space<vmem>>, vector<1x32x256xbf16>
    %57 = vector.shape_cast %56 : vector<1x32x256xbf16> to vector<32x256xbf16>
    %58 = arith.extf %57 : vector<32x256xbf16> to vector<32x256xf32>
    %59 = arith.addf %55, %58 : vector<32x256xf32>
    %c0_49 = arith.constant 0 : index
    %c0_50 = arith.constant 0 : index
    %c0_51 = arith.constant 0 : index
    %60 = vector.load %arg7[%c0_49, %c0_50, %c0_51] : memref<2x32x256xf32, #tpu.memory_space<vmem>>, vector<1x32x256xf32>
    %61 = vector.shape_cast %60 : vector<1x32x256xf32> to vector<32x256xf32>
    %62 = vector.shape_cast %59 : vector<32x256xf32> to vector<1x32x256xf32>
    tpu.vector_store %arg7[%c0_49, %c0_50, %c0_51], %62 {strides = array<i32>} : memref<2x32x256xf32, #tpu.memory_space<vmem>>, vector<1x32x256xf32>,
    %63 = vector.extract_strided_slice %54 {offsets = [34, 0], sizes = [32, 256], strides = [1, 1]} : vector<68x256xf32> to vector<32x256xf32>
    %c1_52 = arith.constant 1 : index
    %c0_53 = arith.constant 0 : index
    %c0_54 = arith.constant 0 : index
    %64 = vector.load %arg6[%c1_52, %c0_53, %c0_54] : memref<2x32x256xbf16, #tpu.memory_space<vmem>>, vector<1x32x256xbf16>
    %65 = vector.shape_cast %64 : vector<1x32x256xbf16> to vector<32x256xbf16>
    %66 = arith.extf %65 : vector<32x256xbf16> to vector<32x256xf32>
    %67 = arith.addf %63, %66 : vector<32x256xf32>
    %c1_55 = arith.constant 1 : index
    %c0_56 = arith.constant 0 : index
    %c0_57 = arith.constant 0 : index
    %68 = vector.load %arg7[%c1_55, %c0_56, %c0_57] : memref<2x32x256xf32, #tpu.memory_space<vmem>>, vector<1x32x256xf32>
    %69 = vector.shape_cast %68 : vector<1x32x256xf32> to vector<32x256xf32>
    %70 = vector.shape_cast %67 : vector<32x256xf32> to vector<1x32x256xf32>
    tpu.vector_store %arg7[%c1_55, %c0_56, %c0_57], %70 {strides = array<i32>} : memref<2x32x256xf32, #tpu.memory_space<vmem>>, vector<1x32x256xf32>,
    return
  }
  func.func @transform_0(%arg0: i32) -> (i32, i32, i32) {
    %c0_i32 = arith.constant 0 : i32
    %c0_i32_0 = arith.constant 0 : i32
    %c0_i32_1 = arith.constant 0 : i32
    return %arg0, %c0_i32, %c0_i32_0 : i32, i32, i32
  }
  func.func @transform_1(%arg0: i32) -> (i32, i32, i32) {
    %c0_i32 = arith.constant 0 : i32
    %c0_i32_0 = arith.constant 0 : i32
    %c0_i32_1 = arith.constant 0 : i32
    return %arg0, %c0_i32, %c0_i32_0 : i32, i32, i32
  }
  func.func @transform_2(%arg0: i32) -> (i32, i32, i32) {
    %c0_i32 = arith.constant 0 : i32
    %c0_i32_0 = arith.constant 0 : i32
    %c0_i32_1 = arith.constant 0 : i32
    return %arg0, %c0_i32, %c0_i32_0 : i32, i32, i32
  }
  func.func @transform_3(%arg0: i32) -> (i32, i32, i32) {
    %c0_i32 = arith.constant 0 : i32
    %c0_i32_0 = arith.constant 0 : i32
    %c0_i32_1 = arith.constant 0 : i32
    %c0_i32_2 = arith.constant 0 : i32
    return %c0_i32, %c0_i32_0, %c0_i32_1 : i32, i32, i32
  }
  func.func @transform_4(%arg0: i32) -> (i32, i32) {
    %c0_i32 = arith.constant 0 : i32
    %c0_i32_0 = arith.constant 0 : i32
    %c0_i32_1 = arith.constant 0 : i32
    return %c0_i32, %c0_i32_0 : i32, i32
  }
  func.func @transform_5(%arg0: i32) -> (i32, i32, i32) {
    %c0_i32 = arith.constant 0 : i32
    %c0_i32_0 = arith.constant 0 : i32
    %c0_i32_1 = arith.constant 0 : i32
    return %arg0, %c0_i32, %c0_i32_0 : i32, i32, i32
  }
  func.func @transform_6(%arg0: i32) -> (i32, i32, i32) {
    %c0_i32 = arith.constant 0 : i32
    %c0_i32_0 = arith.constant 0 : i32
    %c0_i32_1 = arith.constant 0 : i32
    return %arg0, %c0_i32, %c0_i32_0 : i32, i32, i32
  }
}

</mosaic_0001>

<llo_original>
// kernel: generator_residual_block.2
$region0: #{generator_residual_block.2}
  #allocation0 [shape = 'u32[]', space=smem, size = 0x4, offset = 0x4, fixed_abs, tag = 'smem constant byte address 0x4 - core index']
  #allocation1 [shape = 'u32[144,128]{1,0:T(1,128)}', space=vmem, size = 0x12000, scoped, tag = 'internal scratch']
  #allocation2 [shape = 'f32[38,64]{1,0:T(8,128)}', space=vmem, size = 0x5000, scoped, tag = 'scratch operand']
  #allocation3 [shape = 'f32[38,64]{1,0:T(8,128)}', space=vmem, size = 0x5000, scoped, tag = 'scratch operand']
  %s0 = inlined_call_operand.vmem [shape: f32[2,16,64], index: 0, kind: input, shape index: {}]
  %s1 = inlined_call_operand.vmem [shape: bf16[3,64,512], index: 1, kind: input, shape index: {}]
  %s2 = inlined_call_operand.hbm [shape: bf16[3,64,512], index: 2, kind: input, shape index: {}]
  %s3 = inlined_call_operand.vmem [shape: f32[1,512], index: 3, kind: input, shape index: {}]
  %s4 = inlined_call_operand.vmem [shape: f32[1,512], index: 4, kind: input, shape index: {}]
  %s5 = inlined_call_operand.vmem [shape: bf16[2,16,512], index: 5, kind: output, shape index: {0}]
  %s6 = inlined_call_operand.vmem [shape: bf16[2,16,512], index: 6, kind: output, shape index: {1}]
  %s7 = inlined_call_operand.vmem [shape: f32[1,512], index: 7, kind: output, shape index: {2}]
  %s8 = inlined_call_operand.vmem [shape: f32[1,512], index: 8, kind: output, shape index: {3}]
  %9 = xla_tuple %s5, %s6, %s7, %s8
  %s10 = sld [smem:[#allocation0]]
  $region58: #{generator_residual_block.2} parent=0
    _
  %s12 = ssub.s32 1, %s10
  %s13 = scalar_select 0, %s12, %s10
  $region1: #{generator_residual_block.2} parent=0
    #allocation4 [shape = 'u8[196608]{0}', space=vmem, size = 0x30000, scoped, tag = 'input window, operand 2, single buffered']
    #allocation5 [shape = 's32[1]{0}', space=sflag, size = 0x4, scoped, tag = 'scoped memory for generator_residual_block.2']
    %14 = vsyncpa [#allocation5], 0
    // Predicated region
    $region2: #{generator_residual_block.2} parent=1 // pred_check
      _
    $region3: #{generator_residual_block.2} parent=1 // pred_check_branch
      %16 = sbr.rel (0) target = $region5
    $region4: #{generator_residual_block.2} parent=1 // pred_region
      _
    $region5: #{generator_residual_block.2} parent=1 // pred_fallthru
      _
    // Predicated region
    $region6: #{generator_residual_block.2} parent=1 // pred_check
      _
    $region7: #{generator_residual_block.2} parent=1 // pred_check_branch
      %18 = sbr.rel (0) target = $region9
    $region8: #{generator_residual_block.2} parent=1 // pred_region
      _
    $region9: #{generator_residual_block.2} parent=1 // pred_fallthru
      _
    // Predicated region
    $region10: #{generator_residual_block.2} parent=1 // pred_check
      _
    $region11: #{generator_residual_block.2} parent=1 // pred_check_branch
      %20 = sbr.rel (0) target = $region13
    $region12: #{generator_residual_block.2} parent=1 // pred_region
      %s22 = ssub.s32 6144, 6144
      %23 = vsyncadd [#allocation5], %s22
      %s24 = sshll.u32 [#allocation4], 4
      %s25 = int_to_ptr.vmem [resolvable:$true] %s24
      %30 = dma.hbm_to_vmem [thread:$0]  %s2, 6144, %s25, [#allocation5], 256, 256, 16
    $region13: #{generator_residual_block.2} parent=1 // pred_fallthru
      _
    // Predicated region
    $region14: #{generator_residual_block.2} parent=1 // pred_check
      _
    $region15: #{generator_residual_block.2} parent=1 // pred_check_branch
      %32 = sbr.rel (0) target = $region17
    $region16: #{generator_residual_block.2} parent=1 // pred_region
      _
    $region17: #{generator_residual_block.2} parent=1 // pred_fallthru
      _
    // Predicated region
    $region18: #{generator_residual_block.2} parent=1 // pred_check
      _
    $region19: #{generator_residual_block.2} parent=1 // pred_check_branch
      %34 = sbr.rel (0) target = $region21
    $region20: #{generator_residual_block.2} parent=1 // pred_region
      _
    $region21: #{generator_residual_block.2} parent=1 // pred_fallthru
      _
    // Predicated region
    $region22: #{generator_residual_block.2} parent=1 // pred_check
      _
    $region23: #{generator_residual_block.2} parent=1 // pred_check_branch
      %36 = sbr.rel (0) target = $region25
    $region24: #{generator_residual_block.2} parent=1 // pred_region
      %37 = dma.done [#allocation5], 6144
    $region25: #{generator_residual_block.2} parent=1 // pred_fallthru
      _
    %vm39 = vcmask 516096
    %40 = vst.msk [vmem:[#allocation2] sm:$0x1] %vm39, 0.0
    %41 = vst.msk [vmem:[#allocation3] sm:$0x1] %vm39, 0.0
    %vm42 = vcmask 517120
    %43 = vst.msk [vmem:[#allocation2 + $0x11] sm:$0x3] %vm42, 0.0
    %44 = vst.msk [vmem:[#allocation3 + $0x11] sm:$0x3] %vm42, 0.0
    %vm45 = vcmask 518144
    %46 = vst.msk [vmem:[#allocation2 + $0x23] sm:$0x7] %vm45, 0.0
    %47 = vst.msk [vmem:[#allocation3 + $0x23] sm:$0x7] %vm45, 0.0
    %v48 = vld [vmem:[%s0] sm:$0xff]
    %v49 = vld [vmem:[%s0 + $0x8] sm:$0xff]
    %vm50 = vcmask 523264
    %51 = vst.msk [vmem:[#allocation2 + $0x1] sm:$0xff] %vm50, %v48
    %52 = vst.msk [vmem:[#allocation2 + $0x9] sm:$0xff] %vm50, %v49
    %v53 = vmax.f32 %v48, 0.0
    %v54 = vmax.f32 %v49, 0.0
    %55 = vst.msk [vmem:[#allocation3 + $0x1] sm:$0xff] %vm50, %v53
    %56 = vst.msk [vmem:[#allocation3 + $0x9] sm:$0xff] %vm50, %v54
    %s57 = scalar_lea.vmem %s0, 16
    %v58 = vld [vmem:[%s57] sm:$0xff]
    %v59 = vld [vmem:[%s57 + $0x8] sm:$0xff]
    %60 = vst.msk [vmem:[#allocation2 + $0x13] sm:$0xff] %vm50, %v58
    %61 = vst.msk [vmem:[#allocation2 + $0x1b] sm:$0xff] %vm50, %v59
    %v62 = vmax.f32 %v58, 0.0
    %v63 = vmax.f32 %v59, 0.0
    %64 = vst.msk [vmem:[#allocation3 + $0x13] sm:$0xff] %vm50, %v62
    %65 = vst.msk [vmem:[#allocation3 + $0x1b] sm:$0xff] %vm50, %v63
    %v66 = vld [vmem:[%s3] sm:$0xf]
    %v68 = vlaneseq
    %v69 = vshrl.u32 %v68, 7
    %v70 = vsub.s32 0, %v69
    %v71 = vrot.slane %v66, %v70
    %v72 = vlaneseq
    %v73 = vshrl.u32 %v72, 7
    %v74 = vsub.s32 1, %v73
    %v75 = vrot.slane %v66, %v74
    %v76 = vlaneseq
    %v77 = vshrl.u32 %v76, 7
    %v78 = vsub.s32 2, %v77
    %v79 = vrot.slane %v66, %v78
    %v80 = vlaneseq
    %v81 = vshrl.u32 %v80, 7
    %v82 = vsub.s32 3, %v81
    %v83 = vrot.slane %v66, %v82
    %v88 = vld [vmem:[%s4] sm:$0xf]
    %v90 = vlaneseq
    %v91 = vshrl.u32 %v90, 7
    %v92 = vsub.s32 0, %v91
    %v93 = vrot.slane %v88, %v92
    %v94 = vlaneseq
    %v95 = vshrl.u32 %v94, 7
    %v96 = vsub.s32 1, %v95
    %v97 = vrot.slane %v88, %v96
    %v98 = vlaneseq
    %v99 = vshrl.u32 %v98, 7
    %v100 = vsub.s32 2, %v99
    %v101 = vrot.slane %v88, %v100
    %v102 = vlaneseq
    %v103 = vshrl.u32 %v102, 7
    %v104 = vsub.s32 3, %v103
    %v105 = vrot.slane %v88, %v104
    %v110 = vld [vmem:[#allocation2] sm:$0xff]
    %v111 = vld [vmem:[#allocation2 + $0x8] sm:$0xff]
    %v112 = vld [vmem:[#allocation2 + $0x10] sm:$0xff]
    %v113 = vld [vmem:[#allocation2 + $0x18] sm:$0xff]
    %v114 = vld [vmem:[#allocation2 + $0x20] sm:$0xf]
    %v115 = vpack.c.bf16 %v111, %v110
    %v116 = vpack.c.bf16 %v113, %v112
    %v117 = vpack.c.bf16 %v114, %v114
    %v118 = vld [vmem:[#allocation3] sm:$0xff]
    %v119 = vld [vmem:[#allocation3 + $0x8] sm:$0xff]
    %v120 = vld [vmem:[#allocation3 + $0x10] sm:$0xff]
    %v121 = vld [vmem:[#allocation3 + $0x18] sm:$0xff]
    %v122 = vld [vmem:[#allocation3 + $0x20] sm:$0xf]
    %v123 = vpack.c.bf16 %v119, %v118
    %v124 = vpack.c.bf16 %v121, %v120
    %v125 = vpack.c.bf16 %v122, %v122
    %v126 = vld [vmem:[#allocation4] sm:$0xff]
    %v127 = vld [vmem:[#allocation4 + $0x8] sm:$0xff]
    %v128 = vld [vmem:[#allocation4 + $0x10] sm:$0xff]
    %v129 = vld [vmem:[#allocation4 + $0x18] sm:$0xff]
    %v130 = vld [vmem:[#allocation4 + $0x20] sm:$0xff]
    %v131 = vld [vmem:[#allocation4 + $0x28] sm:$0xff]
    %v132 = vld [vmem:[#allocation4 + $0x30] sm:$0xff]
    %v133 = vld [vmem:[#allocation4 + $0x38] sm:$0xff]
    %v134 = vld [vmem:[#allocation4 + $0x40] sm:$0xff]
    %v135 = vld [vmem:[#allocation4 + $0x48] sm:$0xff]
    %v136 = vld [vmem:[#allocation4 + $0x50] sm:$0xff]
    %v137 = vld [vmem:[#allocation4 + $0x58] sm:$0xff]
    %v138 = vld [vmem:[#allocation4 + $0x60] sm:$0xff]
    %v139 = vld [vmem:[#allocation4 + $0x68] sm:$0xff]
    %v140 = vld [vmem:[#allocation4 + $0x70] sm:$0xff]
    %v141 = vld [vmem:[#allocation4 + $0x78] sm:$0xff]
    %v158 = vunpack.c.l.b16 %v126
    %v159 = vunpack.c.h.b16 %v126
    %v160 = vunpack.c.l.b16 %v127
    %v161 = vunpack.c.h.b16 %v127
    %v162 = vunpack.c.l.b16 %v128
    %v163 = vunpack.c.h.b16 %v128
    %v164 = vunpack.c.l.b16 %v129
    %v165 = vunpack.c.h.b16 %v129
    %v166 = vunpack.c.l.b16 %v130
    %v167 = vunpack.c.h.b16 %v130
    %v168 = vunpack.c.l.b16 %v131
    %v169 = vunpack.c.h.b16 %v131
    %v170 = vunpack.c.l.b16 %v132
    %v171 = vunpack.c.h.b16 %v132
    %v172 = vunpack.c.l.b16 %v133
    %v173 = vunpack.c.h.b16 %v133
    %v174 = vunpack.c.l.b16 %v134
    %v175 = vunpack.c.h.b16 %v134
    %v176 = vunpack.c.l.b16 %v135
    %v177 = vunpack.c.h.b16 %v135
    %v178 = vunpack.c.l.b16 %v136
    %v179 = vunpack.c.h.b16 %v136
    %v180 = vunpack.c.l.b16 %v137
    %v181 = vunpack.c.h.b16 %v137
    %v182 = vunpack.c.l.b16 %v138
    %v183 = vunpack.c.h.b16 %v138
    %v184 = vunpack.c.l.b16 %v139
    %v185 = vunpack.c.h.b16 %v139
    %v186 = vunpack.c.l.b16 %v140
    %v187 = vunpack.c.h.b16 %v140
    %v188 = vunpack.c.l.b16 %v141
    %v189 = vunpack.c.h.b16 %v141
    %v190 = vpack.c.b16 %v162, %v158
    %v191 = vpack.c.b16 %v163, %v159
    %v192 = vpack.c.b16 %v164, %v160
    %v193 = vpack.c.b16 %v165, %v161
    %v194 = vpack.c.b16 %v170, %v166
    %v195 = vpack.c.b16 %v171, %v167
    %v196 = vpack.c.b16 %v172, %v168
    %v197 = vpack.c.b16 %v173, %v169
    %v198 = vpack.c.b16 %v178, %v174
    %v199 = vpack.c.b16 %v179, %v175
    %v200 = vpack.c.b16 %v180, %v176
    %v201 = vpack.c.b16 %v181, %v177
    %v202 = vpack.c.b16 %v186, %v182
    %v203 = vpack.c.b16 %v187, %v183
    %v204 = vpack.c.b16 %v188, %v184
    %v205 = vpack.c.b16 %v189, %v185
    %v223 = vsel %vm50, %v115, 0
    %v226 = vsel %vm50, %v116, 0
    %v229 = vsel %vm50, %v117, 0
    %231 = vmatprep.subr.bf16.mxu0 %v191
    %232 = vmatpush1.bf16.msra.mxu0 %v190
    %233 = vmatprep.subr.bf16.mxu0 %v195
    %234 = vmatpush1.bf16.msra.mxu0 %v194
    %235 = vmatprep.subr.bf16.mxu0 %v199
    %236 = vmatpush1.bf16.msra.mxu0 %v198
    %237 = vmatprep.subr.bf16.mxu0 %v203
    %238 = vmatpush1.bf16.msra.mxu0 %v202
    %239 = vmatprep.subr.bf16.mxu0 0
    %240 = vmatpush1.bf16.msra.mxu0 0
    %241 = vmatprep.subr.bf16.mxu0 0
    %242 = vmatpush1.bf16.msra.mxu0 0
    %243 = vmatprep.subr.bf16.mxu0 0
    %244 = vmatpush1.bf16.msra.mxu0 0
    %245 = vmatprep.subr.bf16.mxu0 0
    %246 = vmatpush1.bf16.msra.mxu0 0
    %247 = vmatprep.subr.bf16.mxu0 0
    %248 = vmatpush1.bf16.msra.mxu0 0
    %249 = vmatprep.subr.bf16.mxu0 0
    %250 = vmatpush1.bf16.msra.mxu0 0
    %251 = vmatprep.subr.bf16.mxu0 0
    %252 = vmatpush1.bf16.msra.mxu0 0
    %253 = vmatprep.subr.bf16.mxu0 0
    %254 = vmatpush1.bf16.msra.mxu0 0
    %255 = vmatprep.subr.bf16.mxu0 0
    %256 = vmatpush1.bf16.msra.mxu0 0
    %257 = vmatprep.subr.bf16.mxu0 0
    %258 = vmatpush1.bf16.msra.mxu0 0
    %259 = vmatprep.subr.bf16.mxu0 0
    %260 = vmatpush1.bf16.msra.mxu0 0
    %261 = vmatprep.subr.bf16.mxu0 0
    %262 = vmatpush1.bf16.msra.mxu0 0
    %263 = vmatprep.mubr.bf16.mxu0 0
    %264 = vmatmul.mubr.bf16.gmra.mrb[0].mxu0 %v223
    %v265 = vpop.f32.mrb[0].mxu0
    %v266 = vadd.f32 0.0, %v265
    %v267 = vpop.f32.mrb[0].mxu0
    %v268 = vadd.f32 0.0, %v267
    %v269 = vpop.f32.mrb[0].mxu0
    %v270 = vadd.f32 0.0, %v269
    %v271 = vpop.f32.mrb[0].mxu0
    %v272 = vadd.f32 0.0, %v271
    %273 = vmatprep.mubr.bf16.mxu0 0
    %274 = vmatmul.mubr.bf16.gmra.mrb[0].mxu0 %v226
    %v275 = vpop.f32.mrb[0].mxu0
    %v276 = vadd.f32 0.0, %v275
    %v277 = vpop.f32.mrb[0].mxu0
    %v278 = vadd.f32 0.0, %v277
    %v279 = vpop.f32.mrb[0].mxu0
    %v280 = vadd.f32 0.0, %v279
    %v281 = vpop.f32.mrb[0].mxu0
    %v282 = vadd.f32 0.0, %v281
    %283 = vmatprep.mubr.bf16.mxu0 0
    %284 = vmatmul.mubr.bf16.gmra.mrb[0].mxu0 %v229
    %v285 = vpop.f32.mrb[0].mxu0
    %v286 = vadd.f32 0.0, %v285
    %v287 = vpop.f32.mrb[0].mxu0
    %v288 = vadd.f32 0.0, %v287
    %v289 = vpop.f32.mrb[0].mxu0
    %v290 = vpop.f32.mrb[0].mxu0
    %291 = vdwg.mxu0
    %292 = vmatprep.subr.bf16.mxu0 %v193
    %293 = vmatpush1.bf16.msra.mxu0 %v192
    %294 = vmatprep.subr.bf16.mxu0 %v197
    %295 = vmatpush1.bf16.msra.mxu0 %v196
    %296 = vmatprep.subr.bf16.mxu0 %v201
    %297 = vmatpush1.bf16.msra.mxu0 %v200
    %298 = vmatprep.subr.bf16.mxu0 %v205
    %299 = vmatpush1.bf16.msra.mxu0 %v204
    %300 = vmatprep.subr.bf16.mxu0 0
    %301 = vmatpush1.bf16.msra.mxu0 0
    %302 = vmatprep.subr.bf16.mxu0 0
    %303 = vmatpush1.bf16.msra.mxu0 0
    %304 = vmatprep.subr.bf16.mxu0 0
    %305 = vmatpush1.bf16.msra.mxu0 0
    %306 = vmatprep.subr.bf16.mxu0 0
    %307 = vmatpush1.bf16.msra.mxu0 0
    %308 = vmatprep.subr.bf16.mxu0 0
    %309 = vmatpush1.bf16.msra.mxu0 0
    %310 = vmatprep.subr.bf16.mxu0 0
    %311 = vmatpush1.bf16.msra.mxu0 0
    %312 = vmatprep.subr.bf16.mxu0 0
    %313 = vmatpush1.bf16.msra.mxu0 0
    %314 = vmatprep.subr.bf16.mxu0 0
    %315 = vmatpush1.bf16.msra.mxu0 0
    %316 = vmatprep.subr.bf16.mxu0 0
    %317 = vmatpush1.bf16.msra.mxu0 0
    %318 = vmatprep.subr.bf16.mxu0 0
    %319 = vmatpush1.bf16.msra.mxu0 0
    %320 = vmatprep.subr.bf16.mxu0 0
    %321 = vmatpush1.bf16.msra.mxu0 0
    %322 = vmatprep.subr.bf16.mxu0 0
    %323 = vmatpush1.bf16.msra.mxu0 0
    %324 = vmatprep.mubr.bf16.mxu0 0
    %325 = vmatmul.mubr.bf16.gmra.mrb[0].mxu0 %v223
    %v326 = vpop.f32.mrb[0].mxu0
    %v327 = vadd.f32 0.0, %v326
    %v328 = vpop.f32.mrb[0].mxu0
    %v329 = vadd.f32 0.0, %v328
    %v330 = vpop.f32.mrb[0].mxu0
    %v331 = vadd.f32 0.0, %v330
    %v332 = vpop.f32.mrb[0].mxu0
    %v333 = vadd.f32 0.0, %v332
    %334 = vmatprep.mubr.bf16.mxu0 0
    %335 = vmatmul.mubr.bf16.gmra.mrb[0].mxu0 %v226
    %v336 = vpop.f32.mrb[0].mxu0
    %v337 = vadd.f32 0.0, %v336
    %v338 = vpop.f32.mrb[0].mxu0
    %v339 = vadd.f32 0.0, %v338
    %v340 = vpop.f32.mrb[0].mxu0
    %v341 = vadd.f32 0.0, %v340
    %v342 = vpop.f32.mrb[0].mxu0
    %v343 = vadd.f32 0.0, %v342
    %344 = vmatprep.mubr.bf16.mxu0 0
    %345 = vmatmul.mubr.bf16.gmra.mrb[0].mxu0 %v229
    %v346 = vpop.f32.mrb[0].mxu0
    %v347 = vadd.f32 0.0, %v346
    %v348 = vpop.f32.mrb[0].mxu0
    %v349 = vadd.f32 0.0, %v348
    %v350 = vpop.f32.mrb[0].mxu0
    %v351 = vpop.f32.mrb[0].mxu0
    %352 = vdwg.mxu0
    %v353 = vadd.f32 %v93, %v266
    %v354 = vadd.f32 %v97, %v268
    %v355 = vadd.f32 %v101, %v327
    %v356 = vadd.f32 %v105, %v329
    %v357 = vadd.f32 %v93, %v270
    %v358 = vadd.f32 %v97, %v272
    %v359 = vadd.f32 %v101, %v331
    %v360 = vadd.f32 %v105, %v333
    %v361 = vadd.f32 %v93, %v276
    %v362 = vadd.f32 %v97, %v278
    %v363 = vadd.f32 %v101, %v337
    %v364 = vadd.f32 %v105, %v339
    %v365 = vadd.f32 %v93, %v280
    %v366 = vadd.f32 %v97, %v282
    %v367 = vadd.f32 %v101, %v341
    %v368 = vadd.f32 %v105, %v343
    %v369 = vadd.f32 %v93, %v286
    %v370 = vadd.f32 %v97, %v288
    %v371 = vadd.f32 %v101, %v347
    %v372 = vadd.f32 %v105, %v349
    %v373 = vld [vmem:[%s1] sm:$0xff]
    %v374 = vld [vmem:[%s1 + $0x8] sm:$0xff]
    %v375 = vld [vmem:[%s1 + $0x10] sm:$0xff]
    %v376 = vld [vmem:[%s1 + $0x18] sm:$0xff]
    %v377 = vld [vmem:[%s1 + $0x20] sm:$0xff]
    %v378 = vld [vmem:[%s1 + $0x28] sm:$0xff]
    %v379 = vld [vmem:[%s1 + $0x30] sm:$0xff]
    %v380 = vld [vmem:[%s1 + $0x38] sm:$0xff]
    %v381 = vld [vmem:[%s1 + $0x40] sm:$0xff]
    %v382 = vld [vmem:[%s1 + $0x48] sm:$0xff]
    %v383 = vld [vmem:[%s1 + $0x50] sm:$0xff]
    %v384 = vld [vmem:[%s1 + $0x58] sm:$0xff]
    %v385 = vld [vmem:[%s1 + $0x60] sm:$0xff]
    %v386 = vld [vmem:[%s1 + $0x68] sm:$0xff]
    %v387 = vld [vmem:[%s1 + $0x70] sm:$0xff]
    %v388 = vld [vmem:[%s1 + $0x78] sm:$0xff]
    %v405 = vunpack.c.l.b16 %v373
    %v406 = vunpack.c.h.b16 %v373
    %v407 = vunpack.c.l.b16 %v374
    %v408 = vunpack.c.h.b16 %v374
    %v409 = vunpack.c.l.b16 %v375
    %v410 = vunpack.c.h.b16 %v375
    %v411 = vunpack.c.l.b16 %v376
    %v412 = vunpack.c.h.b16 %v376
    %v413 = vunpack.c.l.b16 %v377
    %v414 = vunpack.c.h.b16 %v377
    %v415 = vunpack.c.l.b16 %v378
    %v416 = vunpack.c.h.b16 %v378
    %v417 = vunpack.c.l.b16 %v379
    %v418 = vunpack.c.h.b16 %v379
    %v419 = vunpack.c.l.b16 %v380
    %v420 = vunpack.c.h.b16 %v380
    %v421 = vunpack.c.l.b16 %v381
    %v422 = vunpack.c.h.b16 %v381
    %v423 = vunpack.c.l.b16 %v382
    %v424 = vunpack.c.h.b16 %v382
    %v425 = vunpack.c.l.b16 %v383
    %v426 = vunpack.c.h.b16 %v383
    %v427 = vunpack.c.l.b16 %v384
    %v428 = vunpack.c.h.b16 %v384
    %v429 = vunpack.c.l.b16 %v385
    %v430 = vunpack.c.h.b16 %v385
    %v431 = vunpack.c.l.b16 %v386
    %v432 = vunpack.c.h.b16 %v386
    %v433 = vunpack.c.l.b16 %v387
    %v434 = vunpack.c.h.b16 %v387
    %v435 = vunpack.c.l.b16 %v388
    %v436 = vunpack.c.h.b16 %v388
    %v437 = vpack.c.b16 %v409, %v405
    %v438 = vpack.c.b16 %v410, %v406
    %v439 = vpack.c.b16 %v411, %v407
    %v440 = vpack.c.b16 %v412, %v408
    %v441 = vpack.c.b16 %v417, %v413
    %v442 = vpack.c.b16 %v418, %v414
    %v443 = vpack.c.b16 %v419, %v415
    %v444 = vpack.c.b16 %v420, %v416
    %v445 = vpack.c.b16 %v425, %v421
    %v446 = vpack.c.b16 %v426, %v422
    %v447 = vpack.c.b16 %v427, %v423
    %v448 = vpack.c.b16 %v428, %v424
    %v449 = vpack.c.b16 %v433, %v429
    %v450 = vpack.c.b16 %v434, %v430
    %v451 = vpack.c.b16 %v435, %v431
    %v452 = vpack.c.b16 %v436, %v432
    %v470 = vsel %vm50, %v123, 0
    %v473 = vsel %vm50, %v124, 0
    %v476 = vsel %vm50, %v125, 0
    %478 = vmatprep.subr.bf16.mxu0 %v438
    %479 = vmatpush1.bf16.msra.mxu0 %v437
    %480 = vmatprep.subr.bf16.mxu0 %v442
    %481 = vmatpush1.bf16.msra.mxu0 %v441
    %482 = vmatprep.subr.bf16.mxu0 %v446
    %483 = vmatpush1.bf16.msra.mxu0 %v445
    %484 = vmatprep.subr.bf16.mxu0 %v450
    %485 = vmatpush1.bf16.msra.mxu0 %v449
    %486 = vmatprep.subr.bf16.mxu0 0
    %487 = vmatpush1.bf16.msra.mxu0 0
    %488 = vmatprep.subr.bf16.mxu0 0
    %489 = vmatpush1.bf16.msra.mxu0 0
    %490 = vmatprep.subr.bf16.mxu0 0
    %491 = vmatpush1.bf16.msra.mxu0 0
    %492 = vmatprep.subr.bf16.mxu0 0
    %493 = vmatpush1.bf16.msra.mxu0 0
    %494 = vmatprep.subr.bf16.mxu0 0
    %495 = vmatpush1.bf16.msra.mxu0 0
    %496 = vmatprep.subr.bf16.mxu0 0
    %497 = vmatpush1.bf16.msra.mxu0 0
    %498 = vmatprep.subr.bf16.mxu0 0
    %499 = vmatpush1.bf16.msra.mxu0 0
    %500 = vmatprep.subr.bf16.mxu0 0
    %501 = vmatpush1.bf16.msra.mxu0 0
    %502 = vmatprep.subr.bf16.mxu0 0
    %503 = vmatpush1.bf16.msra.mxu0 0
    %504 = vmatprep.subr.bf16.mxu0 0
    %505 = vmatpush1.bf16.msra.mxu0 0
    %506 = vmatprep.subr.bf16.mxu0 0
    %507 = vmatpush1.bf16.msra.mxu0 0
    %508 = vmatprep.subr.bf16.mxu0 0
    %509 = vmatpush1.bf16.msra.mxu0 0
    %510 = vmatprep.mubr.bf16.mxu0 0
    %511 = vmatmul.mubr.bf16.gmra.mrb[0].mxu0 %v470
    %v512 = vpop.f32.mrb[0].mxu0
    %v513 = vadd.f32 0.0, %v512
    %v514 = vpop.f32.mrb[0].mxu0
    %v515 = vadd.f32 0.0, %v514
    %v516 = vpop.f32.mrb[0].mxu0
    %v517 = vadd.f32 0.0, %v516
    %v518 = vpop.f32.mrb[0].mxu0
    %v519 = vadd.f32 0.0, %v518
    %520 = vmatprep.mubr.bf16.mxu0 0
    %521 = vmatmul.mubr.bf16.gmra.mrb[0].mxu0 %v473
    %v522 = vpop.f32.mrb[0].mxu0
    %v523 = vadd.f32 0.0, %v522
    %v524 = vpop.f32.mrb[0].mxu0
    %v525 = vadd.f32 0.0, %v524
    %v526 = vpop.f32.mrb[0].mxu0
    %v527 = vadd.f32 0.0, %v526
    %v528 = vpop.f32.mrb[0].mxu0
    %v529 = vadd.f32 0.0, %v528
    %530 = vmatprep.mubr.bf16.mxu0 0
    %531 = vmatmul.mubr.bf16.gmra.mrb[0].mxu0 %v476
    %v532 = vpop.f32.mrb[0].mxu0
    %v533 = vadd.f32 0.0, %v532
    %v534 = vpop.f32.mrb[0].mxu0
    %v535 = vadd.f32 0.0, %v534
    %v536 = vpop.f32.mrb[0].mxu0
    %v537 = vpop.f32.mrb[0].mxu0
    %538 = vdwg.mxu0
    %539 = vmatprep.subr.bf16.mxu0 %v440
    %540 = vmatpush1.bf16.msra.mxu0 %v439
    %541 = vmatprep.subr.bf16.mxu0 %v444
    %542 = vmatpush1.bf16.msra.mxu0 %v443
    %543 = vmatprep.subr.bf16.mxu0 %v448
    %544 = vmatpush1.bf16.msra.mxu0 %v447
    %545 = vmatprep.subr.bf16.mxu0 %v452
    %546 = vmatpush1.bf16.msra.mxu0 %v451
    %547 = vmatprep.subr.bf16.mxu0 0
    %548 = vmatpush1.bf16.msra.mxu0 0
    %549 = vmatprep.subr.bf16.mxu0 0
    %550 = vmatpush1.bf16.msra.mxu0 0
    %551 = vmatprep.subr.bf16.mxu0 0
    %552 = vmatpush1.bf16.msra.mxu0 0
    %553 = vmatprep.subr.bf16.mxu0 0
    %554 = vmatpush1.bf16.msra.mxu0 0
    %555 = vmatprep.subr.bf16.mxu0 0
    %556 = vmatpush1.bf16.msra.mxu0 0
    %557 = vmatprep.subr.bf16.mxu0 0
    %558 = vmatpush1.bf16.msra.mxu0 0
    %559 = vmatprep.subr.bf16.mxu0 0
    %560 = vmatpush1.bf16.msra.mxu0 0
    %561 = vmatprep.subr.bf16.mxu0 0
    %562 = vmatpush1.bf16.msra.mxu0 0
    %563 = vmatprep.subr.bf16.mxu0 0
    %564 = vmatpush1.bf16.msra.mxu0 0
    %565 = vmatprep.subr.bf16.mxu0 0
    %566 = vmatpush1.bf16.msra.mxu0 0
    %567 = vmatprep.subr.bf16.mxu0 0
    %568 = vmatpush1.bf16.msra.mxu0 0
    %569 = vmatprep.subr.bf16.mxu0 0
    %570 = vmatpush1.bf16.msra.mxu0 0
    %571 = vmatprep.mubr.bf16.mxu0 0
    %572 = vmatmul.mubr.bf16.gmra.mrb[0].mxu0 %v470
    %v573 = vpop.f32.mrb[0].mxu0
    %v574 = vadd.f32 0.0, %v573
    %v575 = vpop.f32.mrb[0].mxu0
    %v576 = vadd.f32 0.0, %v575
    %v577 = vpop.f32.mrb[0].mxu0
    %v578 = vadd.f32 0.0, %v577
    %v579 = vpop.f32.mrb[0].mxu0
    %v580 = vadd.f32 0.0, %v579
    %581 = vmatprep.mubr.bf16.mxu0 0
    %582 = vmatmul.mubr.bf16.gmra.mrb[0].mxu0 %v473
    %v583 = vpop.f32.mrb[0].mxu0
    %v584 = vadd.f32 0.0, %v583
    %v585 = vpop.f32.mrb[0].mxu0
    %v586 = vadd.f32 0.0, %v585
    %v587 = vpop.f32.mrb[0].mxu0
    %v588 = vadd.f32 0.0, %v587
    %v589 = vpop.f32.mrb[0].mxu0
    %v590 = vadd.f32 0.0, %v589
    %591 = vmatprep.mubr.bf16.mxu0 0
    %592 = vmatmul.mubr.bf16.gmra.mrb[0].mxu0 %v476
    %v593 = vpop.f32.mrb[0].mxu0
    %v594 = vadd.f32 0.0, %v593
    %v595 = vpop.f32.mrb[0].mxu0
    %v596 = vadd.f32 0.0, %v595
    %v597 = vpop.f32.mrb[0].mxu0
    %v598 = vpop.f32.mrb[0].mxu0
    %599 = vdwg.mxu0
    %v600 = vadd.f32 %v71, %v513
    %v601 = vadd.f32 %v75, %v515
    %v602 = vadd.f32 %v79, %v574
    %v603 = vadd.f32 %v83, %v576
    %v604 = vadd.f32 %v71, %v517
    %v605 = vadd.f32 %v75, %v519
    %v606 = vadd.f32 %v79, %v578
    %v607 = vadd.f32 %v83, %v580
    %v608 = vadd.f32 %v71, %v523
    %v609 = vadd.f32 %v75, %v525
    %v610 = vadd.f32 %v79, %v584
    %v611 = vadd.f32 %v83, %v586
    %v612 = vadd.f32 %v71, %v527
    %v613 = vadd.f32 %v75, %v529
    %v614 = vadd.f32 %v79, %v588
    %v615 = vadd.f32 %v83, %v590
    %v616 = vadd.f32 %v71, %v533
    %v617 = vadd.f32 %v75, %v535
    %v618 = vadd.f32 %v79, %v594
    %v619 = vadd.f32 %v83, %v596
    %v620 = vld [vmem:[#allocation2 + $0x1] sm:$0xff]
    %v621 = vld [vmem:[#allocation2 + $0x9] sm:$0xff]
    %v622 = vld [vmem:[#allocation2 + $0x11] sm:$0xff]
    %v623 = vld [vmem:[#allocation2 + $0x19] sm:$0xff]
    %v624 = vld [vmem:[#allocation2 + $0x21] sm:$0xf]
    %v625 = vpack.c.bf16 %v621, %v620
    %v626 = vpack.c.bf16 %v623, %v622
    %v627 = vpack.c.bf16 %v624, %v624
    %v628 = vld [vmem:[#allocation3 + $0x1] sm:$0xff]
    %v629 = vld [vmem:[#allocation3 + $0x9] sm:$0xff]
    %v630 = vld [vmem:[#allocation3 + $0x11] sm:$0xff]
    %v631 = vld [vmem:[#allocation3 + $0x19] sm:$0xff]
    %v632 = vld [vmem:[#allocation3 + $0x21] sm:$0xf]
    %v633 = vpack.c.bf16 %v629, %v628
    %v634 = vpack.c.bf16 %v631, %v630
    %v635 = vpack.c.bf16 %v632, %v632
    %s636 = scalar_lea.vmem [#allocation4], 128
    %v637 = vld [vmem:[%s636] sm:$0xff]
    %v638 = vld [vmem:[%s636 + $0x8] sm:$0xff]
    %v639 = vld [vmem:[%s636 + $0x10] sm:$0xff]
    %v640 = vld [vmem:[%s636 + $0x18] sm:$0xff]
    %v641 = vld [vmem:[%s636 + $0x20] sm:$0xff]
    %v642 = vld [vmem:[%s636 + $0x28] sm:$0xff]
    %v643 = vld [vmem:[%s636 + $0x30] sm:$0xff]
    %v644 = vld [vmem:[%s636 + $0x38] sm:$0xff]
    %v645 = vld [vmem:[%s636 + $0x40] sm:$0xff]
    %v646 = vld [vmem:[%s636 + $0x48] sm:$0xff]
    %v647 = vld [vmem:[%s636 + $0x50] sm:$0xff]
    %v648 = vld [vmem:[%s636 + $0x58] sm:$0xff]
    %v649 = vld [vmem:[%s636 + $0x60] sm:$0xff]
    %v650 = vld [vmem:[%s636 + $0x68] sm:$0xff]
    %v651 = vld [vmem:[%s636 + $0x70] sm:$0xff]
    %v652 = vld [vmem:[%s636 + $0x78] sm:$0xff]
    %v669 = vunpack.c.l.b16 %v637
    %v670 = vunpack.c.h.b16 %v637
    %v671 = vunpack.c.l.b16 %v638
    %v672 = vunpack.c.h.b16 %v638
    %v673 = vunpack.c.l.b16 %v639
    %v674 = vunpack.c.h.b16 %v639
    %v675 = vunpack.c.l.b16 %v640
    %v676 = vunpack.c.h.b16 %v640
    %v677 = vunpack.c.l.b16 %v641
    %v678 = vunpack.c.h.b16 %v641
    %v679 = vunpack.c.l.b16 %v642
    %v680 = vunpack.c.h.b16 %v642
    %v681 = vunpack.c.l.b16 %v643
    %v682 = vunpack.c.h.b16 %v643
    %v683 = vunpack.c.l.b16 %v644
    %v684 = vunpack.c.h.b16 %v644
    %v685 = vunpack.c.l.b16 %v645
    %v686 = vunpack.c.h.b16 %v645
    %v687 = vunpack.c.l.b16 %v646
    %v688 = vunpack.c.h.b16 %v646
    %v689 = vunpack.c.l.b16 %v647
    %v690 = vunpack.c.h.b16 %v647
    %v691 = vunpack.c.l.b16 %v648
    %v692 = vunpack.c.h.b16 %v648
    %v693 = vunpack.c.l.b16 %v649
    %v694 = vunpack.c.h.b16 %v649
    %v695 = vunpack.c.l.b16 %v650
    %v696 = vunpack.c.h.b16 %v650
    %v697 = vunpack.c.l.b16 %v651
    %v698 = vunpack.c.h.b16 %v651
    %v699 = vunpack.c.l.b16 %v652
    %v700 = vunpack.c.h.b16 %v652
    %v701 = vpack.c.b16 %v673, %v669
    %v702 = vpack.c.b16 %v674, %v670
    %v703 = vpack.c.b16 %v675, %v671
    %v704 = vpack.c.b16 %v676, %v672
    %v705 = vpack.c.b16 %v681, %v677
    %v706 = vpack.c.b16 %v682, %v678
    %v707 = vpack.c.b16 %v683, %v679
    %v708 = vpack.c.b16 %v684, %v680
    %v709 = vpack.c.b16 %v689, %v685
    %v710 = vpack.c.b16 %v690, %v686
    %v711 = vpack.c.b16 %v691, %v687
    %v712 = vpack.c.b16 %v692, %v688
    %v713 = vpack.c.b16 %v697, %v693
    %v714 = vpack.c.b16 %v698, %v694
    %v715 = vpack.c.b16 %v699, %v695
    %v716 = vpack.c.b16 %v700, %v696
    %v734 = vsel %vm50, %v625, 0
    %v737 = vsel %vm50, %v626, 0
    %v740 = vsel %vm50, %v627, 0
    %742 = vmatprep.subr.bf16.mxu0 %v702
    %743 = vmatpush1.bf16.msra.mxu0 %v701
    %744 = vmatprep.subr.bf16.mxu0 %v706
    %745 = vmatpush1.bf16.msra.mxu0 %v705
    %746 = vmatprep.subr.bf16.mxu0 %v710
    %747 = vmatpush1.bf16.msra.mxu0 %v709
    %748 = vmatprep.subr.bf16.mxu0 %v714
    %749 = vmatpush1.bf16.msra.mxu0 %v713
    %750 = vmatprep.subr.bf16.mxu0 0
    %751 = vmatpush1.bf16.msra.mxu0 0
    %752 = vmatprep.subr.bf16.mxu0 0
    %753 = vmatpush1.bf16.msra.mxu0 0
    %754 = vmatprep.subr.bf16.mxu0 0
    %755 = vmatpush1.bf16.msra.mxu0 0
    %756 = vmatprep.subr.bf16.mxu0 0
    %757 = vmatpush1.bf16.msra.mxu0 0
    %758 = vmatprep.subr.bf16.mxu0 0
    %759 = vmatpush1.bf16.msra.mxu0 0
    %760 = vmatprep.subr.bf16.mxu0 0
    %761 = vmatpush1.bf16.msra.mxu0 0
    %762 = vmatprep.subr.bf16.mxu0 0
    %763 = vmatpush1.bf16.msra.mxu0 0
    %764 = vmatprep.subr.bf16.mxu0 0
    %765 = vmatpush1.bf16.msra.mxu0 0
    %766 = vmatprep.subr.bf16.mxu0 0
    %767 = vmatpush1.bf16.msra.mxu0 0
    %768 = vmatprep.subr.bf16.mxu0 0
    %769 = vmatpush1.bf16.msra.mxu0 0
    %770 = vmatprep.subr.bf16.mxu0 0
    %771 = vmatpush1.bf16.msra.mxu0 0
    %772 = vmatprep.subr.bf16.mxu0 0
    %773 = vmatpush1.bf16.msra.mxu0 0
    %774 = vmatprep.mubr.bf16.mxu0 0
    %775 = vmatmul.mubr.bf16.gmra.mrb[0].mxu0 %v734
    %v776 = vpop.f32.mrb[0].mxu0
    %v777 = vadd.f32 0.0, %v776
    %v778 = vpop.f32.mrb[0].mxu0
    %v779 = vadd.f32 0.0, %v778
    %v780 = vpop.f32.mrb[0].mxu0
    %v781 = vadd.f32 0.0, %v780
    %v782 = vpop.f32.mrb[0].mxu0
    %v783 = vadd.f32 0.0, %v782
    %784 = vmatprep.mubr.bf16.mxu0 0
    %785 = vmatmul.mubr.bf16.gmra.mrb[0].mxu0 %v737
    %v786 = vpop.f32.mrb[0].mxu0
    %v787 = vadd.f32 0.0, %v786
    %v788 = vpop.f32.mrb[0].mxu0
    %v789 = vadd.f32 0.0, %v788
    %v790 = vpop.f32.mrb[0].mxu0
    %v791 = vadd.f32 0.0, %v790
    %v792 = vpop.f32.mrb[0].mxu0
    %v793 = vadd.f32 0.0, %v792
    %794 = vmatprep.mubr.bf16.mxu0 0
    %795 = vmatmul.mubr.bf16.gmra.mrb[0].mxu0 %v740
    %v796 = vpop.f32.mrb[0].mxu0
    %v797 = vadd.f32 0.0, %v796
    %v798 = vpop.f32.mrb[0].mxu0
    %v799 = vadd.f32 0.0, %v798
    %v800 = vpop.f32.mrb[0].mxu0
    %v801 = vpop.f32.mrb[0].mxu0
    %802 = vdwg.mxu0
    %803 = vmatprep.subr.bf16.mxu0 %v704
    %804 = vmatpush1.bf16.msra.mxu0 %v703
    %805 = vmatprep.subr.bf16.mxu0 %v708
    %806 = vmatpush1.bf16.msra.mxu0 %v707
    %807 = vmatprep.subr.bf16.mxu0 %v712
    %808 = vmatpush1.bf16.msra.mxu0 %v711
    %809 = vmatprep.subr.bf16.mxu0 %v716
    %810 = vmatpush1.bf16.msra.mxu0 %v715
    %811 = vmatprep.subr.bf16.mxu0 0
    %812 = vmatpush1.bf16.msra.mxu0 0
    %813 = vmatprep.subr.bf16.mxu0 0
    %814 = vmatpush1.bf16.msra.mxu0 0
    %815 = vmatprep.subr.bf16.mxu0 0
    %816 = vmatpush1.bf16.msra.mxu0 0
    %817 = vmatprep.subr.bf16.mxu0 0
    %818 = vmatpush1.bf16.msra.mxu0 0
    %819 = vmatprep.subr.bf16.mxu0 0
    %820 = vmatpush1.bf16.msra.mxu0 0
    %821 = vmatprep.subr.bf16.mxu0 0
    %822 = vmatpush1.bf16.msra.mxu0 0
    %823 = vmatprep.subr.bf16.mxu0 0
    %824 = vmatpush1.bf16.msra.mxu0 0
    %825 = vmatprep.subr.bf16.mxu0 0
    %826 = vmatpush1.bf16.msra.mxu0 0
    %827 = vmatprep.subr.bf16.mxu0 0
    %828 = vmatpush1.bf16.msra.mxu0 0
    %829 = vmatprep.subr.bf16.mxu0 0
    %830 = vmatpush1.bf16.msra.mxu0 0
    %831 = vmatprep.subr.bf16.mxu0 0
    %832 = vmatpush1.bf16.msra.mxu0 0
    %833 = vmatprep.subr.bf16.mxu0 0
    %834 = vmatpush1.bf16.msra.mxu0 0
    %835 = vmatprep.mubr.bf16.mxu0 0
    %836 = vmatmul.mubr.bf16.gmra.mrb[0].mxu0 %v734
    %v837 = vpop.f32.mrb[0].mxu0
    %v838 = vadd.f32 0.0, %v837
    %v839 = vpop.f32.mrb[0].mxu0
    %v840 = vadd.f32 0.0, %v839
    %v841 = vpop.f32.mrb[0].mxu0
    %v842 = vadd.f32 0.0, %v841
    %v843 = vpop.f32.mrb[0].mxu0
    %v844 = vadd.f32 0.0, %v843
    %845 = vmatprep.mubr.bf16.mxu0 0
    %846 = vmatmul.mubr.bf16.gmra.mrb[0].mxu0 %v737
    %v847 = vpop.f32.mrb[0].mxu0
    %v848 = vadd.f32 0.0, %v847
    %v849 = vpop.f32.mrb[0].mxu0
    %v850 = vadd.f32 0.0, %v849
    %v851 = vpop.f32.mrb[0].mxu0
    %v852 = vadd.f32 0.0, %v851
    %v853 = vpop.f32.mrb[0].mxu0
    %v854 = vadd.f32 0.0, %v853
    %855 = vmatprep.mubr.bf16.mxu0 0
    %856 = vmatmul.mubr.bf16.gmra.mrb[0].mxu0 %v740
    %v857 = vpop.f32.mrb[0].mxu0
    %v858 = vadd.f32 0.0, %v857
    %v859 = vpop.f32.mrb[0].mxu0
    %v860 = vadd.f32 0.0, %v859
    %v861 = vpop.f32.mrb[0].mxu0
    %v862 = vpop.f32.mrb[0].mxu0
    %863 = vdwg.mxu0
    %v864 = vadd.f32 %v353, %v777
    %v865 = vadd.f32 %v354, %v779
    %v866 = vadd.f32 %v355, %v838
    %v867 = vadd.f32 %v356, %v840
    %v868 = vadd.f32 %v357, %v781
    %v869 = vadd.f32 %v358, %v783
    %v870 = vadd.f32 %v359, %v842
    %v871 = vadd.f32 %v360, %v844
    %v872 = vadd.f32 %v361, %v787
    %v873 = vadd.f32 %v362, %v789
    %v874 = vadd.f32 %v363, %v848
    %v875 = vadd.f32 %v364, %v850
    %v876 = vadd.f32 %v365, %v791
    %v877 = vadd.f32 %v366, %v793
    %v878 = vadd.f32 %v367, %v852
    %v879 = vadd.f32 %v368, %v854
    %v880 = vadd.f32 %v369, %v797
    %v881 = vadd.f32 %v370, %v799
    %v882 = vadd.f32 %v371, %v858
    %v883 = vadd.f32 %v372, %v860
    %s884 = scalar_lea.vmem %s1, 128
    %v885 = vld [vmem:[%s884] sm:$0xff]
    %v886 = vld [vmem:[%s884 + $0x8] sm:$0xff]
    %v887 = vld [vmem:[%s884 + $0x10] sm:$0xff]
    %v888 = vld [vmem:[%s884 + $0x18] sm:$0xff]
    %v889 = vld [vmem:[%s884 + $0x20] sm:$0xff]
    %v890 = vld [vmem:[%s884 + $0x28] sm:$0xff]
    %v891 = vld [vmem:[%s884 + $0x30] sm:$0xff]
    %v892 = vld [vmem:[%s884 + $0x38] sm:$0xff]
    %v893 = vld [vmem:[%s884 + $0x40] sm:$0xff]
    %v894 = vld [vmem:[%s884 + $0x48] sm:$0xff]
    %v895 = vld [vmem:[%s884 + $0x50] sm:$0xff]
    %v896 = vld [vmem:[%s884 + $0x58] sm:$0xff]
    %v897 = vld [vmem:[%s884 + $0x60] sm:$0xff]
    %v898 = vld [vmem:[%s884 + $0x68] sm:$0xff]
    %v899 = vld [vmem:[%s884 + $0x70] sm:$0xff]
    %v900 = vld [vmem:[%s884 + $0x78] sm:$0xff]
    %v917 = vunpack.c.l.b16 %v885
    %v918 = vunpack.c.h.b16 %v885
    %v919 = vunpack.c.l.b16 %v886
    %v920 = vunpack.c.h.b16 %v886
    %v921 = vunpack.c.l.b16 %v887
    %v922 = vunpack.c.h.b16 %v887
    %v923 = vunpack.c.l.b16 %v888
    %v924 = vunpack.c.h.b16 %v888
    %v925 = vunpack.c.l.b16 %v889
    %v926 = vunpack.c.h.b16 %v889
    %v927 = vunpack.c.l.b16 %v890
    %v928 = vunpack.c.h.b16 %v890
    %v929 = vunpack.c.l.b16 %v891
    %v930 = vunpack.c.h.b16 %v891
    %v931 = vunpack.c.l.b16 %v892
    %v932 = vunpack.c.h.b16 %v892
    %v933 = vunpack.c.l.b16 %v893
    %v934 = vunpack.c.h.b16 %v893
    %v935 = vunpack.c.l.b16 %v894
    %v936 = vunpack.c.h.b16 %v894
    %v937 = vunpack.c.l.b16 %v895
    %v938 = vunpack.c.h.b16 %v895
    %v939 = vunpack.c.l.b16 %v896
    %v940 = vunpack.c.h.b16 %v896
    %v941 = vunpack.c.l.b16 %v897
    %v942 = vunpack.c.h.b16 %v897
    %v943 = vunpack.c.l.b16 %v898
    %v944 = vunpack.c.h.b16 %v898
    %v945 = vunpack.c.l.b16 %v899
    %v946 = vunpack.c.h.b16 %v899
    %v947 = vunpack.c.l.b16 %v900
    %v948 = vunpack.c.h.b16 %v900
    %v949 = vpack.c.b16 %v921, %v917
    %v950 = vpack.c.b16 %v922, %v918
    %v951 = vpack.c.b16 %v923, %v919
    %v952 = vpack.c.b16 %v924, %v920
    %v953 = vpack.c.b16 %v929, %v925
    %v954 = vpack.c.b16 %v930, %v926
    %v955 = vpack.c.b16 %v931, %v927
    %v956 = vpack.c.b16 %v932, %v928
    %v957 = vpack.c.b16 %v937, %v933
    %v958 = vpack.c.b16 %v938, %v934
    %v959 = vpack.c.b16 %v939, %v935
    %v960 = vpack.c.b16 %v940, %v936
    %v961 = vpack.c.b16 %v945, %v941
    %v962 = vpack.c.b16 %v946, %v942
    %v963 = vpack.c.b16 %v947, %v943
    %v964 = vpack.c.b16 %v948, %v944
    %v982 = vsel %vm50, %v633, 0
    %v985 = vsel %vm50, %v634, 0
    %v988 = vsel %vm50, %v635, 0
    %990 = vmatprep.subr.bf16.mxu0 %v950
    %991 = vmatpush1.bf16.msra.mxu0 %v949
    %992 = vmatprep.subr.bf16.mxu0 %v954
    %993 = vmatpush1.bf16.msra.mxu0 %v953
    %994 = vmatprep.subr.bf16.mxu0 %v958
    %995 = vmatpush1.bf16.msra.mxu0 %v957
    %996 = vmatprep.subr.bf16.mxu0 %v962
    %997 = vmatpush1.bf16.msra.mxu0 %v961
    %998 = vmatprep.subr.bf16.mxu0 0
    %999 = vmatpush1.bf16.msra.mxu0 0
    %1000 = vmatprep.subr.bf16.mxu0 0
    %1001 = vmatpush1.bf16.msra.mxu0 0
    %1002 = vmatprep.subr.bf16.mxu0 0
    %1003 = vmatpush1.bf16.msra.mxu0 0
    %1004 = vmatprep.subr.bf16.mxu0 0
    %1005 = vmatpush1.bf16.msra.mxu0 0
    %1006 = vmatprep.subr.bf16.mxu0 0
    %1007 = vmatpush1.bf16.msra.mxu0 0
    %1008 = vmatprep.subr.bf16.mxu0 0
    %1009 = vmatpush1.bf16.msra.mxu0 0
    %1010 = vmatprep.subr.bf16.mxu0 0
    %1011 = vmatpush1.bf16.msra.mxu0 0
    %1012 = vmatprep.subr.bf16.mxu0 0
    %1013 = vmatpush1.bf16.msra.mxu0 0
    %1014 = vmatprep.subr.bf16.mxu0 0
    %1015 = vmatpush1.bf16.msra.mxu0 0
    %1016 = vmatprep.subr.bf16.mxu0 0
    %1017 = vmatpush1.bf16.msra.mxu0 0
    %1018 = vmatprep.subr.bf16.mxu0 0
    %1019 = vmatpush1.bf16.msra.mxu0 0
    %1020 = vmatprep.subr.bf16.mxu0 0
    %1021 = vmatpush1.bf16.msra.mxu0 0
    %1022 = vmatprep.mubr.bf16.mxu0 0
    %1023 = vmatmul.mubr.bf16.gmra.mrb[0].mxu0 %v982
    %v1024 = vpop.f32.mrb[0].mxu0
    %v1025 = vadd.f32 0.0, %v1024
    %v1026 = vpop.f32.mrb[0].mxu0
    %v1027 = vadd.f32 0.0, %v1026
    %v1028 = vpop.f32.mrb[0].mxu0
    %v1029 = vadd.f32 0.0, %v1028
    %v1030 = vpop.f32.mrb[0].mxu0
    %v1031 = vadd.f32 0.0, %v1030
    %1032 = vmatprep.mubr.bf16.mxu0 0
    %1033 = vmatmul.mubr.bf16.gmra.mrb[0].mxu0 %v985
    %v1034 = vpop.f32.mrb[0].mxu0
    %v1035 = vadd.f32 0.0, %v1034
    %v1036 = vpop.f32.mrb[0].mxu0
    %v1037 = vadd.f32 0.0, %v1036
    %v1038 = vpop.f32.mrb[0].mxu0
    %v1039 = vadd.f32 0.0, %v1038
    %v1040 = vpop.f32.mrb[0].mxu0
    %v1041 = vadd.f32 0.0, %v1040
    %1042 = vmatprep.mubr.bf16.mxu0 0
    %1043 = vmatmul.mubr.bf16.gmra.mrb[0].mxu0 %v988
    %v1044 = vpop.f32.mrb[0].mxu0
    %v1045 = vadd.f32 0.0, %v1044
    %v1046 = vpop.f32.mrb[0].mxu0
    %v1047 = vadd.f32 0.0, %v1046
    %v1048 = vpop.f32.mrb[0].mxu0
    %v1049 = vpop.f32.mrb[0].mxu0
    %1050 = vdwg.mxu0
    %1051 = vmatprep.subr.bf16.mxu0 %v952
    %1052 = vmatpush1.bf16.msra.mxu0 %v951
    %1053 = vmatprep.subr.bf16.mxu0 %v956
    %1054 = vmatpush1.bf16.msra.mxu0 %v955
    %1055 = vmatprep.subr.bf16.mxu0 %v960
    %1056 = vmatpush1.bf16.msra.mxu0 %v959
    %1057 = vmatprep.subr.bf16.mxu0 %v964
    %1058 = vmatpush1.bf16.msra.mxu0 %v963
    %1059 = vmatprep.subr.bf16.mxu0 0
    %1060 = vmatpush1.bf16.msra.mxu0 0
    %1061 = vmatprep.subr.bf16.mxu0 0
    %1062 = vmatpush1.bf16.msra.mxu0 0
    %1063 = vmatprep.subr.bf16.mxu0 0
    %1064 = vmatpush1.bf16.msra.mxu0 0
    %1065 = vmatprep.subr.bf16.mxu0 0
    %1066 = vmatpush1.bf16.msra.mxu0 0
    %1067 = vmatprep.subr.bf16.mxu0 0
    %1068 = vmatpush1.bf16.msra.mxu0 0
    %1069 = vmatprep.subr.bf16.mxu0 0
    %1070 = vmatpush1.bf16.msra.mxu0 0
    %1071 = vmatprep.subr.bf16.mxu0 0
    %1072 = vmatpush1.bf16.msra.mxu0 0
    %1073 = vmatprep.subr.bf16.mxu0 0
    %1074 = vmatpush1.bf16.msra.mxu0 0
    %1075 = vmatprep.subr.bf16.mxu0 0
    %1076 = vmatpush1.bf16.msra.mxu0 0
    %1077 = vmatprep.subr.bf16.mxu0 0
    %1078 = vmatpush1.bf16.msra.mxu0 0
    %1079 = vmatprep.subr.bf16.mxu0 0
    %1080 = vmatpush1.bf16.msra.mxu0 0
    %1081 = vmatprep.subr.bf16.mxu0 0
    %1082 = vmatpush1.bf16.msra.mxu0 0
    %1083 = vmatprep.mubr.bf16.mxu0 0
    %1084 = vmatmul.mubr.bf16.gmra.mrb[0].mxu0 %v982
    %v1085 = vpop.f32.mrb[0].mxu0
    %v1086 = vadd.f32 0.0, %v1085
    %v1087 = vpop.f32.mrb[0].mxu0
    %v1088 = vadd.f32 0.0, %v1087
    %v1089 = vpop.f32.mrb[0].mxu0
    %v1090 = vadd.f32 0.0, %v1089
    %v1091 = vpop.f32.mrb[0].mxu0
    %v1092 = vadd.f32 0.0, %v1091
    %1093 = vmatprep.mubr.bf16.mxu0 0
    %1094 = vmatmul.mubr.bf16.gmra.mrb[0].mxu0 %v985
    %v1095 = vpop.f32.mrb[0].mxu0
    %v1096 = vadd.f32 0.0, %v1095
    %v1097 = vpop.f32.mrb[0].mxu0
    %v1098 = vadd.f32 0.0, %v1097
    %v1099 = vpop.f32.mrb[0].mxu0
    %v1100 = vadd.f32 0.0, %v1099
    %v1101 = vpop.f32.mrb[0].mxu0
    %v1102 = vadd.f32 0.0, %v1101
    %1103 = vmatprep.mubr.bf16.mxu0 0
    %1104 = vmatmul.mubr.bf16.gmra.mrb[0].mxu0 %v988
    %v1105 = vpop.f32.mrb[0].mxu0
    %v1106 = vadd.f32 0.0, %v1105
    %v1107 = vpop.f32.mrb[0].mxu0
    %v1108 = vadd.f32 0.0, %v1107
    %v1109 = vpop.f32.mrb[0].mxu0
    %v1110 = vpop.f32.mrb[0].mxu0
    %1111 = vdwg.mxu0
    %v1112 = vadd.f32 %v600, %v1025
    %v1113 = vadd.f32 %v601, %v1027
    %v1114 = vadd.f32 %v602, %v1086
    %v1115 = vadd.f32 %v603, %v1088
    %v1116 = vadd.f32 %v604, %v1029
    %v1117 = vadd.f32 %v605, %v1031
    %v1118 = vadd.f32 %v606, %v1090
    %v1119 = vadd.f32 %v607, %v1092
    %v1120 = vadd.f32 %v608, %v1035
    %v1121 = vadd.f32 %v609, %v1037
    %v1122 = vadd.f32 %v610, %v1096
    %v1123 = vadd.f32 %v611, %v1098
    %v1124 = vadd.f32 %v612, %v1039
    %v1125 = vadd.f32 %v613, %v1041
    %v1126 = vadd.f32 %v614, %v1100
    %v1127 = vadd.f32 %v615, %v1102
    %v1128 = vadd.f32 %v616, %v1045
    %v1129 = vadd.f32 %v617, %v1047
    %v1130 = vadd.f32 %v618, %v1106
    %v1131 = vadd.f32 %v619, %v1108
    %v1132 = vld [vmem:[#allocation2 + $0x2] sm:$0xff]
    %v1133 = vld [vmem:[#allocation2 + $0xa] sm:$0xff]
    %v1134 = vld [vmem:[#allocation2 + $0x12] sm:$0xff]
    %v1135 = vld [vmem:[#allocation2 + $0x1a] sm:$0xff]
    %v1136 = vld [vmem:[#allocation2 + $0x22] sm:$0xf]
    %v1137 = vpack.c.bf16 %v1133, %v1132
    %v1138 = vpack.c.bf16 %v1135, %v1134
    %v1139 = vpack.c.bf16 %v1136, %v1136
    %v1140 = vld [vmem:[#allocation3 + $0x2] sm:$0xff]
    %v1141 = vld [vmem:[#allocation3 + $0xa] sm:$0xff]
    %v1142 = vld [vmem:[#allocation3 + $0x12] sm:$0xff]
    %v1143 = vld [vmem:[#allocation3 + $0x1a] sm:$0xff]
    %v1144 = vld [vmem:[#allocation3 + $0x22] sm:$0xf]
    %v1145 = vpack.c.bf16 %v1141, %v1140
    %v1146 = vpack.c.bf16 %v1143, %v1142
    %v1147 = vpack.c.bf16 %v1144, %v1144
    %s1148 = scalar_lea.vmem [#allocation4], 256
    %v1149 = vld [vmem:[%s1148] sm:$0xff]
    %v1150 = vld [vmem:[%s1148 + $0x8] sm:$0xff]
    %v1151 = vld [vmem:[%s1148 + $0x10] sm:$0xff]
    %v1152 = vld [vmem:[%s1148 + $0x18] sm:$0xff]
    %v1153 = vld [vmem:[%s1148 + $0x20] sm:$0xff]
    %v1154 = vld [vmem:[%s1148 + $0x28] sm:$0xff]
    %v1155 = vld [vmem:[%s1148 + $0x30] sm:$0xff]
    %v1156 = vld [vmem:[%s1148 + $0x38] sm:$0xff]
    %v1157 = vld [vmem:[%s1148 + $0x40] sm:$0xff]
    %v1158 = vld [vmem:[%s1148 + $0x48] sm:$0xff]
    %v1159 = vld [vmem:[%s1148 + $0x50] sm:$0xff]
    %v1160 = vld [vmem:[%s1148 + $0x58] sm:$0xff]
    %v1161 = vld [vmem:[%s1148 + $0x60] sm:$0xff]
    %v1162 = vld [vmem:[%s1148 + $0x68] sm:$0xff]
    %v1163 = vld [vmem:[%s1148 + $0x70] sm:$0xff]
    %v1164 = vld [vmem:[%s1148 + $0x78] sm:$0xff]
    %v1181 = vunpack.c.l.b16 %v1149
    %v1182 = vunpack.c.h.b16 %v1149
    %v1183 = vunpack.c.l.b16 %v1150
    %v1184 = vunpack.c.h.b16 %v1150
    %v1185 = vunpack.c.l.b16 %v1151
    %v1186 = vunpack.c.h.b16 %v1151
    %v1187 = vunpack.c.l.b16 %v1152
    %v1188 = vunpack.c.h.b16 %v1152
    %v1189 = vunpack.c.l.b16 %v1153
    %v1190 = vunpack.c.h.b16 %v1153
    %v1191 = vunpack.c.l.b16 %v1154
    %v1192 = vunpack.c.h.b16 %v1154
    %v1193 = vunpack.c.l.b16 %v1155
    %v1194 = vunpack.c.h.b16 %v1155
    %v1195 = vunpack.c.l.b16 %v1156
    %v1196 = vunpack.c.h.b16 %v1156
    %v1197 = vunpack.c.l.b16 %v1157
    %v1198 = vunpack.c.h.b16 %v1157
    %v1199 = vunpack.c.l.b16 %v1158
    %v1200 = vunpack.c.h.b16 %v1158
    %v1201 = vunpack.c.l.b16 %v1159
    %v1202 = vunpack.c.h.b16 %v1159
    %v1203 = vunpack.c.l.b16 %v1160
    %v1204 = vunpack.c.h.b16 %v1160
    %v1205 = vunpack.c.l.b16 %v1161
    %v1206 = vunpack.c.h.b16 %v1161
    %v1207 = vunpack.c.l.b16 %v1162
    %v1208 = vunpack.c.h.b16 %v1162
    %v1209 = vunpack.c.l.b16 %v1163
    %v1210 = vunpack.c.h.b16 %v1163
    %v1211 = vunpack.c.l.b16 %v1164
    %v1212 = vunpack.c.h.b16 %v1164
    %v1213 = vpack.c.b16 %v1185, %v1181
    %v1214 = vpack.c.b16 %v1186, %v1182
    %v1215 = vpack.c.b16 %v1187, %v1183
    %v1216 = vpack.c.b16 %v1188, %v1184
    %v1217 = vpack.c.b16 %v1193, %v1189
    %v1218 = vpack.c.b16 %v1194, %v1190
    %v1219 = vpack.c.b16 %v1195, %v1191
    %v1220 = vpack.c.b16 %v1196, %v1192
    %v1221 = vpack.c.b16 %v1201, %v1197
    %v1222 = vpack.c.b16 %v1202, %v1198
    %v1223 = vpack.c.b16 %v1203, %v1199
    %v1224 = vpack.c.b16 %v1204, %v1200
    %v1225 = vpack.c.b16 %v1209, %v1205
    %v1226 = vpack.c.b16 %v1210, %v1206
    %v1227 = vpack.c.b16 %v1211, %v1207
    %v1228 = vpack.c.b16 %v1212, %v1208
    %v1246 = vsel %vm50, %v1137, 0
    %v1249 = vsel %vm50, %v1138, 0
    %v1252 = vsel %vm50, %v1139, 0
    %1254 = vmatprep.subr.bf16.mxu0 %v1214
    %1255 = vmatpush1.bf16.msra.mxu0 %v1213
    %1256 = vmatprep.subr.bf16.mxu0 %v1218
    %1257 = vmatpush1.bf16.msra.mxu0 %v1217
    %1258 = vmatprep.subr.bf16.mxu0 %v1222
    %1259 = vmatpush1.bf16.msra.mxu0 %v1221
    %1260 = vmatprep.subr.bf16.mxu0 %v1226
    %1261 = vmatpush1.bf16.msra.mxu0 %v1225
    %1262 = vmatprep.subr.bf16.mxu0 0
    %1263 = vmatpush1.bf16.msra.mxu0 0
    %1264 = vmatprep.subr.bf16.mxu0 0
    %1265 = vmatpush1.bf16.msra.mxu0 0
    %1266 = vmatprep.subr.bf16.mxu0 0
    %1267 = vmatpush1.bf16.msra.mxu0 0
    %1268 = vmatprep.subr.bf16.mxu0 0
    %1269 = vmatpush1.bf16.msra.mxu0 0
    %1270 = vmatprep.subr.bf16.mxu0 0
    %1271 = vmatpush1.bf16.msra.mxu0 0
    %1272 = vmatprep.subr.bf16.mxu0 0
    %1273 = vmatpush1.bf16.msra.mxu0 0
    %1274 = vmatprep.subr.bf16.mxu0 0
    %1275 = vmatpush1.bf16.msra.mxu0 0
    %1276 = vmatprep.subr.bf16.mxu0 0
    %1277 = vmatpush1.bf16.msra.mxu0 0
    %1278 = vmatprep.subr.bf16.mxu0 0
    %1279 = vmatpush1.bf16.msra.mxu0 0
    %1280 = vmatprep.subr.bf16.mxu0 0
    %1281 = vmatpush1.bf16.msra.mxu0 0
    %1282 = vmatprep.subr.bf16.mxu0 0
    %1283 = vmatpush1.bf16.msra.mxu0 0
    %1284 = vmatprep.subr.bf16.mxu0 0
    %1285 = vmatpush1.bf16.msra.mxu0 0
    %1286 = vmatprep.mubr.bf16.mxu0 0
    %1287 = vmatmul.mubr.bf16.gmra.mrb[0].mxu0 %v1246
    %v1288 = vpop.f32.mrb[0].mxu0
    %v1289 = vadd.f32 0.0, %v1288
    %v1290 = vpop.f32.mrb[0].mxu0
    %v1291 = vadd.f32 0.0, %v1290
    %v1292 = vpop.f32.mrb[0].mxu0
    %v1293 = vadd.f32 0.0, %v1292
    %v1294 = vpop.f32.mrb[0].mxu0
    %v1295 = vadd.f32 0.0, %v1294
    %1296 = vmatprep.mubr.bf16.mxu0 0
    %1297 = vmatmul.mubr.bf16.gmra.mrb[0].mxu0 %v1249
    %v1298 = vpop.f32.mrb[0].mxu0
    %v1299 = vadd.f32 0.0, %v1298
    %v1300 = vpop.f32.mrb[0].mxu0
    %v1301 = vadd.f32 0.0, %v1300
    %v1302 = vpop.f32.mrb[0].mxu0
    %v1303 = vadd.f32 0.0, %v1302
    %v1304 = vpop.f32.mrb[0].mxu0
    %v1305 = vadd.f32 0.0, %v1304
    %1306 = vmatprep.mubr.bf16.mxu0 0
    %1307 = vmatmul.mubr.bf16.gmra.mrb[0].mxu0 %v1252
    %v1308 = vpop.f32.mrb[0].mxu0
    %v1309 = vadd.f32 0.0, %v1308
    %v1310 = vpop.f32.mrb[0].mxu0
    %v1311 = vadd.f32 0.0, %v1310
    %v1312 = vpop.f32.mrb[0].mxu0
    %v1313 = vpop.f32.mrb[0].mxu0
    %1314 = vdwg.mxu0
    %1315 = vmatprep.subr.bf16.mxu0 %v1216
    %1316 = vmatpush1.bf16.msra.mxu0 %v1215
    %1317 = vmatprep.subr.bf16.mxu0 %v1220
    %1318 = vmatpush1.bf16.msra.mxu0 %v1219
    %1319 = vmatprep.subr.bf16.mxu0 %v1224
    %1320 = vmatpush1.bf16.msra.mxu0 %v1223
    %1321 = vmatprep.subr.bf16.mxu0 %v1228
    %1322 = vmatpush1.bf16.msra.mxu0 %v1227
    %1323 = vmatprep.subr.bf16.mxu0 0
    %1324 = vmatpush1.bf16.msra.mxu0 0
    %1325 = vmatprep.subr.bf16.mxu0 0
    %1326 = vmatpush1.bf16.msra.mxu0 0
    %1327 = vmatprep.subr.bf16.mxu0 0
    %1328 = vmatpush1.bf16.msra.mxu0 0
    %1329 = vmatprep.subr.bf16.mxu0 0
    %1330 = vmatpush1.bf16.msra.mxu0 0
    %1331 = vmatprep.subr.bf16.mxu0 0
    %1332 = vmatpush1.bf16.msra.mxu0 0
    %1333 = vmatprep.subr.bf16.mxu0 0
    %1334 = vmatpush1.bf16.msra.mxu0 0
    %1335 = vmatprep.subr.bf16.mxu0 0
    %1336 = vmatpush1.bf16.msra.mxu0 0
    %1337 = vmatprep.subr.bf16.mxu0 0
    %1338 = vmatpush1.bf16.msra.mxu0 0
    %1339 = vmatprep.subr.bf16.mxu0 0
    %1340 = vmatpush1.bf16.msra.mxu0 0
    %1341 = vmatprep.subr.bf16.mxu0 0
    %1342 = vmatpush1.bf16.msra.mxu0 0
    %1343 = vmatprep.subr.bf16.mxu0 0
    %1344 = vmatpush1.bf16.msra.mxu0 0
    %1345 = vmatprep.subr.bf16.mxu0 0
    %1346 = vmatpush1.bf16.msra.mxu0 0
    %1347 = vmatprep.mubr.bf16.mxu0 0
    %1348 = vmatmul.mubr.bf16.gmra.mrb[0].mxu0 %v1246
    %v1349 = vpop.f32.mrb[0].mxu0
    %v1350 = vadd.f32 0.0, %v1349
    %v1351 = vpop.f32.mrb[0].mxu0
    %v1352 = vadd.f32 0.0, %v1351
    %v1353 = vpop.f32.mrb[0].mxu0
    %v1354 = vadd.f32 0.0, %v1353
    %v1355 = vpop.f32.mrb[0].mxu0
    %v1356 = vadd.f32 0.0, %v1355
    %1357 = vmatprep.mubr.bf16.mxu0 0
    %1358 = vmatmul.mubr.bf16.gmra.mrb[0].mxu0 %v1249
    %v1359 = vpop.f32.mrb[0].mxu0
    %v1360 = vadd.f32 0.0, %v1359
    %v1361 = vpop.f32.mrb[0].mxu0
    %v1362 = vadd.f32 0.0, %v1361
    %v1363 = vpop.f32.mrb[0].mxu0
    %v1364 = vadd.f32 0.0, %v1363
    %v1365 = vpop.f32.mrb[0].mxu0
    %v1366 = vadd.f32 0.0, %v1365
    %1367 = vmatprep.mubr.bf16.mxu0 0
    %1368 = vmatmul.mubr.bf16.gmra.mrb[0].mxu0 %v1252
    %v1369 = vpop.f32.mrb[0].mxu0
    %v1370 = vadd.f32 0.0, %v1369
    %v1371 = vpop.f32.mrb[0].mxu0
    %v1372 = vadd.f32 0.0, %v1371
    %v1373 = vpop.f32.mrb[0].mxu0
    %v1374 = vpop.f32.mrb[0].mxu0
    %1375 = vdwg.mxu0
    %v1376 = vadd.f32 %v864, %v1289
    %v1377 = vadd.f32 %v865, %v1291
    %v1378 = vadd.f32 %v866, %v1350
    %v1379 = vadd.f32 %v867, %v1352
    %v1380 = vadd.f32 %v868, %v1293
    %v1381 = vadd.f32 %v869, %v1295
    %v1382 = vadd.f32 %v870, %v1354
    %v1383 = vadd.f32 %v871, %v1356
    %v1384 = vadd.f32 %v872, %v1299
    %v1385 = vadd.f32 %v873, %v1301
    %v1386 = vadd.f32 %v874, %v1360
    %v1387 = vadd.f32 %v875, %v1362
    %v1388 = vadd.f32 %v876, %v1303
    %v1389 = vadd.f32 %v877, %v1305
    %v1390 = vadd.f32 %v878, %v1364
    %v1391 = vadd.f32 %v879, %v1366
    %v1392 = vadd.f32 %v880, %v1309
    %v1393 = vadd.f32 %v881, %v1311
    %v1394 = vadd.f32 %v882, %v1370
    %v1395 = vadd.f32 %v883, %v1372
    %s1396 = scalar_lea.vmem %s1, 256
    %v1397 = vld [vmem:[%s1396] sm:$0xff]
    %v1398 = vld [vmem:[%s1396 + $0x8] sm:$0xff]
    %v1399 = vld [vmem:[%s1396 + $0x10] sm:$0xff]
    %v1400 = vld [vmem:[%s1396 + $0x18] sm:$0xff]
    %v1401 = vld [vmem:[%s1396 + $0x20] sm:$0xff]
    %v1402 = vld [vmem:[%s1396 + $0x28] sm:$0xff]
    %v1403 = vld [vmem:[%s1396 + $0x30] sm:$0xff]
    %v1404 = vld [vmem:[%s1396 + $0x38] sm:$0xff]
    %v1405 = vld [vmem:[%s1396 + $0x40] sm:$0xff]
    %v1406 = vld [vmem:[%s1396 + $0x48] sm:$0xff]
    %v1407 = vld [vmem:[%s1396 + $0x50] sm:$0xff]
    %v1408 = vld [vmem:[%s1396 + $0x58] sm:$0xff]
    %v1409 = vld [vmem:[%s1396 + $0x60] sm:$0xff]
    %v1410 = vld [vmem:[%s1396 + $0x68] sm:$0xff]
    %v1411 = vld [vmem:[%s1396 + $0x70] sm:$0xff]
    %v1412 = vld [vmem:[%s1396 + $0x78] sm:$0xff]
    %v1429 = vunpack.c.l.b16 %v1397
    %v1430 = vunpack.c.h.b16 %v1397
    %v1431 = vunpack.c.l.b16 %v1398
    %v1432 = vunpack.c.h.b16 %v1398
    %v1433 = vunpack.c.l.b16 %v1399
    %v1434 = vunpack.c.h.b16 %v1399
    %v1435 = vunpack.c.l.b16 %v1400
    %v1436 = vunpack.c.h.b16 %v1400
    %v1437 = vunpack.c.l.b16 %v1401
    %v1438 = vunpack.c.h.b16 %v1401
    %v1439 = vunpack.c.l.b16 %v1402
    %v1440 = vunpack.c.h.b16 %v1402
    %v1441 = vunpack.c.l.b16 %v1403
    %v1442 = vunpack.c.h.b16 %v1403
    %v1443 = vunpack.c.l.b16 %v1404
    %v1444 = vunpack.c.h.b16 %v1404
    %v1445 = vunpack.c.l.b16 %v1405
    %v1446 = vunpack.c.h.b16 %v1405
    %v1447 = vunpack.c.l.b16 %v1406
    %v1448 = vunpack.c.h.b16 %v1406
    %v1449 = vunpack.c.l.b16 %v1407
    %v1450 = vunpack.c.h.b16 %v1407
    %v1451 = vunpack.c.l.b16 %v1408
    %v1452 = vunpack.c.h.b16 %v1408
    %v1453 = vunpack.c.l.b16 %v1409
    %v1454 = vunpack.c.h.b16 %v1409
    %v1455 = vunpack.c.l.b16 %v1410
    %v1456 = vunpack.c.h.b16 %v1410
    %v1457 = vunpack.c.l.b16 %v1411
    %v1458 = vunpack.c.h.b16 %v1411
    %v1459 = vunpack.c.l.b16 %v1412
    %v1460 = vunpack.c.h.b16 %v1412
    %v1461 = vpack.c.b16 %v1433, %v1429
    %v1462 = vpack.c.b16 %v1434, %v1430
    %v1463 = vpack.c.b16 %v1435, %v1431
    %v1464 = vpack.c.b16 %v1436, %v1432
    %v1465 = vpack.c.b16 %v1441, %v1437
    %v1466 = vpack.c.b16 %v1442, %v1438
    %v1467 = vpack.c.b16 %v1443, %v1439
    %v1468 = vpack.c.b16 %v1444, %v1440
    %v1469 = vpack.c.b16 %v1449, %v1445
    %v1470 = vpack.c.b16 %v1450, %v1446
    %v1471 = vpack.c.b16 %v1451, %v1447
    %v1472 = vpack.c.b16 %v1452, %v1448
    %v1473 = vpack.c.b16 %v1457, %v1453
    %v1474 = vpack.c.b16 %v1458, %v1454
    %v1475 = vpack.c.b16 %v1459, %v1455
    %v1476 = vpack.c.b16 %v1460, %v1456
    %v1494 = vsel %vm50, %v1145, 0
    %v1497 = vsel %vm50, %v1146, 0
    %v1500 = vsel %vm50, %v1147, 0
    %1502 = vmatprep.subr.bf16.mxu0 %v1462
    %1503 = vmatpush1.bf16.msra.mxu0 %v1461
    %1504 = vmatprep.subr.bf16.mxu0 %v1466
    %1505 = vmatpush1.bf16.msra.mxu0 %v1465
    %1506 = vmatprep.subr.bf16.mxu0 %v1470
    %1507 = vmatpush1.bf16.msra.mxu0 %v1469
    %1508 = vmatprep.subr.bf16.mxu0 %v1474
    %1509 = vmatpush1.bf16.msra.mxu0 %v1473
    %1510 = vmatprep.subr.bf16.mxu0 0
    %1511 = vmatpush1.bf16.msra.mxu0 0
    %1512 = vmatprep.subr.bf16.mxu0 0
    %1513 = vmatpush1.bf16.msra.mxu0 0
    %1514 = vmatprep.subr.bf16.mxu0 0
    %1515 = vmatpush1.bf16.msra.mxu0 0
    %1516 = vmatprep.subr.bf16.mxu0 0
    %1517 = vmatpush1.bf16.msra.mxu0 0
    %1518 = vmatprep.subr.bf16.mxu0 0
    %1519 = vmatpush1.bf16.msra.mxu0 0
    %1520 = vmatprep.subr.bf16.mxu0 0
    %1521 = vmatpush1.bf16.msra.mxu0 0
    %1522 = vmatprep.subr.bf16.mxu0 0
    %1523 = vmatpush1.bf16.msra.mxu0 0
    %1524 = vmatprep.subr.bf16.mxu0 0
    %1525 = vmatpush1.bf16.msra.mxu0 0
    %1526 = vmatprep.subr.bf16.mxu0 0
    %1527 = vmatpush1.bf16.msra.mxu0 0
    %1528 = vmatprep.subr.bf16.mxu0 0
    %1529 = vmatpush1.bf16.msra.mxu0 0
    %1530 = vmatprep.subr.bf16.mxu0 0
    %1531 = vmatpush1.bf16.msra.mxu0 0
    %1532 = vmatprep.subr.bf16.mxu0 0
    %1533 = vmatpush1.bf16.msra.mxu0 0
    %1534 = vmatprep.mubr.bf16.mxu0 0
    %1535 = vmatmul.mubr.bf16.gmra.mrb[0].mxu0 %v1494
    %v1536 = vpop.f32.mrb[0].mxu0
    %v1537 = vadd.f32 0.0, %v1536
    %v1538 = vpop.f32.mrb[0].mxu0
    %v1539 = vadd.f32 0.0, %v1538
    %v1540 = vpop.f32.mrb[0].mxu0
    %v1541 = vadd.f32 0.0, %v1540
    %v1542 = vpop.f32.mrb[0].mxu0
    %v1543 = vadd.f32 0.0, %v1542
    %1544 = vmatprep.mubr.bf16.mxu0 0
    %1545 = vmatmul.mubr.bf16.gmra.mrb[0].mxu0 %v1497
    %v1546 = vpop.f32.mrb[0].mxu0
    %v1547 = vadd.f32 0.0, %v1546
    %v1548 = vpop.f32.mrb[0].mxu0
    %v1549 = vadd.f32 0.0, %v1548
    %v1550 = vpop.f32.mrb[0].mxu0
    %v1551 = vadd.f32 0.0, %v1550
    %v1552 = vpop.f32.mrb[0].mxu0
    %v1553 = vadd.f32 0.0, %v1552
    %1554 = vmatprep.mubr.bf16.mxu0 0
    %1555 = vmatmul.mubr.bf16.gmra.mrb[0].mxu0 %v1500
    %v1556 = vpop.f32.mrb[0].mxu0
    %v1557 = vadd.f32 0.0, %v1556
    %v1558 = vpop.f32.mrb[0].mxu0
    %v1559 = vadd.f32 0.0, %v1558
    %v1560 = vpop.f32.mrb[0].mxu0
    %v1561 = vpop.f32.mrb[0].mxu0
    %1562 = vdwg.mxu0
    %1563 = vmatprep.subr.bf16.mxu0 %v1464
    %1564 = vmatpush1.bf16.msra.mxu0 %v1463
    %1565 = vmatprep.subr.bf16.mxu0 %v1468
    %1566 = vmatpush1.bf16.msra.mxu0 %v1467
    %1567 = vmatprep.subr.bf16.mxu0 %v1472
    %1568 = vmatpush1.bf16.msra.mxu0 %v1471
    %1569 = vmatprep.subr.bf16.mxu0 %v1476
    %1570 = vmatpush1.bf16.msra.mxu0 %v1475
    %1571 = vmatprep.subr.bf16.mxu0 0
    %1572 = vmatpush1.bf16.msra.mxu0 0
    %1573 = vmatprep.subr.bf16.mxu0 0
    %1574 = vmatpush1.bf16.msra.mxu0 0
    %1575 = vmatprep.subr.bf16.mxu0 0
    %1576 = vmatpush1.bf16.msra.mxu0 0
    %1577 = vmatprep.subr.bf16.mxu0 0
    %1578 = vmatpush1.bf16.msra.mxu0 0
    %1579 = vmatprep.subr.bf16.mxu0 0
    %1580 = vmatpush1.bf16.msra.mxu0 0
    %1581 = vmatprep.subr.bf16.mxu0 0
    %1582 = vmatpush1.bf16.msra.mxu0 0
    %1583 = vmatprep.subr.bf16.mxu0 0
    %1584 = vmatpush1.bf16.msra.mxu0 0
    %1585 = vmatprep.subr.bf16.mxu0 0
    %1586 = vmatpush1.bf16.msra.mxu0 0
    %1587 = vmatprep.subr.bf16.mxu0 0
    %1588 = vmatpush1.bf16.msra.mxu0 0
    %1589 = vmatprep.subr.bf16.mxu0 0
    %1590 = vmatpush1.bf16.msra.mxu0 0
    %1591 = vmatprep.subr.bf16.mxu0 0
    %1592 = vmatpush1.bf16.msra.mxu0 0
    %1593 = vmatprep.subr.bf16.mxu0 0
    %1594 = vmatpush1.bf16.msra.mxu0 0
    %1595 = vmatprep.mubr.bf16.mxu0 0
    %1596 = vmatmul.mubr.bf16.gmra.mrb[0].mxu0 %v1494
    %v1597 = vpop.f32.mrb[0].mxu0
    %v1598 = vadd.f32 0.0, %v1597
    %v1599 = vpop.f32.mrb[0].mxu0
    %v1600 = vadd.f32 0.0, %v1599
    %v1601 = vpop.f32.mrb[0].mxu0
    %v1602 = vadd.f32 0.0, %v1601
    %v1603 = vpop.f32.mrb[0].mxu0
    %v1604 = vadd.f32 0.0, %v1603
    %1605 = vmatprep.mubr.bf16.mxu0 0
    %1606 = vmatmul.mubr.bf16.gmra.mrb[0].mxu0 %v1497
    %v1607 = vpop.f32.mrb[0].mxu0
    %v1608 = vadd.f32 0.0, %v1607
    %v1609 = vpop.f32.mrb[0].mxu0
    %v1610 = vadd.f32 0.0, %v1609
    %v1611 = vpop.f32.mrb[0].mxu0
    %v1612 = vadd.f32 0.0, %v1611
    %v1613 = vpop.f32.mrb[0].mxu0
    %v1614 = vadd.f32 0.0, %v1613
    %1615 = vmatprep.mubr.bf16.mxu0 0
    %1616 = vmatmul.mubr.bf16.gmra.mrb[0].mxu0 %v1500
    %v1617 = vpop.f32.mrb[0].mxu0
    %v1618 = vadd.f32 0.0, %v1617
    %v1619 = vpop.f32.mrb[0].mxu0
    %v1620 = vadd.f32 0.0, %v1619
    %v1621 = vpop.f32.mrb[0].mxu0
    %v1622 = vpop.f32.mrb[0].mxu0
    %1623 = vdwg.mxu0
    %v1624 = vadd.f32 %v1112, %v1537
    %v1625 = vadd.f32 %v1113, %v1539
    %v1626 = vadd.f32 %v1114, %v1598
    %v1627 = vadd.f32 %v1115, %v1600
    %v1628 = vadd.f32 %v1116, %v1541
    %v1629 = vadd.f32 %v1117, %v1543
    %v1630 = vadd.f32 %v1118, %v1602
    %v1631 = vadd.f32 %v1119, %v1604
    %v1632 = vadd.f32 %v1120, %v1547
    %v1633 = vadd.f32 %v1121, %v1549
    %v1634 = vadd.f32 %v1122, %v1608
    %v1635 = vadd.f32 %v1123, %v1610
    %v1636 = vadd.f32 %v1124, %v1551
    %v1637 = vadd.f32 %v1125, %v1553
    %v1638 = vadd.f32 %v1126, %v1612
    %v1639 = vadd.f32 %v1127, %v1614
    %v1640 = vadd.f32 %v1128, %v1557
    %v1641 = vadd.f32 %v1129, %v1559
    %v1642 = vadd.f32 %v1130, %v1618
    %v1643 = vadd.f32 %v1131, %v1620
    %v1644 = vpack.c.bf16 %v1628, %v1624
    %v1645 = vpack.c.bf16 %v1629, %v1625
    %v1646 = vpack.c.bf16 %v1630, %v1626
    %v1647 = vpack.c.bf16 %v1631, %v1627
    %v1652 = vunpack.c.l.b16 %v1644
    %v1653 = vunpack.c.l.b16 %v1645
    %v1654 = vunpack.c.l.b16 %v1646
    %v1655 = vunpack.c.l.b16 %v1647
    %v1656 = vunpack.c.h.b16 %v1644
    %v1657 = vunpack.c.h.b16 %v1645
    %v1658 = vunpack.c.h.b16 %v1646
    %v1659 = vunpack.c.h.b16 %v1647
    %v1660 = vpack.c.b16 %v1653, %v1652
    %v1661 = vpack.c.b16 %v1655, %v1654
    %v1662 = vpack.c.b16 %v1657, %v1656
    %v1663 = vpack.c.b16 %v1659, %v1658
    %1668 = vst [vmem:[%s5] sm:$0xff] %v1660
    %1669 = vst [vmem:[%s5 + $0x8] sm:$0xff] %v1661
    %1670 = vst [vmem:[%s5 + $0x10] sm:$0xff] %v1662
    %1671 = vst [vmem:[%s5 + $0x18] sm:$0xff] %v1663
    %v1672 = vpack.c.bf16 %v1380, %v1376
    %v1673 = vpack.c.bf16 %v1381, %v1377
    %v1674 = vpack.c.bf16 %v1382, %v1378
    %v1675 = vpack.c.bf16 %v1383, %v1379
    %v1680 = vunpack.c.l.b16 %v1672
    %v1681 = vunpack.c.l.b16 %v1673
    %v1682 = vunpack.c.l.b16 %v1674
    %v1683 = vunpack.c.l.b16 %v1675
    %v1684 = vunpack.c.h.b16 %v1672
    %v1685 = vunpack.c.h.b16 %v1673
    %v1686 = vunpack.c.h.b16 %v1674
    %v1687 = vunpack.c.h.b16 %v1675
    %v1688 = vpack.c.b16 %v1681, %v1680
    %v1689 = vpack.c.b16 %v1683, %v1682
    %v1690 = vpack.c.b16 %v1685, %v1684
    %v1691 = vpack.c.b16 %v1687, %v1686
    %1696 = vst [vmem:[%s6] sm:$0xff] %v1688
    %1697 = vst [vmem:[%s6 + $0x8] sm:$0xff] %v1689
    %1698 = vst [vmem:[%s6 + $0x10] sm:$0xff] %v1690
    %1699 = vst [vmem:[%s6 + $0x18] sm:$0xff] %v1691
    %v1700 = vadd.f32 %v1624, %v1628
    %v1701 = vrot.slane %v1700, 4
    %v1702 = vadd.f32 %v1700, %v1701
    %v1703 = vrot.slane %v1702, 2
    %v1704 = vadd.f32 %v1702, %v1703
    %v1705 = vrot.slane %v1704, 1
    %v1706 = vadd.f32 %v1704, %v1705
    %v1707 = vadd.f32 %v1625, %v1629
    %v1708 = vrot.slane %v1707, 4
    %v1709 = vadd.f32 %v1707, %v1708
    %v1710 = vrot.slane %v1709, 2
    %v1711 = vadd.f32 %v1709, %v1710
    %v1712 = vrot.slane %v1711, 1
    %v1713 = vadd.f32 %v1711, %v1712
    %v1714 = vadd.f32 %v1626, %v1630
    %v1715 = vrot.slane %v1714, 4
    %v1716 = vadd.f32 %v1714, %v1715
    %v1717 = vrot.slane %v1716, 2
    %v1718 = vadd.f32 %v1716, %v1717
    %v1719 = vrot.slane %v1718, 1
    %v1720 = vadd.f32 %v1718, %v1719
    %v1721 = vadd.f32 %v1627, %v1631
    %v1722 = vrot.slane %v1721, 4
    %v1723 = vadd.f32 %v1721, %v1722
    %v1724 = vrot.slane %v1723, 2
    %v1725 = vadd.f32 %v1723, %v1724
    %v1726 = vrot.slane %v1725, 1
    %v1727 = vadd.f32 %v1725, %v1726
    %v1728 = vadd.f32 %v1706, 0.0
    %v1729 = vadd.f32 %v1713, 0.0
    %v1730 = vadd.f32 %v1720, 0.0
    %v1731 = vadd.f32 %v1727, 0.0
    %v1732 = vmul.f32 %v1624, %v1624
    %v1733 = vmul.f32 %v1625, %v1625
    %v1734 = vmul.f32 %v1626, %v1626
    %v1735 = vmul.f32 %v1627, %v1627
    %v1736 = vmul.f32 %v1628, %v1628
    %v1737 = vmul.f32 %v1629, %v1629
    %v1738 = vmul.f32 %v1630, %v1630
    %v1739 = vmul.f32 %v1631, %v1631
    %v1740 = vadd.f32 %v1732, %v1736
    %v1741 = vrot.slane %v1740, 4
    %v1742 = vadd.f32 %v1740, %v1741
    %v1743 = vrot.slane %v1742, 2
    %v1744 = vadd.f32 %v1742, %v1743
    %v1745 = vrot.slane %v1744, 1
    %v1746 = vadd.f32 %v1744, %v1745
    %v1747 = vadd.f32 %v1733, %v1737
    %v1748 = vrot.slane %v1747, 4
    %v1749 = vadd.f32 %v1747, %v1748
    %v1750 = vrot.slane %v1749, 2
    %v1751 = vadd.f32 %v1749, %v1750
    %v1752 = vrot.slane %v1751, 1
    %v1753 = vadd.f32 %v1751, %v1752
    %v1754 = vadd.f32 %v1734, %v1738
    %v1755 = vrot.slane %v1754, 4
    %v1756 = vadd.f32 %v1754, %v1755
    %v1757 = vrot.slane %v1756, 2
    %v1758 = vadd.f32 %v1756, %v1757
    %v1759 = vrot.slane %v1758, 1
    %v1760 = vadd.f32 %v1758, %v1759
    %v1761 = vadd.f32 %v1735, %v1739
    %v1762 = vrot.slane %v1761, 4
    %v1763 = vadd.f32 %v1761, %v1762
    %v1764 = vrot.slane %v1763, 2
    %v1765 = vadd.f32 %v1763, %v1764
    %v1766 = vrot.slane %v1765, 1
    %v1767 = vadd.f32 %v1765, %v1766
    %v1768 = vadd.f32 %v1746, 0.0
    %v1769 = vadd.f32 %v1753, 0.0
    %v1770 = vadd.f32 %v1760, 0.0
    %v1771 = vadd.f32 %v1767, 0.0
    %v1772 = vpack.c.bf16 %v1636, %v1632
    %v1773 = vpack.c.bf16 %v1637, %v1633
    %v1774 = vpack.c.bf16 %v1638, %v1634
    %v1775 = vpack.c.bf16 %v1639, %v1635
    %v1776 = vpack.c.bf16 %v1640, %v1640
    %v1777 = vpack.c.bf16 %v1641, %v1641
    %v1778 = vpack.c.bf16 %v1642, %v1642
    %v1779 = vpack.c.bf16 %v1643, %v1643
    %v1788 = vunpack.c.l.b16 %v1772
    %v1789 = vunpack.c.l.b16 %v1773
    %v1790 = vunpack.c.l.b16 %v1774
    %v1791 = vunpack.c.l.b16 %v1775
    %v1792 = vunpack.c.h.b16 %v1772
    %v1793 = vunpack.c.h.b16 %v1773
    %v1794 = vunpack.c.h.b16 %v1774
    %v1795 = vunpack.c.h.b16 %v1775
    %v1796 = vunpack.c.l.b16 %v1776
    %v1797 = vunpack.c.l.b16 %v1777
    %v1798 = vunpack.c.l.b16 %v1778
    %v1799 = vunpack.c.l.b16 %v1779
    %v1800 = vpack.c.b16 %v1789, %v1788
    %v1801 = vpack.c.b16 %v1791, %v1790
    %v1802 = vpack.c.b16 %v1793, %v1792
    %v1803 = vpack.c.b16 %v1795, %v1794
    %v1804 = vpack.c.b16 %v1797, %v1796
    %v1805 = vpack.c.b16 %v1799, %v1798
    %vm1806 = vcmask 1042432
    %vm1807 = vcmask 1046532
    %vm1808 = vmor %vm1806, %vm1807
    %v1809 = vrot.slane %v1800, 5
    %v1810 = vrot.slane %v1809, 4
    %v1811 = vrot.slane %v1802, 5
    %v1812 = vsel %vm1808, %v1810, %v1811
    %v1813 = vrot.slane %v1801, 5
    %v1814 = vrot.slane %v1813, 4
    %v1815 = vrot.slane %v1803, 5
    %v1816 = vsel %vm1808, %v1814, %v1815
    %v1817 = vrot.slane %v1811, 4
    %v1818 = vrot.slane %v1804, 5
    %v1819 = vsel %vm1808, %v1817, %v1818
    %v1820 = vrot.slane %v1815, 4
    %v1821 = vrot.slane %v1805, 5
    %v1822 = vsel %vm1808, %v1820, %v1821
    %s1827 = scalar_lea.vmem %s5, 32
    %1828 = vst [vmem:[%s1827] sm:$0xff] %v1812
    %1829 = vst [vmem:[%s1827 + $0x8] sm:$0xff] %v1816
    %1830 = vst [vmem:[%s1827 + $0x10] sm:$0xff] %v1819
    %1831 = vst [vmem:[%s1827 + $0x18] sm:$0xff] %v1822
    %v1832 = vpack.c.bf16 %v1388, %v1384
    %v1833 = vpack.c.bf16 %v1389, %v1385
    %v1834 = vpack.c.bf16 %v1390, %v1386
    %v1835 = vpack.c.bf16 %v1391, %v1387
    %v1836 = vpack.c.bf16 %v1392, %v1392
    %v1837 = vpack.c.bf16 %v1393, %v1393
    %v1838 = vpack.c.bf16 %v1394, %v1394
    %v1839 = vpack.c.bf16 %v1395, %v1395
    %v1848 = vunpack.c.l.b16 %v1832
    %v1849 = vunpack.c.l.b16 %v1833
    %v1850 = vunpack.c.l.b16 %v1834
    %v1851 = vunpack.c.l.b16 %v1835
    %v1852 = vunpack.c.h.b16 %v1832
    %v1853 = vunpack.c.h.b16 %v1833
    %v1854 = vunpack.c.h.b16 %v1834
    %v1855 = vunpack.c.h.b16 %v1835
    %v1856 = vunpack.c.l.b16 %v1836
    %v1857 = vunpack.c.l.b16 %v1837
    %v1858 = vunpack.c.l.b16 %v1838
    %v1859 = vunpack.c.l.b16 %v1839
    %v1860 = vpack.c.b16 %v1849, %v1848
    %v1861 = vpack.c.b16 %v1851, %v1850
    %v1862 = vpack.c.b16 %v1853, %v1852
    %v1863 = vpack.c.b16 %v1855, %v1854
    %v1864 = vpack.c.b16 %v1857, %v1856
    %v1865 = vpack.c.b16 %v1859, %v1858
    %v1866 = vrot.slane %v1860, 5
    %v1867 = vrot.slane %v1866, 4
    %v1868 = vrot.slane %v1862, 5
    %v1869 = vsel %vm1808, %v1867, %v1868
    %v1870 = vrot.slane %v1861, 5
    %v1871 = vrot.slane %v1870, 4
    %v1872 = vrot.slane %v1863, 5
    %v1873 = vsel %vm1808, %v1871, %v1872
    %v1874 = vrot.slane %v1868, 4
    %v1875 = vrot.slane %v1864, 5
    %v1876 = vsel %vm1808, %v1874, %v1875
    %v1877 = vrot.slane %v1872, 4
    %v1878 = vrot.slane %v1865, 5
    %v1879 = vsel %vm1808, %v1877, %v1878
    %s1884 = scalar_lea.vmem %s6, 32
    %1885 = vst [vmem:[%s1884] sm:$0xff] %v1869
    %1886 = vst [vmem:[%s1884 + $0x8] sm:$0xff] %v1873
    %1887 = vst [vmem:[%s1884 + $0x10] sm:$0xff] %v1876
    %1888 = vst [vmem:[%s1884 + $0x18] sm:$0xff] %v1879
    %vm1901 = vcmask 1045504
    %v1902 = vrot.slane %v1632, 2
    %v1903 = vrot.slane %v1636, 2
    %v1904 = vsel %vm1901, %v1902, %v1903
    %v1905 = vrot.slane %v1633, 2
    %v1906 = vrot.slane %v1637, 2
    %v1907 = vsel %vm1901, %v1905, %v1906
    %v1908 = vrot.slane %v1634, 2
    %v1909 = vrot.slane %v1638, 2
    %v1910 = vsel %vm1901, %v1908, %v1909
    %v1911 = vrot.slane %v1635, 2
    %v1912 = vrot.slane %v1639, 2
    %v1913 = vsel %vm1901, %v1911, %v1912
    %v1914 = vrot.slane %v1640, 2
    %v1915 = vsel %vm1901, %v1903, %v1914
    %v1916 = vrot.slane %v1641, 2
    %v1917 = vsel %vm1901, %v1906, %v1916
    %v1918 = vrot.slane %v1642, 2
    %v1919 = vsel %vm1901, %v1909, %v1918
    %v1920 = vrot.slane %v1643, 2
    %v1921 = vsel %vm1901, %v1912, %v1920
    %v1930 = vadd.f32 %v1904, %v1915
    %v1931 = vrot.slane %v1930, 4
    %v1932 = vadd.f32 %v1930, %v1931
    %v1933 = vrot.slane %v1932, 2
    %v1934 = vadd.f32 %v1932, %v1933
    %v1935 = vrot.slane %v1934, 1
    %v1936 = vadd.f32 %v1934, %v1935
    %v1937 = vadd.f32 %v1907, %v1917
    %v1938 = vrot.slane %v1937, 4
    %v1939 = vadd.f32 %v1937, %v1938
    %v1940 = vrot.slane %v1939, 2
    %v1941 = vadd.f32 %v1939, %v1940
    %v1942 = vrot.slane %v1941, 1
    %v1943 = vadd.f32 %v1941, %v1942
    %v1944 = vadd.f32 %v1910, %v1919
    %v1945 = vrot.slane %v1944, 4
    %v1946 = vadd.f32 %v1944, %v1945
    %v1947 = vrot.slane %v1946, 2
    %v1948 = vadd.f32 %v1946, %v1947
    %v1949 = vrot.slane %v1948, 1
    %v1950 = vadd.f32 %v1948, %v1949
    %v1951 = vadd.f32 %v1913, %v1921
    %v1952 = vrot.slane %v1951, 4
    %v1953 = vadd.f32 %v1951, %v1952
    %v1954 = vrot.slane %v1953, 2
    %v1955 = vadd.f32 %v1953, %v1954
    %v1956 = vrot.slane %v1955, 1
    %v1957 = vadd.f32 %v1955, %v1956
    %v1958 = vadd.f32 %v1728, %v1936
    %v1959 = vadd.f32 %v1729, %v1943
    %v1960 = vadd.f32 %v1730, %v1950
    %v1961 = vadd.f32 %v1731, %v1957
    %v1962 = vmul.f32 %v1632, %v1632
    %v1963 = vmul.f32 %v1633, %v1633
    %v1964 = vmul.f32 %v1634, %v1634
    %v1965 = vmul.f32 %v1635, %v1635
    %v1966 = vmul.f32 %v1636, %v1636
    %v1967 = vmul.f32 %v1637, %v1637
    %v1968 = vmul.f32 %v1638, %v1638
    %v1969 = vmul.f32 %v1639, %v1639
    %v1970 = vmul.f32 %v1640, %v1640
    %v1971 = vmul.f32 %v1641, %v1641
    %v1972 = vmul.f32 %v1642, %v1642
    %v1973 = vmul.f32 %v1643, %v1643
    %v1986 = vrot.slane %v1962, 2
    %v1987 = vrot.slane %v1966, 2
    %v1988 = vsel %vm1901, %v1986, %v1987
    %v1989 = vrot.slane %v1963, 2
    %v1990 = vrot.slane %v1967, 2
    %v1991 = vsel %vm1901, %v1989, %v1990
    %v1992 = vrot.slane %v1964, 2
    %v1993 = vrot.slane %v1968, 2
    %v1994 = vsel %vm1901, %v1992, %v1993
    %v1995 = vrot.slane %v1965, 2
    %v1996 = vrot.slane %v1969, 2
    %v1997 = vsel %vm1901, %v1995, %v1996
    %v1998 = vrot.slane %v1970, 2
    %v1999 = vsel %vm1901, %v1987, %v1998
    %v2000 = vrot.slane %v1971, 2
    %v2001 = vsel %vm1901, %v1990, %v2000
    %v2002 = vrot.slane %v1972, 2
    %v2003 = vsel %vm1901, %v1993, %v2002
    %v2004 = vrot.slane %v1973, 2
    %v2005 = vsel %vm1901, %v1996, %v2004
    %v2014 = vadd.f32 %v1988, %v1999
    %v2015 = vrot.slane %v2014, 4
    %v2016 = vadd.f32 %v2014, %v2015
    %v2017 = vrot.slane %v2016, 2
    %v2018 = vadd.f32 %v2016, %v2017
    %v2019 = vrot.slane %v2018, 1
    %v2020 = vadd.f32 %v2018, %v2019
    %v2021 = vadd.f32 %v1991, %v2001
    %v2022 = vrot.slane %v2021, 4
    %v2023 = vadd.f32 %v2021, %v2022
    %v2024 = vrot.slane %v2023, 2
    %v2025 = vadd.f32 %v2023, %v2024
    %v2026 = vrot.slane %v2025, 1
    %v2027 = vadd.f32 %v2025, %v2026
    %v2028 = vadd.f32 %v1994, %v2003
    %v2029 = vrot.slane %v2028, 4
    %v2030 = vadd.f32 %v2028, %v2029
    %v2031 = vrot.slane %v2030, 2
    %v2032 = vadd.f32 %v2030, %v2031
    %v2033 = vrot.slane %v2032, 1
    %v2034 = vadd.f32 %v2032, %v2033
    %v2035 = vadd.f32 %v1997, %v2005
    %v2036 = vrot.slane %v2035, 4
    %v2037 = vadd.f32 %v2035, %v2036
    %v2038 = vrot.slane %v2037, 2
    %v2039 = vadd.f32 %v2037, %v2038
    %v2040 = vrot.slane %v2039, 1
    %v2041 = vadd.f32 %v2039, %v2040
    %v2042 = vadd.f32 %v1768, %v2020
    %v2043 = vadd.f32 %v1769, %v2027
    %v2044 = vadd.f32 %v1770, %v2034
    %v2045 = vadd.f32 %v1771, %v2041
    %v2050 = vcombine.low %v1958, %v1959
    %v2051 = vcombine.low %v1960, %v1961
    %v2053 = vunpack.c.l.s4 1966171168
    %v2054 = vunpack.c.0.s8 %v2053
    %v2055 = vlaneseq
    %v2056 = vshrl.u32 %v2055, 7
    %v2057 = vsub.s32 %v2054, %v2056
    %v2058 = vrot.slane %v2050, %v2057
    %v2060 = vunpack.c.l.s4 1966171168
    %v2061 = vunpack.c.0.s8 %v2060
    %v2062 = vlaneseq
    %v2063 = vshrl.u32 %v2062, 7
    %v2064 = vsub.s32 %v2061, %v2063
    %v2065 = vrot.slane %v2051, %v2064
    %v2066 = vcombine.low %v2058, %v2065
    %v2068 = vunpack.c.l.s4 1966171168
    %v2069 = vunpack.c.0.s8 %v2068
    %v2070 = vlaneseq
    %v2071 = vshrl.u32 %v2070, 7
    %v2072 = vsub.s32 %v2069, %v2071
    %v2073 = vrot.slane %v2066, %v2072
    %v2075 = vlaneseq
    %vm2076 = vcmp.ge.s32.totalorder %v2075, 0
    %vm2077 = vcmp.lt.s32.totalorder %v2075, 512
    %vm2078 = vmand %vm2076, %vm2077
    %2079 = vst.msk [vmem:[%s7] sm:$0xf] %vm2078, %v2073
    %v2084 = vcombine.low %v2042, %v2043
    %v2085 = vcombine.low %v2044, %v2045
    %v2087 = vunpack.c.l.s4 1966171168
    %v2088 = vunpack.c.0.s8 %v2087
    %v2089 = vlaneseq
    %v2090 = vshrl.u32 %v2089, 7
    %v2091 = vsub.s32 %v2088, %v2090
    %v2092 = vrot.slane %v2084, %v2091
    %v2094 = vunpack.c.l.s4 1966171168
    %v2095 = vunpack.c.0.s8 %v2094
    %v2096 = vlaneseq
    %v2097 = vshrl.u32 %v2096, 7
    %v2098 = vsub.s32 %v2095, %v2097
    %v2099 = vrot.slane %v2085, %v2098
    %v2100 = vcombine.low %v2092, %v2099
    %v2102 = vunpack.c.l.s4 1966171168
    %v2103 = vunpack.c.0.s8 %v2102
    %v2104 = vlaneseq
    %v2105 = vshrl.u32 %v2104, 7
    %v2106 = vsub.s32 %v2103, %v2105
    %v2107 = vrot.slane %v2100, %v2106
    %2109 = vst.msk [vmem:[%s8] sm:$0xf] %vm2078, %v2107
    // Predicated region
    $region26: #{generator_residual_block.2} parent=1 // pred_check
      _
    $region27: #{generator_residual_block.2} parent=1 // pred_check_branch
      %2111 = sbr.rel (0) target = $region29
    $region28: #{generator_residual_block.2} parent=1 // pred_region
      _
    $region29: #{generator_residual_block.2} parent=1 // pred_fallthru
      _
    // Predicated region
    $region30: #{generator_residual_block.2} parent=1 // pred_check
      _
    $region31: #{generator_residual_block.2} parent=1 // pred_check_branch
      %2113 = sbr.rel (0) target = $region33
    $region32: #{generator_residual_block.2} parent=1 // pred_region
      _
    $region33: #{generator_residual_block.2} parent=1 // pred_fallthru
      _
    // Predicated region
    $region34: #{generator_residual_block.2} parent=1 // pred_check
      _
    $region35: #{generator_residual_block.2} parent=1 // pred_check_branch
      %2115 = sbr.rel (0) target = $region37
    $region36: #{generator_residual_block.2} parent=1 // pred_region
      _
    $region37: #{generator_residual_block.2} parent=1 // pred_fallthru
      _
    // Predicated region
    $region38: #{generator_residual_block.2} parent=1 // pred_check
      _
    $region39: #{generator_residual_block.2} parent=1 // pred_check_branch
      %2117 = sbr.rel (0) target = $region41
    $region40: #{generator_residual_block.2} parent=1 // pred_region
      _
    $region41: #{generator_residual_block.2} parent=1 // pred_fallthru
      _
    // Predicated region
    $region42: #{generator_residual_block.2} parent=1 // pred_check
      _
    $region43: #{generator_residual_block.2} parent=1 // pred_check_branch
      %2119 = sbr.rel (0) target = $region45
    $region44: #{generator_residual_block.2} parent=1 // pred_region
      _
    $region45: #{generator_residual_block.2} parent=1 // pred_fallthru
      _
    // Predicated region
    $region46: #{generator_residual_block.2} parent=1 // pred_check
      _
    $region47: #{generator_residual_block.2} parent=1 // pred_check_branch
      %2121 = sbr.rel (0) target = $region49
    $region48: #{generator_residual_block.2} parent=1 // pred_region
      _
    $region49: #{generator_residual_block.2} parent=1 // pred_fallthru
      _
    // Predicated region
    $region50: #{generator_residual_block.2} parent=1 // pred_check
      _
    $region51: #{generator_residual_block.2} parent=1 // pred_check_branch
      %2123 = sbr.rel (0) target = $region53
    $region52: #{generator_residual_block.2} parent=1 // pred_region
      _
    $region53: #{generator_residual_block.2} parent=1 // pred_fallthru
      _
    // Predicated region
    $region54: #{generator_residual_block.2} parent=1 // pred_check
      _
    $region55: #{generator_residual_block.2} parent=1 // pred_check_branch
      %2125 = sbr.rel (0) target = $region57
    $region56: #{generator_residual_block.2} parent=1 // pred_region
      _
    $region57: #{generator_residual_block.2} parent=1 // pred_fallthru
      _
    %2126 = vsyncpa [#allocation5], 1

// kernel: generator_residual_block.3
$region0: #{generator_residual_block.3}
  #allocation0 [shape = 'u32[]', space=smem, size = 0x4, offset = 0x4, fixed_abs, tag = 'smem constant byte address 0x4 - core index']
  #allocation1 [shape = 'u32[144,128]{1,0:T(1,128)}', space=vmem, size = 0x12000, scoped, tag = 'internal scratch']
  #allocation2 [shape = 'f32[70,256]{1,0:T(8,128)}', space=vmem, size = 0x12000, scoped, tag = 'scratch operand']
  %s0 = inlined_call_operand.vmem [shape: bf16[2,32,256], index: 0, kind: input, shape index: {}]
  %s1 = inlined_call_operand.vmem [shape: f32[2,1,256], index: 1, kind: input, shape index: {}]
  %s2 = inlined_call_operand.vmem [shape: f32[2,1,256], index: 2, kind: input, shape index: {}]
  %s3 = inlined_call_operand.vmem [shape: bf16[3,256,256], index: 3, kind: input, shape index: {}]
  %s4 = inlined_call_operand.vmem [shape: f32[1,256], index: 4, kind: input, shape index: {}]
  %s5 = inlined_call_operand.vmem [shape: bf16[2,32,256], index: 5, kind: input, shape index: {}]
  %s6 = inlined_call_operand.vmem [shape: f32[2,32,256], index: 6, kind: output, shape index: {}]
  %s7 = sld [smem:[#allocation0]]
  $region34: #{generator_residual_block.3} parent=0
    _
  %s9 = ssub.s32 1, %s7
  %s10 = scalar_select 0, %s9, %s7
  // Predicated region
  $region2: #{generator_residual_block.3} parent=0 // pred_check
    _
  $region3: #{generator_residual_block.3} parent=0 // pred_check_branch
    %12 = sbr.rel (0) target = $region5
  $region4: #{generator_residual_block.3} parent=0 // pred_region
    _
  $region5: #{generator_residual_block.3} parent=0 // pred_fallthru
    _
  // Predicated region
  $region6: #{generator_residual_block.3} parent=0 // pred_check
    _
  $region7: #{generator_residual_block.3} parent=0 // pred_check_branch
    %14 = sbr.rel (0) target = $region9
  $region8: #{generator_residual_block.3} parent=0 // pred_region
    _
  $region9: #{generator_residual_block.3} parent=0 // pred_fallthru
    _
  // Predicated region
  $region10: #{generator_residual_block.3} parent=0 // pred_check
    _
  $region11: #{generator_residual_block.3} parent=0 // pred_check_branch
    %16 = sbr.rel (0) target = $region13
  $region12: #{generator_residual_block.3} parent=0 // pred_region
    _
  $region13: #{generator_residual_block.3} parent=0 // pred_fallthru
    _
  // Predicated region
  $region14: #{generator_residual_block.3} parent=0 // pred_check
    _
  $region15: #{generator_residual_block.3} parent=0 // pred_check_branch
    %18 = sbr.rel (0) target = $region17
  $region16: #{generator_residual_block.3} parent=0 // pred_region
    _
  $region17: #{generator_residual_block.3} parent=0 // pred_fallthru
    _
  // Predicated region
  $region18: #{generator_residual_block.3} parent=0 // pred_check
    _
  $region19: #{generator_residual_block.3} parent=0 // pred_check_branch
    %20 = sbr.rel (0) target = $region21
  $region20: #{generator_residual_block.3} parent=0 // pred_region
    _
  $region21: #{generator_residual_block.3} parent=0 // pred_fallthru
    _
  // Predicated region
  $region22: #{generator_residual_block.3} parent=0 // pred_check
    _
  $region23: #{generator_residual_block.3} parent=0 // pred_check_branch
    %22 = sbr.rel (0) target = $region25
  $region24: #{generator_residual_block.3} parent=0 // pred_region
    _
  $region25: #{generator_residual_block.3} parent=0 // pred_fallthru
    _
  %v23 = vlaneseq
  %vm24 = vcmp.ge.s32.totalorder %v23, 0
  %vm25 = vcmp.lt.s32.totalorder %v23, 256
  %vm26 = vmand %vm24, %vm25
  %27 = vst.msk [vmem:[#allocation2] ss:$8 sm:$0x3] %vm26, 0.0
  %28 = vst.msk [vmem:[#allocation2] ss:$8 sm:$0x0] %vm26, 0.0
  %29 = vst [vmem:[#allocation2 + $0x40] sm:$0x6] 0.0
  %30 = vst [vmem:[#allocation2 + $0x48] sm:$0x6] 0.0
  %31 = vst [vmem:[#allocation2 + $0x80] sm:$0x38] 0.0
  %32 = vst [vmem:[#allocation2 + $0x88] sm:$0x38] 0.0
  %v33 = vld [vmem:[%s0] sm:$0xff]
  %v34 = vld [vmem:[%s0 + $0x8] sm:$0xff]
  %v35 = vld [vmem:[%s0 + $0x10] sm:$0xff]
  %v36 = vld [vmem:[%s0 + $0x18] sm:$0xff]
  %v37 = vunpack.c.l.bf16 %v33
  %v38 = vunpack.c.h.bf16 %v33
  %v39 = vunpack.c.l.bf16 %v34
  %v40 = vunpack.c.h.bf16 %v34
  %v41 = vunpack.c.l.bf16 %v35
  %v42 = vunpack.c.h.bf16 %v35
  %v43 = vunpack.c.l.bf16 %v36
  %v44 = vunpack.c.h.bf16 %v36
  %v45 = vld [vmem:[%s1] sm:$0x3]
  %v47 = vlaneseq
  %v48 = vshrl.u32 %v47, 7
  %v49 = vsub.s32 0, %v48
  %v50 = vrot.slane %v45, %v49
  %v51 = vlaneseq
  %v52 = vshrl.u32 %v51, 7
  %v53 = vsub.s32 1, %v52
  %v54 = vrot.slane %v45, %v53
  %v57 = vmul.f32 %v37, %v50
  %v58 = vmul.f32 %v38, %v54
  %v59 = vmul.f32 %v39, %v50
  %v60 = vmul.f32 %v40, %v54
  %v61 = vmul.f32 %v41, %v50
  %v62 = vmul.f32 %v42, %v54
  %v63 = vmul.f32 %v43, %v50
  %v64 = vmul.f32 %v44, %v54
  %v65 = vld [vmem:[%s2] sm:$0x3]
  %v67 = vlaneseq
  %v68 = vshrl.u32 %v67, 7
  %v69 = vsub.s32 0, %v68
  %v70 = vrot.slane %v65, %v69
  %v71 = vlaneseq
  %v72 = vshrl.u32 %v71, 7
  %v73 = vsub.s32 1, %v72
  %v74 = vrot.slane %v65, %v73
  %v77 = vadd.f32 %v57, %v70
  %v78 = vadd.f32 %v58, %v74
  %v79 = vadd.f32 %v59, %v70
  %v80 = vadd.f32 %v60, %v74
  %v81 = vadd.f32 %v61, %v70
  %v82 = vadd.f32 %v62, %v74
  %v83 = vadd.f32 %v63, %v70
  %v84 = vadd.f32 %v64, %v74
  %v85 = vmax.f32 %v77, 0.0
  %v86 = vmax.f32 %v78, 0.0
  %v87 = vmax.f32 %v79, 0.0
  %v88 = vmax.f32 %v80, 0.0
  %v89 = vmax.f32 %v81, 0.0
  %v90 = vmax.f32 %v82, 0.0
  %v91 = vmax.f32 %v83, 0.0
  %v92 = vmax.f32 %v84, 0.0
  %vm101 = vcmask 1040384
  %v102 = vrot.slane %v85, 7
  %v103 = vrot.slane %v86, 7
  %v104 = vrot.slane %v87, 7
  %v105 = vsel %vm101, %v102, %v104
  %v106 = vrot.slane %v88, 7
  %v107 = vsel %vm101, %v103, %v106
  %v108 = vrot.slane %v89, 7
  %v109 = vsel %vm101, %v104, %v108
  %v110 = vrot.slane %v90, 7
  %v111 = vsel %vm101, %v106, %v110
  %v112 = vrot.slane %v91, 7
  %v113 = vsel %vm101, %v108, %v112
  %v114 = vrot.slane %v92, 7
  %v115 = vsel %vm101, %v110, %v114
  %126 = vst [vmem:[#allocation2] sm:$0xfe] %v102
  %127 = vst [vmem:[#allocation2 + $0x8] sm:$0xfe] %v103
  %128 = vst [vmem:[#allocation2 + $0x10] sm:$0xff] %v105
  %129 = vst [vmem:[#allocation2 + $0x18] sm:$0xff] %v107
  %130 = vst [vmem:[#allocation2 + $0x20] sm:$0xff] %v109
  %131 = vst [vmem:[#allocation2 + $0x28] sm:$0xff] %v111
  %132 = vst [vmem:[#allocation2 + $0x30] sm:$0xff] %v113
  %133 = vst [vmem:[#allocation2 + $0x38] sm:$0xff] %v115
  %134 = vst [vmem:[#allocation2 + $0x40] sm:$0x1] %v112
  %135 = vst [vmem:[#allocation2 + $0x48] sm:$0x1] %v114
  %s136 = scalar_lea.vmem %s0, 32
  %v137 = vld [vmem:[%s136] sm:$0xff]
  %v138 = vld [vmem:[%s136 + $0x8] sm:$0xff]
  %v139 = vld [vmem:[%s136 + $0x10] sm:$0xff]
  %v140 = vld [vmem:[%s136 + $0x18] sm:$0xff]
  %v141 = vunpack.c.l.bf16 %v137
  %v142 = vunpack.c.h.bf16 %v137
  %v143 = vunpack.c.l.bf16 %v138
  %v144 = vunpack.c.h.bf16 %v138
  %v145 = vunpack.c.l.bf16 %v139
  %v146 = vunpack.c.h.bf16 %v139
  %v147 = vunpack.c.l.bf16 %v140
  %v148 = vunpack.c.h.bf16 %v140
  %s149 = scalar_lea.vmem %s1, 2
  %v150 = vld [vmem:[%s149] sm:$0x3]
  %v152 = vlaneseq
  %v153 = vshrl.u32 %v152, 7
  %v154 = vsub.s32 0, %v153
  %v155 = vrot.slane %v150, %v154
  %v156 = vlaneseq
  %v157 = vshrl.u32 %v156, 7
  %v158 = vsub.s32 1, %v157
  %v159 = vrot.slane %v150, %v158
  %v162 = vmul.f32 %v141, %v155
  %v163 = vmul.f32 %v142, %v159
  %v164 = vmul.f32 %v143, %v155
  %v165 = vmul.f32 %v144, %v159
  %v166 = vmul.f32 %v145, %v155
  %v167 = vmul.f32 %v146, %v159
  %v168 = vmul.f32 %v147, %v155
  %v169 = vmul.f32 %v148, %v159
  %s170 = scalar_lea.vmem %s2, 2
  %v171 = vld [vmem:[%s170] sm:$0x3]
  %v173 = vlaneseq
  %v174 = vshrl.u32 %v173, 7
  %v175 = vsub.s32 0, %v174
  %v176 = vrot.slane %v171, %v175
  %v177 = vlaneseq
  %v178 = vshrl.u32 %v177, 7
  %v179 = vsub.s32 1, %v178
  %v180 = vrot.slane %v171, %v179
  %v183 = vadd.f32 %v162, %v176
  %v184 = vadd.f32 %v163, %v180
  %v185 = vadd.f32 %v164, %v176
  %v186 = vadd.f32 %v165, %v180
  %v187 = vadd.f32 %v166, %v176
  %v188 = vadd.f32 %v167, %v180
  %v189 = vadd.f32 %v168, %v176
  %v190 = vadd.f32 %v169, %v180
  %v191 = vmax.f32 %v183, 0.0
  %v192 = vmax.f32 %v184, 0.0
  %v193 = vmax.f32 %v185, 0.0
  %v194 = vmax.f32 %v186, 0.0
  %v195 = vmax.f32 %v187, 0.0
  %v196 = vmax.f32 %v188, 0.0
  %v197 = vmax.f32 %v189, 0.0
  %v198 = vmax.f32 %v190, 0.0
  %vm207 = vcmask 1042432
  %v208 = vrot.slane %v191, 5
  %v209 = vrot.slane %v192, 5
  %v210 = vrot.slane %v193, 5
  %v211 = vsel %vm207, %v208, %v210
  %v212 = vrot.slane %v194, 5
  %v213 = vsel %vm207, %v209, %v212
  %v214 = vrot.slane %v195, 5
  %v215 = vsel %vm207, %v210, %v214
  %v216 = vrot.slane %v196, 5
  %v217 = vsel %vm207, %v212, %v216
  %v218 = vrot.slane %v197, 5
  %v219 = vsel %vm207, %v214, %v218
  %v220 = vrot.slane %v198, 5
  %v221 = vsel %vm207, %v216, %v220
  %232 = vst [vmem:[#allocation2 + $0x40] sm:$0xf8] %v208
  %233 = vst [vmem:[#allocation2 + $0x48] sm:$0xf8] %v209
  %234 = vst [vmem:[#allocation2 + $0x50] sm:$0xff] %v211
  %235 = vst [vmem:[#allocation2 + $0x58] sm:$0xff] %v213
  %236 = vst [vmem:[#allocation2 + $0x60] sm:$0xff] %v215
  %237 = vst [vmem:[#allocation2 + $0x68] sm:$0xff] %v217
  %238 = vst [vmem:[#allocation2 + $0x70] sm:$0xff] %v219
  %239 = vst [vmem:[#allocation2 + $0x78] sm:$0xff] %v221
  %240 = vst [vmem:[#allocation2 + $0x80] sm:$0x7] %v218
  %241 = vst [vmem:[#allocation2 + $0x88] sm:$0x7] %v220
  %v242 = vld [vmem:[%s4] sm:$0x3]
  %v244 = vlaneseq
  %v245 = vshrl.u32 %v244, 7
  %v246 = vsub.s32 0, %v245
  %v247 = vrot.slane %v242, %v246
  %v248 = vlaneseq
  %v249 = vshrl.u32 %v248, 7
  %v250 = vsub.s32 1, %v249
  %v251 = vrot.slane %v242, %v250
  %v254 = vld [vmem:[#allocation2] sm:$0xff]
  %v255 = vld [vmem:[#allocation2 + $0x8] sm:$0xff]
  %v256 = vld [vmem:[#allocation2 + $0x10] sm:$0xff]
  %v257 = vld [vmem:[#allocation2 + $0x18] sm:$0xff]
  %v258 = vld [vmem:[#allocation2 + $0x20] sm:$0xff]
  %v259 = vld [vmem:[#allocation2 + $0x28] sm:$0xff]
  %v260 = vld [vmem:[#allocation2 + $0x30] sm:$0xff]
  %v261 = vld [vmem:[#allocation2 + $0x38] sm:$0xff]
  %v262 = vld [vmem:[#allocation2 + $0x40] sm:$0xff]
  %v263 = vld [vmem:[#allocation2 + $0x48] sm:$0xff]
  %v264 = vld [vmem:[#allocation2 + $0x50] sm:$0xff]
  %v265 = vld [vmem:[#allocation2 + $0x58] sm:$0xff]
  %v266 = vld [vmem:[#allocation2 + $0x60] sm:$0xff]
  %v267 = vld [vmem:[#allocation2 + $0x68] sm:$0xff]
  %v268 = vld [vmem:[#allocation2 + $0x70] sm:$0xff]
  %v269 = vld [vmem:[#allocation2 + $0x78] sm:$0xff]
  %v270 = vld [vmem:[#allocation2 + $0x80] sm:$0xf]
  %v271 = vld [vmem:[#allocation2 + $0x88] sm:$0xf]
  %v272 = vpack.c.bf16 %v256, %v254
  %v273 = vpack.c.bf16 %v257, %v255
  %v274 = vpack.c.bf16 %v260, %v258
  %v275 = vpack.c.bf16 %v261, %v259
  %v276 = vpack.c.bf16 %v264, %v262
  %v277 = vpack.c.bf16 %v265, %v263
  %v278 = vpack.c.bf16 %v268, %v266
  %v279 = vpack.c.bf16 %v269, %v267
  %v280 = vpack.c.bf16 %v270, %v270
  %v281 = vpack.c.bf16 %v271, %v271
  %v282 = vld [vmem:[%s3] sm:$0xff]
  %v283 = vld [vmem:[%s3 + $0x8] sm:$0xff]
  %v284 = vld [vmem:[%s3 + $0x10] sm:$0xff]
  %v285 = vld [vmem:[%s3 + $0x18] sm:$0xff]
  %v286 = vld [vmem:[%s3 + $0x20] sm:$0xff]
  %v287 = vld [vmem:[%s3 + $0x28] sm:$0xff]
  %v288 = vld [vmem:[%s3 + $0x30] sm:$0xff]
  %v289 = vld [vmem:[%s3 + $0x38] sm:$0xff]
  %v290 = vld [vmem:[%s3 + $0x40] sm:$0xff]
  %v291 = vld [vmem:[%s3 + $0x48] sm:$0xff]
  %v292 = vld [vmem:[%s3 + $0x50] sm:$0xff]
  %v293 = vld [vmem:[%s3 + $0x58] sm:$0xff]
  %v294 = vld [vmem:[%s3 + $0x60] sm:$0xff]
  %v295 = vld [vmem:[%s3 + $0x68] sm:$0xff]
  %v296 = vld [vmem:[%s3 + $0x70] sm:$0xff]
  %v297 = vld [vmem:[%s3 + $0x78] sm:$0xff]
  %v298 = vld [vmem:[%s3 + $0x80] sm:$0xff]
  %v299 = vld [vmem:[%s3 + $0x88] sm:$0xff]
  %v300 = vld [vmem:[%s3 + $0x90] sm:$0xff]
  %v301 = vld [vmem:[%s3 + $0x98] sm:$0xff]
  %v302 = vld [vmem:[%s3 + $0xa0] sm:$0xff]
  %v303 = vld [vmem:[%s3 + $0xa8] sm:$0xff]
  %v304 = vld [vmem:[%s3 + $0xb0] sm:$0xff]
  %v305 = vld [vmem:[%s3 + $0xb8] sm:$0xff]
  %v306 = vld [vmem:[%s3 + $0xc0] sm:$0xff]
  %v307 = vld [vmem:[%s3 + $0xc8] sm:$0xff]
  %v308 = vld [vmem:[%s3 + $0xd0] sm:$0xff]
  %v309 = vld [vmem:[%s3 + $0xd8] sm:$0xff]
  %v310 = vld [vmem:[%s3 + $0xe0] sm:$0xff]
  %v311 = vld [vmem:[%s3 + $0xe8] sm:$0xff]
  %v312 = vld [vmem:[%s3 + $0xf0] sm:$0xff]
  %v313 = vld [vmem:[%s3 + $0xf8] sm:$0xff]
  %v346 = vunpack.c.l.b16 %v282
  %v347 = vunpack.c.h.b16 %v282
  %v348 = vunpack.c.l.b16 %v283
  %v349 = vunpack.c.h.b16 %v283
  %v350 = vunpack.c.l.b16 %v284
  %v351 = vunpack.c.h.b16 %v284
  %v352 = vunpack.c.l.b16 %v285
  %v353 = vunpack.c.h.b16 %v285
  %v354 = vunpack.c.l.b16 %v286
  %v355 = vunpack.c.h.b16 %v286
  %v356 = vunpack.c.l.b16 %v287
  %v357 = vunpack.c.h.b16 %v287
  %v358 = vunpack.c.l.b16 %v288
  %v359 = vunpack.c.h.b16 %v288
  %v360 = vunpack.c.l.b16 %v289
  %v361 = vunpack.c.h.b16 %v289
  %v362 = vunpack.c.l.b16 %v290
  %v363 = vunpack.c.h.b16 %v290
  %v364 = vunpack.c.l.b16 %v291
  %v365 = vunpack.c.h.b16 %v291
  %v366 = vunpack.c.l.b16 %v292
  %v367 = vunpack.c.h.b16 %v292
  %v368 = vunpack.c.l.b16 %v293
  %v369 = vunpack.c.h.b16 %v293
  %v370 = vunpack.c.l.b16 %v294
  %v371 = vunpack.c.h.b16 %v294
  %v372 = vunpack.c.l.b16 %v295
  %v373 = vunpack.c.h.b16 %v295
  %v374 = vunpack.c.l.b16 %v296
  %v375 = vunpack.c.h.b16 %v296
  %v376 = vunpack.c.l.b16 %v297
  %v377 = vunpack.c.h.b16 %v297
  %v378 = vunpack.c.l.b16 %v298
  %v379 = vunpack.c.h.b16 %v298
  %v380 = vunpack.c.l.b16 %v299
  %v381 = vunpack.c.h.b16 %v299
  %v382 = vunpack.c.l.b16 %v300
  %v383 = vunpack.c.h.b16 %v300
  %v384 = vunpack.c.l.b16 %v301
  %v385 = vunpack.c.h.b16 %v301
  %v386 = vunpack.c.l.b16 %v302
  %v387 = vunpack.c.h.b16 %v302
  %v388 = vunpack.c.l.b16 %v303
  %v389 = vunpack.c.h.b16 %v303
  %v390 = vunpack.c.l.b16 %v304
  %v391 = vunpack.c.h.b16 %v304
  %v392 = vunpack.c.l.b16 %v305
  %v393 = vunpack.c.h.b16 %v305
  %v394 = vunpack.c.l.b16 %v306
  %v395 = vunpack.c.h.b16 %v306
  %v396 = vunpack.c.l.b16 %v307
  %v397 = vunpack.c.h.b16 %v307
  %v398 = vunpack.c.l.b16 %v308
  %v399 = vunpack.c.h.b16 %v308
  %v400 = vunpack.c.l.b16 %v309
  %v401 = vunpack.c.h.b16 %v309
  %v402 = vunpack.c.l.b16 %v310
  %v403 = vunpack.c.h.b16 %v310
  %v404 = vunpack.c.l.b16 %v311
  %v405 = vunpack.c.h.b16 %v311
  %v406 = vunpack.c.l.b16 %v312
  %v407 = vunpack.c.h.b16 %v312
  %v408 = vunpack.c.l.b16 %v313
  %v409 = vunpack.c.h.b16 %v313
  %v410 = vpack.c.b16 %v348, %v346
  %v411 = vpack.c.b16 %v349, %v347
  %v412 = vpack.c.b16 %v352, %v350
  %v413 = vpack.c.b16 %v353, %v351
  %v414 = vpack.c.b16 %v356, %v354
  %v415 = vpack.c.b16 %v357, %v355
  %v416 = vpack.c.b16 %v360, %v358
  %v417 = vpack.c.b16 %v361, %v359
  %v418 = vpack.c.b16 %v364, %v362
  %v419 = vpack.c.b16 %v365, %v363
  %v420 = vpack.c.b16 %v368, %v366
  %v421 = vpack.c.b16 %v369, %v367
  %v422 = vpack.c.b16 %v372, %v370
  %v423 = vpack.c.b16 %v373, %v371
  %v424 = vpack.c.b16 %v376, %v374
  %v425 = vpack.c.b16 %v377, %v375
  %v426 = vpack.c.b16 %v380, %v378
  %v427 = vpack.c.b16 %v381, %v379
  %v428 = vpack.c.b16 %v384, %v382
  %v429 = vpack.c.b16 %v385, %v383
  %v430 = vpack.c.b16 %v388, %v386
  %v431 = vpack.c.b16 %v389, %v387
  %v432 = vpack.c.b16 %v392, %v390
  %v433 = vpack.c.b16 %v393, %v391
  %v434 = vpack.c.b16 %v396, %v394
  %v435 = vpack.c.b16 %v397, %v395
  %v436 = vpack.c.b16 %v400, %v398
  %v437 = vpack.c.b16 %v401, %v399
  %v438 = vpack.c.b16 %v404, %v402
  %v439 = vpack.c.b16 %v405, %v403
  %v440 = vpack.c.b16 %v408, %v406
  %v441 = vpack.c.b16 %v409, %v407
  %474 = vmatprep.subr.bf16.mxu0 %v411
  %475 = vmatpush1.bf16.msra.mxu0 %v410
  %476 = vmatprep.subr.bf16.mxu0 %v413
  %477 = vmatpush1.bf16.msra.mxu0 %v412
  %478 = vmatprep.subr.bf16.mxu0 %v415
  %479 = vmatpush1.bf16.msra.mxu0 %v414
  %480 = vmatprep.subr.bf16.mxu0 %v417
  %481 = vmatpush1.bf16.msra.mxu0 %v416
  %482 = vmatprep.subr.bf16.mxu0 %v419
  %483 = vmatpush1.bf16.msra.mxu0 %v418
  %484 = vmatprep.subr.bf16.mxu0 %v421
  %485 = vmatpush1.bf16.msra.mxu0 %v420
  %486 = vmatprep.subr.bf16.mxu0 %v423
  %487 = vmatpush1.bf16.msra.mxu0 %v422
  %488 = vmatprep.subr.bf16.mxu0 %v425
  %489 = vmatpush1.bf16.msra.mxu0 %v424
  %490 = vmatprep.subr.bf16.mxu0 %v427
  %491 = vmatpush1.bf16.msra.mxu0 %v426
  %492 = vmatprep.subr.bf16.mxu0 %v429
  %493 = vmatpush1.bf16.msra.mxu0 %v428
  %494 = vmatprep.subr.bf16.mxu0 %v431
  %495 = vmatpush1.bf16.msra.mxu0 %v430
  %496 = vmatprep.subr.bf16.mxu0 %v433
  %497 = vmatpush1.bf16.msra.mxu0 %v432
  %498 = vmatprep.subr.bf16.mxu0 %v435
  %499 = vmatpush1.bf16.msra.mxu0 %v434
  %500 = vmatprep.subr.bf16.mxu0 %v437
  %501 = vmatpush1.bf16.msra.mxu0 %v436
  %502 = vmatprep.subr.bf16.mxu0 %v439
  %503 = vmatpush1.bf16.msra.mxu0 %v438
  %504 = vmatprep.subr.bf16.mxu0 %v441
  %505 = vmatpush1.bf16.msra.mxu0 %v440
  %506 = vmatprep.mubr.bf16.mxu0 %v273
  %507 = vmatmul.mubr.bf16.gmra.mrb[0].mxu0 %v272
  %v508 = vpop.f32.mrb[0].mxu0
  %v509 = vadd.f32 0.0, %v508
  %v510 = vpop.f32.mrb[0].mxu0
  %v511 = vadd.f32 0.0, %v510
  %v512 = vpop.f32.mrb[0].mxu0
  %v513 = vadd.f32 0.0, %v512
  %v514 = vpop.f32.mrb[0].mxu0
  %v515 = vadd.f32 0.0, %v514
  %516 = vmatprep.mubr.bf16.mxu0 %v275
  %517 = vmatmul.mubr.bf16.gmra.mrb[0].mxu0 %v274
  %v518 = vpop.f32.mrb[0].mxu0
  %v519 = vadd.f32 0.0, %v518
  %v520 = vpop.f32.mrb[0].mxu0
  %v521 = vadd.f32 0.0, %v520
  %v522 = vpop.f32.mrb[0].mxu0
  %v523 = vadd.f32 0.0, %v522
  %v524 = vpop.f32.mrb[0].mxu0
  %v525 = vadd.f32 0.0, %v524
  %526 = vmatprep.mubr.bf16.mxu0 %v277
  %527 = vmatmul.mubr.bf16.gmra.mrb[0].mxu0 %v276
  %v528 = vpop.f32.mrb[0].mxu0
  %v529 = vadd.f32 0.0, %v528
  %v530 = vpop.f32.mrb[0].mxu0
  %v531 = vadd.f32 0.0, %v530
  %v532 = vpop.f32.mrb[0].mxu0
  %v533 = vadd.f32 0.0, %v532
  %v534 = vpop.f32.mrb[0].mxu0
  %v535 = vadd.f32 0.0, %v534
  %536 = vmatprep.mubr.bf16.mxu0 %v279
  %537 = vmatmul.mubr.bf16.gmra.mrb[0].mxu0 %v278
  %v538 = vpop.f32.mrb[0].mxu0
  %v539 = vadd.f32 0.0, %v538
  %v540 = vpop.f32.mrb[0].mxu0
  %v541 = vadd.f32 0.0, %v540
  %v542 = vpop.f32.mrb[0].mxu0
  %v543 = vadd.f32 0.0, %v542
  %v544 = vpop.f32.mrb[0].mxu0
  %v545 = vadd.f32 0.0, %v544
  %546 = vmatprep.mubr.bf16.mxu0 %v281
  %547 = vmatmul.mubr.bf16.gmra.mrb[0].mxu0 %v280
  %v548 = vpop.f32.mrb[0].mxu0
  %v549 = vadd.f32 0.0, %v548
  %v550 = vpop.f32.mrb[0].mxu0
  %v551 = vadd.f32 0.0, %v550
  %v552 = vpop.f32.mrb[0].mxu0
  %v553 = vpop.f32.mrb[0].mxu0
  %554 = vdwg.mxu0
  %v555 = vadd.f32 %v247, %v509
  %v556 = vadd.f32 %v251, %v511
  %v557 = vadd.f32 %v247, %v513
  %v558 = vadd.f32 %v251, %v515
  %v559 = vadd.f32 %v247, %v519
  %v560 = vadd.f32 %v251, %v521
  %v561 = vadd.f32 %v247, %v523
  %v562 = vadd.f32 %v251, %v525
  %v563 = vadd.f32 %v247, %v529
  %v564 = vadd.f32 %v251, %v531
  %v565 = vadd.f32 %v247, %v533
  %v566 = vadd.f32 %v251, %v535
  %v567 = vadd.f32 %v247, %v539
  %v568 = vadd.f32 %v251, %v541
  %v569 = vadd.f32 %v247, %v543
  %v570 = vadd.f32 %v251, %v545
  %v571 = vadd.f32 %v247, %v549
  %v572 = vadd.f32 %v251, %v551
  %v573 = vld [vmem:[#allocation2] sm:$0xfe]
  %v574 = vld [vmem:[#allocation2 + $0x8] sm:$0xfe]
  %v575 = vld [vmem:[#allocation2 + $0x80] sm:$0x1f]
  %v576 = vld [vmem:[#allocation2 + $0x88] sm:$0x1f]
  %v577 = vpack.c.bf16 %v256, %v573
  %v578 = vpack.c.bf16 %v257, %v574
  %v579 = vpack.c.bf16 %v575, %v575
  %v580 = vpack.c.bf16 %v576, %v576
  %s581 = scalar_lea.vmem %s3, 256
  %v582 = vld [vmem:[%s581] sm:$0xff]
  %v583 = vld [vmem:[%s581 + $0x8] sm:$0xff]
  %v584 = vld [vmem:[%s581 + $0x10] sm:$0xff]
  %v585 = vld [vmem:[%s581 + $0x18] sm:$0xff]
  %v586 = vld [vmem:[%s581 + $0x20] sm:$0xff]
  %v587 = vld [vmem:[%s581 + $0x28] sm:$0xff]
  %v588 = vld [vmem:[%s581 + $0x30] sm:$0xff]
  %v589 = vld [vmem:[%s581 + $0x38] sm:$0xff]
  %v590 = vld [vmem:[%s581 + $0x40] sm:$0xff]
  %v591 = vld [vmem:[%s581 + $0x48] sm:$0xff]
  %v592 = vld [vmem:[%s581 + $0x50] sm:$0xff]
  %v593 = vld [vmem:[%s581 + $0x58] sm:$0xff]
  %v594 = vld [vmem:[%s581 + $0x60] sm:$0xff]
  %v595 = vld [vmem:[%s581 + $0x68] sm:$0xff]
  %v596 = vld [vmem:[%s581 + $0x70] sm:$0xff]
  %v597 = vld [vmem:[%s581 + $0x78] sm:$0xff]
  %v598 = vld [vmem:[%s581 + $0x80] sm:$0xff]
  %v599 = vld [vmem:[%s581 + $0x88] sm:$0xff]
  %v600 = vld [vmem:[%s581 + $0x90] sm:$0xff]
  %v601 = vld [vmem:[%s581 + $0x98] sm:$0xff]
  %v602 = vld [vmem:[%s581 + $0xa0] sm:$0xff]
  %v603 = vld [vmem:[%s581 + $0xa8] sm:$0xff]
  %v604 = vld [vmem:[%s581 + $0xb0] sm:$0xff]
  %v605 = vld [vmem:[%s581 + $0xb8] sm:$0xff]
  %v606 = vld [vmem:[%s581 + $0xc0] sm:$0xff]
  %v607 = vld [vmem:[%s581 + $0xc8] sm:$0xff]
  %v608 = vld [vmem:[%s581 + $0xd0] sm:$0xff]
  %v609 = vld [vmem:[%s581 + $0xd8] sm:$0xff]
  %v610 = vld [vmem:[%s581 + $0xe0] sm:$0xff]
  %v611 = vld [vmem:[%s581 + $0xe8] sm:$0xff]
  %v612 = vld [vmem:[%s581 + $0xf0] sm:$0xff]
  %v613 = vld [vmem:[%s581 + $0xf8] sm:$0xff]
  %vm614 = vsmask.f32 7424
  %v616 = vshrl.u32 %v577, 16
  %v618 = vshll.u32 %v577, 16
  %v620 = vrot.slane %v618, 1
  %v621 = vor.u32 %v616, %v620
  %v623 = vshll.u32 %v274, 16
  %v625 = vrot.slane %v623, 1
  %v626 = vsel %vm614, %v621, %v625
  %v628 = vshrl.u32 %v578, 16
  %v630 = vshll.u32 %v578, 16
  %v632 = vrot.slane %v630, 1
  %v633 = vor.u32 %v628, %v632
  %v635 = vshll.u32 %v275, 16
  %v637 = vrot.slane %v635, 1
  %v638 = vsel %vm614, %v633, %v637
  %v639 = vshrl.u32 %v274, 16
  %v641 = vor.u32 %v639, %v625
  %v643 = vshll.u32 %v276, 16
  %v645 = vrot.slane %v643, 1
  %v646 = vsel %vm614, %v641, %v645
  %v647 = vshrl.u32 %v275, 16
  %v649 = vor.u32 %v647, %v637
  %v651 = vshll.u32 %v277, 16
  %v653 = vrot.slane %v651, 1
  %v654 = vsel %vm614, %v649, %v653
  %v655 = vshrl.u32 %v276, 16
  %v657 = vor.u32 %v655, %v645
  %v659 = vshll.u32 %v278, 16
  %v661 = vrot.slane %v659, 1
  %v662 = vsel %vm614, %v657, %v661
  %v663 = vshrl.u32 %v277, 16
  %v665 = vor.u32 %v663, %v653
  %v667 = vshll.u32 %v279, 16
  %v669 = vrot.slane %v667, 1
  %v670 = vsel %vm614, %v665, %v669
  %v671 = vshrl.u32 %v278, 16
  %v673 = vor.u32 %v671, %v661
  %v675 = vshll.u32 %v579, 16
  %v677 = vrot.slane %v675, 1
  %v678 = vsel %vm614, %v673, %v677
  %v679 = vshrl.u32 %v279, 16
  %v681 = vor.u32 %v679, %v669
  %v683 = vshll.u32 %v580, 16
  %v685 = vrot.slane %v683, 1
  %v686 = vsel %vm614, %v681, %v685
  %v687 = vshrl.u32 %v579, 16
  %v689 = vor.u32 %v687, %v677
  %v690 = vshrl.u32 %v580, 16
  %v692 = vor.u32 %v690, %v685
  %v735 = vunpack.c.l.b16 %v582
  %v736 = vunpack.c.h.b16 %v582
  %v737 = vunpack.c.l.b16 %v583
  %v738 = vunpack.c.h.b16 %v583
  %v739 = vunpack.c.l.b16 %v584
  %v740 = vunpack.c.h.b16 %v584
  %v741 = vunpack.c.l.b16 %v585
  %v742 = vunpack.c.h.b16 %v585
  %v743 = vunpack.c.l.b16 %v586
  %v744 = vunpack.c.h.b16 %v586
  %v745 = vunpack.c.l.b16 %v587
  %v746 = vunpack.c.h.b16 %v587
  %v747 = vunpack.c.l.b16 %v588
  %v748 = vunpack.c.h.b16 %v588
  %v749 = vunpack.c.l.b16 %v589
  %v750 = vunpack.c.h.b16 %v589
  %v751 = vunpack.c.l.b16 %v590
  %v752 = vunpack.c.h.b16 %v590
  %v753 = vunpack.c.l.b16 %v591
  %v754 = vunpack.c.h.b16 %v591
  %v755 = vunpack.c.l.b16 %v592
  %v756 = vunpack.c.h.b16 %v592
  %v757 = vunpack.c.l.b16 %v593
  %v758 = vunpack.c.h.b16 %v593
  %v759 = vunpack.c.l.b16 %v594
  %v760 = vunpack.c.h.b16 %v594
  %v761 = vunpack.c.l.b16 %v595
  %v762 = vunpack.c.h.b16 %v595
  %v763 = vunpack.c.l.b16 %v596
  %v764 = vunpack.c.h.b16 %v596
  %v765 = vunpack.c.l.b16 %v597
  %v766 = vunpack.c.h.b16 %v597
  %v767 = vunpack.c.l.b16 %v598
  %v768 = vunpack.c.h.b16 %v598
  %v769 = vunpack.c.l.b16 %v599
  %v770 = vunpack.c.h.b16 %v599
  %v771 = vunpack.c.l.b16 %v600
  %v772 = vunpack.c.h.b16 %v600
  %v773 = vunpack.c.l.b16 %v601
  %v774 = vunpack.c.h.b16 %v601
  %v775 = vunpack.c.l.b16 %v602
  %v776 = vunpack.c.h.b16 %v602
  %v777 = vunpack.c.l.b16 %v603
  %v778 = vunpack.c.h.b16 %v603
  %v779 = vunpack.c.l.b16 %v604
  %v780 = vunpack.c.h.b16 %v604
  %v781 = vunpack.c.l.b16 %v605
  %v782 = vunpack.c.h.b16 %v605
  %v783 = vunpack.c.l.b16 %v606
  %v784 = vunpack.c.h.b16 %v606
  %v785 = vunpack.c.l.b16 %v607
  %v786 = vunpack.c.h.b16 %v607
  %v787 = vunpack.c.l.b16 %v608
  %v788 = vunpack.c.h.b16 %v608
  %v789 = vunpack.c.l.b16 %v609
  %v790 = vunpack.c.h.b16 %v609
  %v791 = vunpack.c.l.b16 %v610
  %v792 = vunpack.c.h.b16 %v610
  %v793 = vunpack.c.l.b16 %v611
  %v794 = vunpack.c.h.b16 %v611
  %v795 = vunpack.c.l.b16 %v612
  %v796 = vunpack.c.h.b16 %v612
  %v797 = vunpack.c.l.b16 %v613
  %v798 = vunpack.c.h.b16 %v613
  %v799 = vpack.c.b16 %v737, %v735
  %v800 = vpack.c.b16 %v738, %v736
  %v801 = vpack.c.b16 %v741, %v739
  %v802 = vpack.c.b16 %v742, %v740
  %v803 = vpack.c.b16 %v745, %v743
  %v804 = vpack.c.b16 %v746, %v744
  %v805 = vpack.c.b16 %v749, %v747
  %v806 = vpack.c.b16 %v750, %v748
  %v807 = vpack.c.b16 %v753, %v751
  %v808 = vpack.c.b16 %v754, %v752
  %v809 = vpack.c.b16 %v757, %v755
  %v810 = vpack.c.b16 %v758, %v756
  %v811 = vpack.c.b16 %v761, %v759
  %v812 = vpack.c.b16 %v762, %v760
  %v813 = vpack.c.b16 %v765, %v763
  %v814 = vpack.c.b16 %v766, %v764
  %v815 = vpack.c.b16 %v769, %v767
  %v816 = vpack.c.b16 %v770, %v768
  %v817 = vpack.c.b16 %v773, %v771
  %v818 = vpack.c.b16 %v774, %v772
  %v819 = vpack.c.b16 %v777, %v775
  %v820 = vpack.c.b16 %v778, %v776
  %v821 = vpack.c.b16 %v781, %v779
  %v822 = vpack.c.b16 %v782, %v780
  %v823 = vpack.c.b16 %v785, %v783
  %v824 = vpack.c.b16 %v786, %v784
  %v825 = vpack.c.b16 %v789, %v787
  %v826 = vpack.c.b16 %v790, %v788
  %v827 = vpack.c.b16 %v793, %v791
  %v828 = vpack.c.b16 %v794, %v792
  %v829 = vpack.c.b16 %v797, %v795
  %v830 = vpack.c.b16 %v798, %v796
  %863 = vmatprep.subr.bf16.mxu0 %v800
  %864 = vmatpush1.bf16.msra.mxu0 %v799
  %865 = vmatprep.subr.bf16.mxu0 %v802
  %866 = vmatpush1.bf16.msra.mxu0 %v801
  %867 = vmatprep.subr.bf16.mxu0 %v804
  %868 = vmatpush1.bf16.msra.mxu0 %v803
  %869 = vmatprep.subr.bf16.mxu0 %v806
  %870 = vmatpush1.bf16.msra.mxu0 %v805
  %871 = vmatprep.subr.bf16.mxu0 %v808
  %872 = vmatpush1.bf16.msra.mxu0 %v807
  %873 = vmatprep.subr.bf16.mxu0 %v810
  %874 = vmatpush1.bf16.msra.mxu0 %v809
  %875 = vmatprep.subr.bf16.mxu0 %v812
  %876 = vmatpush1.bf16.msra.mxu0 %v811
  %877 = vmatprep.subr.bf16.mxu0 %v814
  %878 = vmatpush1.bf16.msra.mxu0 %v813
  %879 = vmatprep.subr.bf16.mxu0 %v816
  %880 = vmatpush1.bf16.msra.mxu0 %v815
  %881 = vmatprep.subr.bf16.mxu0 %v818
  %882 = vmatpush1.bf16.msra.mxu0 %v817
  %883 = vmatprep.subr.bf16.mxu0 %v820
  %884 = vmatpush1.bf16.msra.mxu0 %v819
  %885 = vmatprep.subr.bf16.mxu0 %v822
  %886 = vmatpush1.bf16.msra.mxu0 %v821
  %887 = vmatprep.subr.bf16.mxu0 %v824
  %888 = vmatpush1.bf16.msra.mxu0 %v823
  %889 = vmatprep.subr.bf16.mxu0 %v826
  %890 = vmatpush1.bf16.msra.mxu0 %v825
  %891 = vmatprep.subr.bf16.mxu0 %v828
  %892 = vmatpush1.bf16.msra.mxu0 %v827
  %893 = vmatprep.subr.bf16.mxu0 %v830
  %894 = vmatpush1.bf16.msra.mxu0 %v829
  %895 = vmatprep.mubr.bf16.mxu0 %v638
  %896 = vmatmul.mubr.bf16.gmra.mrb[0].mxu0 %v626
  %v897 = vpop.f32.mrb[0].mxu0
  %v898 = vadd.f32 0.0, %v897
  %v899 = vpop.f32.mrb[0].mxu0
  %v900 = vadd.f32 0.0, %v899
  %v901 = vpop.f32.mrb[0].mxu0
  %v902 = vadd.f32 0.0, %v901
  %v903 = vpop.f32.mrb[0].mxu0
  %v904 = vadd.f32 0.0, %v903
  %905 = vmatprep.mubr.bf16.mxu0 %v654
  %906 = vmatmul.mubr.bf16.gmra.mrb[0].mxu0 %v646
  %v907 = vpop.f32.mrb[0].mxu0
  %v908 = vadd.f32 0.0, %v907
  %v909 = vpop.f32.mrb[0].mxu0
  %v910 = vadd.f32 0.0, %v909
  %v911 = vpop.f32.mrb[0].mxu0
  %v912 = vadd.f32 0.0, %v911
  %v913 = vpop.f32.mrb[0].mxu0
  %v914 = vadd.f32 0.0, %v913
  %915 = vmatprep.mubr.bf16.mxu0 %v670
  %916 = vmatmul.mubr.bf16.gmra.mrb[0].mxu0 %v662
  %v917 = vpop.f32.mrb[0].mxu0
  %v918 = vadd.f32 0.0, %v917
  %v919 = vpop.f32.mrb[0].mxu0
  %v920 = vadd.f32 0.0, %v919
  %v921 = vpop.f32.mrb[0].mxu0
  %v922 = vadd.f32 0.0, %v921
  %v923 = vpop.f32.mrb[0].mxu0
  %v924 = vadd.f32 0.0, %v923
  %925 = vmatprep.mubr.bf16.mxu0 %v686
  %926 = vmatmul.mubr.bf16.gmra.mrb[0].mxu0 %v678
  %v927 = vpop.f32.mrb[0].mxu0
  %v928 = vadd.f32 0.0, %v927
  %v929 = vpop.f32.mrb[0].mxu0
  %v930 = vadd.f32 0.0, %v929
  %v931 = vpop.f32.mrb[0].mxu0
  %v932 = vadd.f32 0.0, %v931
  %v933 = vpop.f32.mrb[0].mxu0
  %v934 = vadd.f32 0.0, %v933
  %935 = vmatprep.mubr.bf16.mxu0 %v692
  %936 = vmatmul.mubr.bf16.gmra.mrb[0].mxu0 %v689
  %v937 = vpop.f32.mrb[0].mxu0
  %v938 = vadd.f32 0.0, %v937
  %v939 = vpop.f32.mrb[0].mxu0
  %v940 = vadd.f32 0.0, %v939
  %v941 = vpop.f32.mrb[0].mxu0
  %v942 = vpop.f32.mrb[0].mxu0
  %943 = vdwg.mxu0
  %v944 = vadd.f32 %v555, %v898
  %v945 = vadd.f32 %v556, %v900
  %v946 = vadd.f32 %v557, %v902
  %v947 = vadd.f32 %v558, %v904
  %v948 = vadd.f32 %v559, %v908
  %v949 = vadd.f32 %v560, %v910
  %v950 = vadd.f32 %v561, %v912
  %v951 = vadd.f32 %v562, %v914
  %v952 = vadd.f32 %v563, %v918
  %v953 = vadd.f32 %v564, %v920
  %v954 = vadd.f32 %v565, %v922
  %v955 = vadd.f32 %v566, %v924
  %v956 = vadd.f32 %v567, %v928
  %v957 = vadd.f32 %v568, %v930
  %v958 = vadd.f32 %v569, %v932
  %v959 = vadd.f32 %v570, %v934
  %v960 = vadd.f32 %v571, %v938
  %v961 = vadd.f32 %v572, %v940
  %v962 = vld [vmem:[#allocation2] sm:$0xfc]
  %v963 = vld [vmem:[#allocation2 + $0x8] sm:$0xfc]
  %v964 = vld [vmem:[#allocation2 + $0x80] sm:$0x3f]
  %v965 = vld [vmem:[#allocation2 + $0x88] sm:$0x3f]
  %v966 = vpack.c.bf16 %v256, %v962
  %v967 = vpack.c.bf16 %v257, %v963
  %v968 = vpack.c.bf16 %v964, %v964
  %v969 = vpack.c.bf16 %v965, %v965
  %s970 = scalar_lea.vmem %s3, 512
  %v971 = vld [vmem:[%s970] sm:$0xff]
  %v972 = vld [vmem:[%s970 + $0x8] sm:$0xff]
  %v973 = vld [vmem:[%s970 + $0x10] sm:$0xff]
  %v974 = vld [vmem:[%s970 + $0x18] sm:$0xff]
  %v975 = vld [vmem:[%s970 + $0x20] sm:$0xff]
  %v976 = vld [vmem:[%s970 + $0x28] sm:$0xff]
  %v977 = vld [vmem:[%s970 + $0x30] sm:$0xff]
  %v978 = vld [vmem:[%s970 + $0x38] sm:$0xff]
  %v979 = vld [vmem:[%s970 + $0x40] sm:$0xff]
  %v980 = vld [vmem:[%s970 + $0x48] sm:$0xff]
  %v981 = vld [vmem:[%s970 + $0x50] sm:$0xff]
  %v982 = vld [vmem:[%s970 + $0x58] sm:$0xff]
  %v983 = vld [vmem:[%s970 + $0x60] sm:$0xff]
  %v984 = vld [vmem:[%s970 + $0x68] sm:$0xff]
  %v985 = vld [vmem:[%s970 + $0x70] sm:$0xff]
  %v986 = vld [vmem:[%s970 + $0x78] sm:$0xff]
  %v987 = vld [vmem:[%s970 + $0x80] sm:$0xff]
  %v988 = vld [vmem:[%s970 + $0x88] sm:$0xff]
  %v989 = vld [vmem:[%s970 + $0x90] sm:$0xff]
  %v990 = vld [vmem:[%s970 + $0x98] sm:$0xff]
  %v991 = vld [vmem:[%s970 + $0xa0] sm:$0xff]
  %v992 = vld [vmem:[%s970 + $0xa8] sm:$0xff]
  %v993 = vld [vmem:[%s970 + $0xb0] sm:$0xff]
  %v994 = vld [vmem:[%s970 + $0xb8] sm:$0xff]
  %v995 = vld [vmem:[%s970 + $0xc0] sm:$0xff]
  %v996 = vld [vmem:[%s970 + $0xc8] sm:$0xff]
  %v997 = vld [vmem:[%s970 + $0xd0] sm:$0xff]
  %v998 = vld [vmem:[%s970 + $0xd8] sm:$0xff]
  %v999 = vld [vmem:[%s970 + $0xe0] sm:$0xff]
  %v1000 = vld [vmem:[%s970 + $0xe8] sm:$0xff]
  %v1001 = vld [vmem:[%s970 + $0xf0] sm:$0xff]
  %v1002 = vld [vmem:[%s970 + $0xf8] sm:$0xff]
  %vm1013 = vcmask 1046528
  %v1014 = vrot.slane %v966, 1
  %v1015 = vrot.slane %v274, 1
  %v1016 = vsel %vm1013, %v1014, %v1015
  %v1017 = vrot.slane %v967, 1
  %v1018 = vrot.slane %v275, 1
  %v1019 = vsel %vm1013, %v1017, %v1018
  %v1020 = vrot.slane %v276, 1
  %v1021 = vsel %vm1013, %v1015, %v1020
  %v1022 = vrot.slane %v277, 1
  %v1023 = vsel %vm1013, %v1018, %v1022
  %v1024 = vrot.slane %v278, 1
  %v1025 = vsel %vm1013, %v1020, %v1024
  %v1026 = vrot.slane %v279, 1
  %v1027 = vsel %vm1013, %v1022, %v1026
  %v1028 = vrot.slane %v968, 1
  %v1029 = vsel %vm1013, %v1024, %v1028
  %v1030 = vrot.slane %v969, 1
  %v1031 = vsel %vm1013, %v1026, %v1030
  %v1074 = vunpack.c.l.b16 %v971
  %v1075 = vunpack.c.h.b16 %v971
  %v1076 = vunpack.c.l.b16 %v972
  %v1077 = vunpack.c.h.b16 %v972
  %v1078 = vunpack.c.l.b16 %v973
  %v1079 = vunpack.c.h.b16 %v973
  %v1080 = vunpack.c.l.b16 %v974
  %v1081 = vunpack.c.h.b16 %v974
  %v1082 = vunpack.c.l.b16 %v975
  %v1083 = vunpack.c.h.b16 %v975
  %v1084 = vunpack.c.l.b16 %v976
  %v1085 = vunpack.c.h.b16 %v976
  %v1086 = vunpack.c.l.b16 %v977
  %v1087 = vunpack.c.h.b16 %v977
  %v1088 = vunpack.c.l.b16 %v978
  %v1089 = vunpack.c.h.b16 %v978
  %v1090 = vunpack.c.l.b16 %v979
  %v1091 = vunpack.c.h.b16 %v979
  %v1092 = vunpack.c.l.b16 %v980
  %v1093 = vunpack.c.h.b16 %v980
  %v1094 = vunpack.c.l.b16 %v981
  %v1095 = vunpack.c.h.b16 %v981
  %v1096 = vunpack.c.l.b16 %v982
  %v1097 = vunpack.c.h.b16 %v982
  %v1098 = vunpack.c.l.b16 %v983
  %v1099 = vunpack.c.h.b16 %v983
  %v1100 = vunpack.c.l.b16 %v984
  %v1101 = vunpack.c.h.b16 %v984
  %v1102 = vunpack.c.l.b16 %v985
  %v1103 = vunpack.c.h.b16 %v985
  %v1104 = vunpack.c.l.b16 %v986
  %v1105 = vunpack.c.h.b16 %v986
  %v1106 = vunpack.c.l.b16 %v987
  %v1107 = vunpack.c.h.b16 %v987
  %v1108 = vunpack.c.l.b16 %v988
  %v1109 = vunpack.c.h.b16 %v988
  %v1110 = vunpack.c.l.b16 %v989
  %v1111 = vunpack.c.h.b16 %v989
  %v1112 = vunpack.c.l.b16 %v990
  %v1113 = vunpack.c.h.b16 %v990
  %v1114 = vunpack.c.l.b16 %v991
  %v1115 = vunpack.c.h.b16 %v991
  %v1116 = vunpack.c.l.b16 %v992
  %v1117 = vunpack.c.h.b16 %v992
  %v1118 = vunpack.c.l.b16 %v993
  %v1119 = vunpack.c.h.b16 %v993
  %v1120 = vunpack.c.l.b16 %v994
  %v1121 = vunpack.c.h.b16 %v994
  %v1122 = vunpack.c.l.b16 %v995
  %v1123 = vunpack.c.h.b16 %v995
  %v1124 = vunpack.c.l.b16 %v996
  %v1125 = vunpack.c.h.b16 %v996
  %v1126 = vunpack.c.l.b16 %v997
  %v1127 = vunpack.c.h.b16 %v997
  %v1128 = vunpack.c.l.b16 %v998
  %v1129 = vunpack.c.h.b16 %v998
  %v1130 = vunpack.c.l.b16 %v999
  %v1131 = vunpack.c.h.b16 %v999
  %v1132 = vunpack.c.l.b16 %v1000
  %v1133 = vunpack.c.h.b16 %v1000
  %v1134 = vunpack.c.l.b16 %v1001
  %v1135 = vunpack.c.h.b16 %v1001
  %v1136 = vunpack.c.l.b16 %v1002
  %v1137 = vunpack.c.h.b16 %v1002
  %v1138 = vpack.c.b16 %v1076, %v1074
  %v1139 = vpack.c.b16 %v1077, %v1075
  %v1140 = vpack.c.b16 %v1080, %v1078
  %v1141 = vpack.c.b16 %v1081, %v1079
  %v1142 = vpack.c.b16 %v1084, %v1082
  %v1143 = vpack.c.b16 %v1085, %v1083
  %v1144 = vpack.c.b16 %v1088, %v1086
  %v1145 = vpack.c.b16 %v1089, %v1087
  %v1146 = vpack.c.b16 %v1092, %v1090
  %v1147 = vpack.c.b16 %v1093, %v1091
  %v1148 = vpack.c.b16 %v1096, %v1094
  %v1149 = vpack.c.b16 %v1097, %v1095
  %v1150 = vpack.c.b16 %v1100, %v1098
  %v1151 = vpack.c.b16 %v1101, %v1099
  %v1152 = vpack.c.b16 %v1104, %v1102
  %v1153 = vpack.c.b16 %v1105, %v1103
  %v1154 = vpack.c.b16 %v1108, %v1106
  %v1155 = vpack.c.b16 %v1109, %v1107
  %v1156 = vpack.c.b16 %v1112, %v1110
  %v1157 = vpack.c.b16 %v1113, %v1111
  %v1158 = vpack.c.b16 %v1116, %v1114
  %v1159 = vpack.c.b16 %v1117, %v1115
  %v1160 = vpack.c.b16 %v1120, %v1118
  %v1161 = vpack.c.b16 %v1121, %v1119
  %v1162 = vpack.c.b16 %v1124, %v1122
  %v1163 = vpack.c.b16 %v1125, %v1123
  %v1164 = vpack.c.b16 %v1128, %v1126
  %v1165 = vpack.c.b16 %v1129, %v1127
  %v1166 = vpack.c.b16 %v1132, %v1130
  %v1167 = vpack.c.b16 %v1133, %v1131
  %v1168 = vpack.c.b16 %v1136, %v1134
  %v1169 = vpack.c.b16 %v1137, %v1135
  %1202 = vmatprep.subr.bf16.mxu0 %v1139
  %1203 = vmatpush1.bf16.msra.mxu0 %v1138
  %1204 = vmatprep.subr.bf16.mxu0 %v1141
  %1205 = vmatpush1.bf16.msra.mxu0 %v1140
  %1206 = vmatprep.subr.bf16.mxu0 %v1143
  %1207 = vmatpush1.bf16.msra.mxu0 %v1142
  %1208 = vmatprep.subr.bf16.mxu0 %v1145
  %1209 = vmatpush1.bf16.msra.mxu0 %v1144
  %1210 = vmatprep.subr.bf16.mxu0 %v1147
  %1211 = vmatpush1.bf16.msra.mxu0 %v1146
  %1212 = vmatprep.subr.bf16.mxu0 %v1149
  %1213 = vmatpush1.bf16.msra.mxu0 %v1148
  %1214 = vmatprep.subr.bf16.mxu0 %v1151
  %1215 = vmatpush1.bf16.msra.mxu0 %v1150
  %1216 = vmatprep.subr.bf16.mxu0 %v1153
  %1217 = vmatpush1.bf16.msra.mxu0 %v1152
  %1218 = vmatprep.subr.bf16.mxu0 %v1155
  %1219 = vmatpush1.bf16.msra.mxu0 %v1154
  %1220 = vmatprep.subr.bf16.mxu0 %v1157
  %1221 = vmatpush1.bf16.msra.mxu0 %v1156
  %1222 = vmatprep.subr.bf16.mxu0 %v1159
  %1223 = vmatpush1.bf16.msra.mxu0 %v1158
  %1224 = vmatprep.subr.bf16.mxu0 %v1161
  %1225 = vmatpush1.bf16.msra.mxu0 %v1160
  %1226 = vmatprep.subr.bf16.mxu0 %v1163
  %1227 = vmatpush1.bf16.msra.mxu0 %v1162
  %1228 = vmatprep.subr.bf16.mxu0 %v1165
  %1229 = vmatpush1.bf16.msra.mxu0 %v1164
  %1230 = vmatprep.subr.bf16.mxu0 %v1167
  %1231 = vmatpush1.bf16.msra.mxu0 %v1166
  %1232 = vmatprep.subr.bf16.mxu0 %v1169
  %1233 = vmatpush1.bf16.msra.mxu0 %v1168
  %1234 = vmatprep.mubr.bf16.mxu0 %v1019
  %1235 = vmatmul.mubr.bf16.gmra.mrb[0].mxu0 %v1016
  %v1236 = vpop.f32.mrb[0].mxu0
  %v1237 = vadd.f32 0.0, %v1236
  %v1238 = vpop.f32.mrb[0].mxu0
  %v1239 = vadd.f32 0.0, %v1238
  %v1240 = vpop.f32.mrb[0].mxu0
  %v1241 = vadd.f32 0.0, %v1240
  %v1242 = vpop.f32.mrb[0].mxu0
  %v1243 = vadd.f32 0.0, %v1242
  %1244 = vmatprep.mubr.bf16.mxu0 %v1023
  %1245 = vmatmul.mubr.bf16.gmra.mrb[0].mxu0 %v1021
  %v1246 = vpop.f32.mrb[0].mxu0
  %v1247 = vadd.f32 0.0, %v1246
  %v1248 = vpop.f32.mrb[0].mxu0
  %v1249 = vadd.f32 0.0, %v1248
  %v1250 = vpop.f32.mrb[0].mxu0
  %v1251 = vadd.f32 0.0, %v1250
  %v1252 = vpop.f32.mrb[0].mxu0
  %v1253 = vadd.f32 0.0, %v1252
  %1254 = vmatprep.mubr.bf16.mxu0 %v1027
  %1255 = vmatmul.mubr.bf16.gmra.mrb[0].mxu0 %v1025
  %v1256 = vpop.f32.mrb[0].mxu0
  %v1257 = vadd.f32 0.0, %v1256
  %v1258 = vpop.f32.mrb[0].mxu0
  %v1259 = vadd.f32 0.0, %v1258
  %v1260 = vpop.f32.mrb[0].mxu0
  %v1261 = vadd.f32 0.0, %v1260
  %v1262 = vpop.f32.mrb[0].mxu0
  %v1263 = vadd.f32 0.0, %v1262
  %1264 = vmatprep.mubr.bf16.mxu0 %v1031
  %1265 = vmatmul.mubr.bf16.gmra.mrb[0].mxu0 %v1029
  %v1266 = vpop.f32.mrb[0].mxu0
  %v1267 = vadd.f32 0.0, %v1266
  %v1268 = vpop.f32.mrb[0].mxu0
  %v1269 = vadd.f32 0.0, %v1268
  %v1270 = vpop.f32.mrb[0].mxu0
  %v1271 = vadd.f32 0.0, %v1270
  %v1272 = vpop.f32.mrb[0].mxu0
  %v1273 = vadd.f32 0.0, %v1272
  %1274 = vmatprep.mubr.bf16.mxu0 %v1030
  %1275 = vmatmul.mubr.bf16.gmra.mrb[0].mxu0 %v1028
  %v1276 = vpop.f32.mrb[0].mxu0
  %v1277 = vadd.f32 0.0, %v1276
  %v1278 = vpop.f32.mrb[0].mxu0
  %v1279 = vadd.f32 0.0, %v1278
  %v1280 = vpop.f32.mrb[0].mxu0
  %v1281 = vpop.f32.mrb[0].mxu0
  %1282 = vdwg.mxu0
  %v1283 = vadd.f32 %v944, %v1237
  %v1284 = vadd.f32 %v945, %v1239
  %v1285 = vadd.f32 %v946, %v1241
  %v1286 = vadd.f32 %v947, %v1243
  %v1287 = vadd.f32 %v948, %v1247
  %v1288 = vadd.f32 %v949, %v1249
  %v1289 = vadd.f32 %v950, %v1251
  %v1290 = vadd.f32 %v951, %v1253
  %v1291 = vadd.f32 %v952, %v1257
  %v1292 = vadd.f32 %v953, %v1259
  %v1293 = vadd.f32 %v954, %v1261
  %v1294 = vadd.f32 %v955, %v1263
  %v1295 = vadd.f32 %v956, %v1267
  %v1296 = vadd.f32 %v957, %v1269
  %v1297 = vadd.f32 %v958, %v1271
  %v1298 = vadd.f32 %v959, %v1273
  %v1299 = vadd.f32 %v960, %v1277
  %v1300 = vadd.f32 %v961, %v1279
  %v1301 = vld [vmem:[%s5] sm:$0xff]
  %v1302 = vld [vmem:[%s5 + $0x8] sm:$0xff]
  %v1303 = vld [vmem:[%s5 + $0x10] sm:$0xff]
  %v1304 = vld [vmem:[%s5 + $0x18] sm:$0xff]
  %v1305 = vunpack.c.l.bf16 %v1301
  %v1306 = vunpack.c.h.bf16 %v1301
  %v1307 = vunpack.c.l.bf16 %v1302
  %v1308 = vunpack.c.h.bf16 %v1302
  %v1309 = vunpack.c.l.bf16 %v1303
  %v1310 = vunpack.c.h.bf16 %v1303
  %v1311 = vunpack.c.l.bf16 %v1304
  %v1312 = vunpack.c.h.bf16 %v1304
  %v1313 = vadd.f32 %v1283, %v1305
  %v1314 = vadd.f32 %v1284, %v1306
  %v1315 = vadd.f32 %v1285, %v1307
  %v1316 = vadd.f32 %v1286, %v1308
  %v1317 = vadd.f32 %v1287, %v1309
  %v1318 = vadd.f32 %v1288, %v1310
  %v1319 = vadd.f32 %v1289, %v1311
  %v1320 = vadd.f32 %v1290, %v1312
  %1321 = vst [vmem:[%s6] sm:$0xff] %v1313
  %1322 = vst [vmem:[%s6 + $0x8] sm:$0xff] %v1314
  %1323 = vst [vmem:[%s6 + $0x10] sm:$0xff] %v1315
  %1324 = vst [vmem:[%s6 + $0x18] sm:$0xff] %v1316
  %1325 = vst [vmem:[%s6 + $0x20] sm:$0xff] %v1317
  %1326 = vst [vmem:[%s6 + $0x28] sm:$0xff] %v1318
  %1327 = vst [vmem:[%s6 + $0x30] sm:$0xff] %v1319
  %1328 = vst [vmem:[%s6 + $0x38] sm:$0xff] %v1320
  %s1329 = scalar_lea.vmem %s5, 32
  %v1330 = vld [vmem:[%s1329] sm:$0xff]
  %v1331 = vld [vmem:[%s1329 + $0x8] sm:$0xff]
  %v1332 = vld [vmem:[%s1329 + $0x10] sm:$0xff]
  %v1333 = vld [vmem:[%s1329 + $0x18] sm:$0xff]
  %v1334 = vunpack.c.l.bf16 %v1330
  %v1335 = vunpack.c.h.bf16 %v1330
  %v1336 = vunpack.c.l.bf16 %v1331
  %v1337 = vunpack.c.h.bf16 %v1331
  %v1338 = vunpack.c.l.bf16 %v1332
  %v1339 = vunpack.c.h.bf16 %v1332
  %v1340 = vunpack.c.l.bf16 %v1333
  %v1341 = vunpack.c.h.bf16 %v1333
  %vm1350 = vcmask 1041408
  %v1351 = vrot.slane %v1334, 6
  %v1352 = vrot.slane %v1335, 6
  %v1353 = vrot.slane %v1336, 6
  %v1354 = vsel %vm1350, %v1351, %v1353
  %v1355 = vrot.slane %v1337, 6
  %v1356 = vsel %vm1350, %v1352, %v1355
  %v1357 = vrot.slane %v1338, 6
  %v1358 = vsel %vm1350, %v1353, %v1357
  %v1359 = vrot.slane %v1339, 6
  %v1360 = vsel %vm1350, %v1355, %v1359
  %v1361 = vrot.slane %v1340, 6
  %v1362 = vsel %vm1350, %v1357, %v1361
  %v1363 = vrot.slane %v1341, 6
  %v1364 = vsel %vm1350, %v1359, %v1363
  %v1375 = vadd.f32 %v1291, %v1351
  %v1376 = vadd.f32 %v1292, %v1352
  %v1377 = vadd.f32 %v1293, %v1354
  %v1378 = vadd.f32 %v1294, %v1356
  %v1379 = vadd.f32 %v1295, %v1358
  %v1380 = vadd.f32 %v1296, %v1360
  %v1381 = vadd.f32 %v1297, %v1362
  %v1382 = vadd.f32 %v1298, %v1364
  %v1383 = vadd.f32 %v1299, %v1361
  %v1384 = vadd.f32 %v1300, %v1363
  %vm1395 = vcmask 1045504
  %v1396 = vrot.slane %v1375, 2
  %v1397 = vrot.slane %v1377, 2
  %v1398 = vsel %vm1395, %v1396, %v1397
  %v1399 = vrot.slane %v1376, 2
  %v1400 = vrot.slane %v1378, 2
  %v1401 = vsel %vm1395, %v1399, %v1400
  %v1402 = vrot.slane %v1379, 2
  %v1403 = vsel %vm1395, %v1397, %v1402
  %v1404 = vrot.slane %v1380, 2
  %v1405 = vsel %vm1395, %v1400, %v1404
  %v1406 = vrot.slane %v1381, 2
  %v1407 = vsel %vm1395, %v1402, %v1406
  %v1408 = vrot.slane %v1382, 2
  %v1409 = vsel %vm1395, %v1404, %v1408
  %v1410 = vrot.slane %v1383, 2
  %v1411 = vsel %vm1395, %v1406, %v1410
  %v1412 = vrot.slane %v1384, 2
  %v1413 = vsel %vm1395, %v1408, %v1412
  %s1422 = scalar_lea.vmem %s6, 64
  %1423 = vst [vmem:[%s1422] sm:$0xff] %v1398
  %1424 = vst [vmem:[%s1422 + $0x8] sm:$0xff] %v1401
  %1425 = vst [vmem:[%s1422 + $0x10] sm:$0xff] %v1403
  %1426 = vst [vmem:[%s1422 + $0x18] sm:$0xff] %v1405
  %1427 = vst [vmem:[%s1422 + $0x20] sm:$0xff] %v1407
  %1428 = vst [vmem:[%s1422 + $0x28] sm:$0xff] %v1409
  %1429 = vst [vmem:[%s1422 + $0x30] sm:$0xff] %v1411
  %1430 = vst [vmem:[%s1422 + $0x38] sm:$0xff] %v1413
  // Predicated region
  $region26: #{generator_residual_block.3} parent=0 // pred_check
    _
  $region27: #{generator_residual_block.3} parent=0 // pred_check_branch
    %1432 = sbr.rel (0) target = $region29
  $region28: #{generator_residual_block.3} parent=0 // pred_region
    _
  $region29: #{generator_residual_block.3} parent=0 // pred_fallthru
    _
  // Predicated region
  $region30: #{generator_residual_block.3} parent=0 // pred_check
    _
  $region31: #{generator_residual_block.3} parent=0 // pred_check_branch
    %1434 = sbr.rel (0) target = $region33
  $region32: #{generator_residual_block.3} parent=0 // pred_region
    _
  $region33: #{generator_residual_block.3} parent=0 // pred_fallthru
    _

</llo_original>
